<compile_context>
chip_gen: v7x
topology: tpu7x:2x2x1
jax: 0.10.0
libtpu: 0.0.40
codegen_flags: <defaults>
</compile_context>

<pallas_src>
import functools

import jax
import jax.numpy as jnp
from jax import lax
from jax.experimental import pallas as pl
from jax.experimental.pallas import tpu as pltpu

_EPS = 1e-5
_PREC = lax.Precision.HIGHEST  # used only for the pure-JAX f32 reference


def _silu(x):
    return x * jax.nn.sigmoid(x)


def tra_atten_block_kernel(
    x_ref,                       # (Cin, HWp)  f32  (pad lanes are zero)
    w1sc_ref,                    # (2P, Cin)   bf16 = [w1 ; wsc]
    s1_ref, b1_ref,              # (P, 1)      f32  fused bn1
    wkqv_ref, bkqv_ref,          # (3P, P) bf16 = [wk; wq; wv], (3P, 1) f32
    relpos_ref,                  # (P, HWp)    bf16 rel_h + rel_w (pad lanes zero)
    s2_ref, b2_ref,              # fused bn2
    w3_ref, s3_ref, b3_ref,      # conv3 (bf16) + fused bn3
    bsc_ref, ssc_ref, bsc2_ref,  # shortcut conv bias + fused shortcut bn
    o_ref,                       # (P, HWp)    f32
    *, heads, d, planes, hw_valid,
):
    f32 = jnp.float32
    bf16 = jnp.bfloat16
    hwp = x_ref.shape[1]

    # conv1 and the shortcut 1x1 conv share input x -> one stacked bf16 matmul.
    h0 = jnp.dot(w1sc_ref[...], x_ref[...].astype(bf16), preferred_element_type=f32)
    h1 = _silu(h0[:planes] * s1_ref[...] + b1_ref[...])               # conv1+bn1+silu
    sc = (h0[planes:] + bsc_ref[...]) * ssc_ref[...] + bsc2_ref[...]  # shortcut conv+bn

    # --- TraAttention (fused q/k/v projection, bf16 MXU, f32 accumulate) ---
    kqv = jnp.dot(wkqv_ref[...], h1.astype(bf16),
                  preferred_element_type=f32) + bkqv_ref[...]          # (3P, HWp)
    kq = kqv[: 2 * planes]               # [k ; q]  (2P, HWp)
    q = kqv[planes: 2 * planes]          # (P, HWp)
    v = kqv[2 * planes:]                 # (P, HWp)

    # Scores are built transposed: s[n, m] = energy[m, n]  (keys n on sublanes,
    # queries m on lanes) so both big matmuls are in natural MXU orientation and
    # the softmax max reduces over the cheap sublane axis.
    # Everything head-invariant is hoisted out of the head loop.
    key_valid = lax.broadcasted_iota(jnp.int32, (hwp, 1), 0) < hw_valid
    kq_t = kq.T * key_valid.astype(f32)             # (HWp, 2P), padded key rows zeroed
    kmask = key_valid.astype(bf16)                  # (HWp, 1) zero padded keys after exp
    rhs_b = jnp.concatenate([q.astype(bf16), relpos_ref[...]], axis=0)  # (2P, HWp)
    col = lax.broadcasted_iota(jnp.int32, (1, 2 * planes), 1)
    row = lax.broadcasted_iota(jnp.int32, (planes, 1), 0)
    ones_row = jnp.ones((1, hwp), dtype=bf16)

    def head_body(h, acc):
        lo = h * d
        # lane mask selecting head-h channels in both the k- and q- halves
        cmask = (((col >= lo) & (col < lo + d))
                 | ((col >= planes + lo) & (col < planes + lo + d))).astype(f32)
        lhs = (kq_t * cmask).astype(bf16)                               # (HWp, 2P)
        s = jnp.dot(lhs, rhs_b, preferred_element_type=f32)             # (HWp, HWp)
        s = s - jnp.max(s, axis=0, keepdims=True)      # softmax over keys (sublanes)
        p = jnp.exp(s.astype(bf16)) * kmask            # bf16 probs, pad keys -> 0
        # Unnormalized (v_h ; 1) @ p: the appended ones-row yields the softmax
        # denominator l in f32 straight out of the MXU (no separate reduction).
        rmask = ((row >= lo) & (row < lo + d)).astype(f32)
        vh = jnp.concatenate([(v * rmask).astype(bf16), ones_row], axis=0)  # (P+1, HWp)
        ol = jnp.dot(vh, p, preferred_element_type=f32)                 # (P+1, HWp)
        l = ol[planes: planes + 1]                                      # (1, HWp)
        return acc + ol[:planes] * pl.reciprocal(l, approx=True)

    attn_out = lax.fori_loop(0, heads, head_body,
                             jnp.zeros((planes, hwp), dtype=f32))

    # bn2 + silu
    h2 = _silu(attn_out * s2_ref[...] + b2_ref[...])

    # conv3 + bn3
    h3 = jnp.dot(w3_ref[...], h2.astype(bf16), preferred_element_type=f32)
    h3 = h3 * s3_ref[...] + b3_ref[...]

    o_ref[...] = _silu(h3 + sc)


def _fuse_bn(gamma, beta, mean, var):
    s = gamma / jnp.sqrt(var + _EPS)
    return s.reshape(-1, 1), (beta - mean * s).reshape(-1, 1)


def _round_up(n, m):
    return (n + m - 1) // m * m


def tra_atten_block_pallas(x, P, heads):
    B, Cin, H, W = x.shape
    HW = H * W
    HWp = _round_up(HW, 128)          # lane-dense padding: 400 -> 512
    planes = P["w1"].shape[0]
    d = planes // heads

    xf = x.reshape(B, Cin, HW).astype(jnp.float32)
    xf = jnp.pad(xf, ((0, 0), (0, 0), (0, HWp - HW)))

    s1, b1 = _fuse_bn(*P["bn1"])
    s2, b2 = _fuse_bn(*P["bn2"])
    s3, b3 = _fuse_bn(*P["bn3"])
    ssc, bsc2 = _fuse_bn(*P["bnsc"])

    # Stack convs that share an input: conv1 with the shortcut conv (vs x), and
    # k/q/v (vs h1) — ordered [k; q; v] so [k; q] is one contiguous block.
    w1sc = jnp.concatenate([P["w1"], P["wsc"]], axis=0).astype(jnp.bfloat16)
    wkqv = jnp.concatenate([P["wk"], P["wq"], P["wv"]], axis=0).astype(jnp.bfloat16)
    bkqv = jnp.concatenate([P["bk"], P["bq"], P["bv"]], axis=0).reshape(-1, 1)
    relpos = (P["rel_h"] + P["rel_w"]).reshape(planes, HW)
    relpos = jnp.pad(relpos, ((0, 0), (0, HWp - HW))).astype(jnp.bfloat16)

    args = [
        w1sc, s1, b1,
        wkqv, bkqv, relpos,
        s2, b2,
        P["w3"].astype(jnp.bfloat16), s3, b3,
        P["bsc"].reshape(planes, 1), ssc, bsc2,
    ]

    in_specs = [pl.BlockSpec((None, Cin, HWp), lambda b: (b, 0, 0))]
    for a in args:
        in_specs.append(pl.BlockSpec(a.shape, lambda b, _n=a.ndim: (0,) * _n))

    out = pl.pallas_call(
        functools.partial(tra_atten_block_kernel, heads=heads, d=d,
                          planes=planes, hw_valid=HW),
        out_shape=jax.ShapeDtypeStruct((B, planes, HWp), jnp.float32),
        grid=(B,),
        in_specs=in_specs,
        out_specs=pl.BlockSpec((None, planes, HWp), lambda b: (b, 0, 0)),
        compiler_params=pltpu.CompilerParams(
            dimension_semantics=("parallel",),
            vmem_limit_bytes=32 * 1024 * 1024,
        ),
    )(xf, *args)
    return out[:, :, :HW].reshape(B, planes, H, W)


def reference_forward(x, P, heads):
    """Pure-JAX f32 mirror of TraAttenBlock.forward (BN in eval mode)."""
    B, Cin, H, W = x.shape
    HW = H * W
    planes = P["w1"].shape[0]
    d = planes // heads

    def bn(y, g, b, m, v):  # y: (B, C, HW)
        s = g / jnp.sqrt(v + _EPS)
        return y * s[None, :, None] + (b - m * s)[None, :, None]

    xf = x.reshape(B, Cin, HW)
    h1 = jax.nn.silu(bn(jnp.einsum("oc,bcn->bon", P["w1"], xf, precision=_PREC), *P["bn1"]))
    q = jnp.einsum("oc,bcn->bon", P["wq"], h1, precision=_PREC) + P["bq"][None, :, None]
    k = jnp.einsum("oc,bcn->bon", P["wk"], h1, precision=_PREC) + P["bk"][None, :, None]
    v = jnp.einsum("oc,bcn->bon", P["wv"], h1, precision=_PREC) + P["bv"][None, :, None]
    qh = q.reshape(B, heads, d, HW)
    kh = k.reshape(B, heads, d, HW)
    vh = v.reshape(B, heads, d, HW)
    cc = jnp.einsum("bhdm,bhdn->bhmn", qh, kh, precision=_PREC)
    relpos = (P["rel_h"] + P["rel_w"]).reshape(heads, d, HW)
    cp = jnp.einsum("hdm,bhdn->bhmn", relpos, qh, precision=_PREC)
    att = jax.nn.softmax(cc + cp, axis=-1)
    attn_out = jnp.einsum("bhin,bhmn->bhim", vh, att, precision=_PREC).reshape(B, planes, HW)
    h2 = jax.nn.silu(bn(attn_out, *P["bn2"]))
    h3 = bn(jnp.einsum("oc,bcn->bon", P["w3"], h2, precision=_PREC), *P["bn3"])
    sc = bn(jnp.einsum("oc,bcn->bon", P["wsc"], xf, precision=_PREC)
            + P["bsc"][None, :, None], *P["bnsc"])
    return jax.nn.silu(h3 + sc).reshape(B, planes, H, W)


def init_params(key, in_planes, planes, heads, width, height):
    d = planes // heads
    keys = iter(jax.random.split(key, 32))

    def nrm(shape, scale=0.1):
        return scale * jax.random.normal(next(keys), shape, dtype=jnp.float32)

    def bn_params():
        g = 1.0 + nrm((planes,))
        b = nrm((planes,))
        m = nrm((planes,))
        v = 1.0 + jnp.abs(nrm((planes,)))
        return (g, b, m, v)

    return dict(
        w1=nrm((planes, in_planes)), bn1=bn_params(),
        wq=nrm((planes, planes)), bq=nrm((planes,)),
        wk=nrm((planes, planes)), bk=nrm((planes,)),
        wv=nrm((planes, planes)), bv=nrm((planes,)),
        rel_h=nrm((heads, d, 1, height), 1.0),
        rel_w=nrm((heads, d, width, 1), 1.0),
        bn2=bn_params(),
        w3=nrm((planes, planes)), bn3=bn_params(),
        wsc=nrm((planes, in_planes)), bsc=nrm((planes,)), bnsc=bn_params(),
    )


if __name__ == "__main__":
    # Spatial must be 20x20 (TraAttenBlock hard-codes width=height=20 for the
    # relative-position parameters); channels kept small.
    B, in_planes, planes, heads = 2, 4, 8, 4
    H = W = 20

    key = jax.random.PRNGKey(0)
    kx, kp = jax.random.split(key)
    x = jax.random.normal(kx, (B, in_planes, H, W), dtype=jnp.float32)
    P = init_params(kp, in_planes, planes, heads, W, H)

    out = tra_atten_block_pallas(x, P, heads)
    out = jax.block_until_ready(out)

    ref = jax.block_until_ready(reference_forward(x, P, heads))
    err = float(jnp.max(jnp.abs(out - ref)))
    assert out.shape == (B, planes, H, W), out.shape
    # Kernel uses bf16 MXU operands, bf16 exp/probabilities and an approximate
    # reciprocal (all with f32 accumulation); reference is full f32/HIGHEST.
    assert err < 2e-2, f"max abs error vs reference: {err}"

    print("KERNEL_OK")
</pallas_src>

<mosaic_0001>
module attributes {stable_mosaic.version = 11 : i64} {
  func.func @tra_atten_block_kernel(%arg0: i32, %arg1: memref<1x4x512xf32, #tpu.memory_space<vmem>>, %arg2: memref<16x4xbf16, #tpu.memory_space<vmem>>, %arg3: memref<8x1xf32, #tpu.memory_space<vmem>>, %arg4: memref<8x1xf32, #tpu.memory_space<vmem>>, %arg5: memref<24x8xbf16, #tpu.memory_space<vmem>>, %arg6: memref<24x1xf32, #tpu.memory_space<vmem>>, %arg7: memref<8x512xbf16, #tpu.memory_space<vmem>>, %arg8: memref<8x1xf32, #tpu.memory_space<vmem>>, %arg9: memref<8x1xf32, #tpu.memory_space<vmem>>, %arg10: memref<8x8xbf16, #tpu.memory_space<vmem>>, %arg11: memref<8x1xf32, #tpu.memory_space<vmem>>, %arg12: memref<8x1xf32, #tpu.memory_space<vmem>>, %arg13: memref<8x1xf32, #tpu.memory_space<vmem>>, %arg14: memref<8x1xf32, #tpu.memory_space<vmem>>, %arg15: memref<8x1xf32, #tpu.memory_space<vmem>>, %arg16: memref<1x8x512xf32, #tpu.memory_space<vmem>>) attributes {dimension_semantics = [#tpu.dimension_semantics<parallel>], iteration_bounds = array<i64: 2>, scalar_prefetch = 0 : i64, scratch_operands = 0 : i64, tpu.core_type = #tpu.core_type<tc>, window_params = [{transform_indices = @transform_0, window_bounds = array<i64: 1, 4, 512>}, {pipeline_mode = #tpu.pipeline_mode<synchronous>, transform_indices = @transform_1, window_bounds = array<i64: 16, 4>}, {pipeline_mode = #tpu.pipeline_mode<synchronous>, transform_indices = @transform_2, window_bounds = array<i64: 8, 1>}, {pipeline_mode = #tpu.pipeline_mode<synchronous>, transform_indices = @transform_3, window_bounds = array<i64: 8, 1>}, {pipeline_mode = #tpu.pipeline_mode<synchronous>, transform_indices = @transform_4, window_bounds = array<i64: 24, 8>}, {pipeline_mode = #tpu.pipeline_mode<synchronous>, transform_indices = @transform_5, window_bounds = array<i64: 24, 1>}, {pipeline_mode = #tpu.pipeline_mode<synchronous>, transform_indices = @transform_6, window_bounds = array<i64: 8, 512>}, {pipeline_mode = #tpu.pipeline_mode<synchronous>, transform_indices = @transform_7, window_bounds = array<i64: 8, 1>}, {pipeline_mode = #tpu.pipeline_mode<synchronous>, transform_indices = @transform_8, window_bounds = array<i64: 8, 1>}, {pipeline_mode = #tpu.pipeline_mode<synchronous>, transform_indices = @transform_9, window_bounds = array<i64: 8, 8>}, {pipeline_mode = #tpu.pipeline_mode<synchronous>, transform_indices = @transform_10, window_bounds = array<i64: 8, 1>}, {pipeline_mode = #tpu.pipeline_mode<synchronous>, transform_indices = @transform_11, window_bounds = array<i64: 8, 1>}, {pipeline_mode = #tpu.pipeline_mode<synchronous>, transform_indices = @transform_12, window_bounds = array<i64: 8, 1>}, {pipeline_mode = #tpu.pipeline_mode<synchronous>, transform_indices = @transform_13, window_bounds = array<i64: 8, 1>}, {pipeline_mode = #tpu.pipeline_mode<synchronous>, transform_indices = @transform_14, window_bounds = array<i64: 8, 1>}, {transform_indices = @transform_15, window_bounds = array<i64: 1, 8, 512>}]} {
    %c0 = arith.constant 0 : index
    %c0_0 = arith.constant 0 : index
    %0 = vector.load %arg2[%c0, %c0_0] : memref<16x4xbf16, #tpu.memory_space<vmem>>, vector<16x4xbf16>
    %c0_1 = arith.constant 0 : index
    %c0_2 = arith.constant 0 : index
    %c0_3 = arith.constant 0 : index
    %1 = vector.load %arg1[%c0_1, %c0_2, %c0_3] : memref<1x4x512xf32, #tpu.memory_space<vmem>>, vector<1x4x512xf32>
    %2 = vector.shape_cast %1 : vector<1x4x512xf32> to vector<4x512xf32>
    %3 = arith.truncf %2 : vector<4x512xf32> to vector<4x512xbf16>
    %cst = arith.constant dense<0.000000e+00> : vector<16x512xf32>
    %4 = tpu.matmul %0, %3, %cst {dimension_numbers = #tpu.dot_dimension_numbers<[1], [0], [0], [1], [0, 0, 1, 1], [], []>} : vector<16x4xbf16>, vector<4x512xbf16>, vector<16x512xf32> -> vector<16x512xf32>
    %5 = vector.extract_strided_slice %4 {offsets = [0, 0], sizes = [8, 512], strides = [1, 1]} : vector<16x512xf32> to vector<8x512xf32>
    %c0_4 = arith.constant 0 : index
    %c0_5 = arith.constant 0 : index
    %6 = vector.load %arg3[%c0_4, %c0_5] : memref<8x1xf32, #tpu.memory_space<vmem>>, vector<8x1xf32>
    %7 = vector.broadcast %6 : vector<8x1xf32> to vector<8x512xf32>
    %8 = arith.mulf %5, %7 : vector<8x512xf32>
    %c0_6 = arith.constant 0 : index
    %c0_7 = arith.constant 0 : index
    %9 = vector.load %arg4[%c0_6, %c0_7] : memref<8x1xf32, #tpu.memory_space<vmem>>, vector<8x1xf32>
    %10 = vector.broadcast %9 : vector<8x1xf32> to vector<8x512xf32>
    %11 = arith.addf %8, %10 : vector<8x512xf32>
    %12 = arith.negf %11 : vector<8x512xf32>
    %13 = math.exp %12 : vector<8x512xf32>
    %cst_8 = arith.constant 1.000000e+00 : f32
    %14 = vector.broadcast %cst_8 : f32 to vector<8x512xf32>
    %15 = arith.addf %14, %13 : vector<8x512xf32>
    %16 = arith.divf %14, %15 : vector<8x512xf32>
    %17 = arith.mulf %11, %16 : vector<8x512xf32>
    %18 = vector.extract_strided_slice %4 {offsets = [8, 0], sizes = [8, 512], strides = [1, 1]} : vector<16x512xf32> to vector<8x512xf32>
    %c0_9 = arith.constant 0 : index
    %c0_10 = arith.constant 0 : index
    %19 = vector.load %arg13[%c0_9, %c0_10] : memref<8x1xf32, #tpu.memory_space<vmem>>, vector<8x1xf32>
    %20 = vector.broadcast %19 : vector<8x1xf32> to vector<8x512xf32>
    %21 = arith.addf %18, %20 : vector<8x512xf32>
    %c0_11 = arith.constant 0 : index
    %c0_12 = arith.constant 0 : index
    %22 = vector.load %arg14[%c0_11, %c0_12] : memref<8x1xf32, #tpu.memory_space<vmem>>, vector<8x1xf32>
    %23 = vector.broadcast %22 : vector<8x1xf32> to vector<8x512xf32>
    %24 = arith.mulf %21, %23 : vector<8x512xf32>
    %c0_13 = arith.constant 0 : index
    %c0_14 = arith.constant 0 : index
    %25 = vector.load %arg15[%c0_13, %c0_14] : memref<8x1xf32, #tpu.memory_space<vmem>>, vector<8x1xf32>
    %26 = vector.broadcast %25 : vector<8x1xf32> to vector<8x512xf32>
    %27 = arith.addf %24, %26 : vector<8x512xf32>
    %c0_15 = arith.constant 0 : index
    %c0_16 = arith.constant 0 : index
    %28 = vector.load %arg5[%c0_15, %c0_16] : memref<24x8xbf16, #tpu.memory_space<vmem>>, vector<24x8xbf16>
    %29 = arith.truncf %17 : vector<8x512xf32> to vector<8x512xbf16>
    %cst_17 = arith.constant dense<0.000000e+00> : vector<24x512xf32>
    %30 = tpu.matmul %28, %29, %cst_17 {dimension_numbers = #tpu.dot_dimension_numbers<[1], [0], [0], [1], [0, 0, 1, 1], [], []>} : vector<24x8xbf16>, vector<8x512xbf16>, vector<24x512xf32> -> vector<24x512xf32>
    %c0_18 = arith.constant 0 : index
    %c0_19 = arith.constant 0 : index
    %31 = vector.load %arg6[%c0_18, %c0_19] : memref<24x1xf32, #tpu.memory_space<vmem>>, vector<24x1xf32>
    %32 = vector.broadcast %31 : vector<24x1xf32> to vector<24x512xf32>
    %33 = arith.addf %30, %32 : vector<24x512xf32>
    %34 = vector.extract_strided_slice %33 {offsets = [0, 0], sizes = [16, 512], strides = [1, 1]} : vector<24x512xf32> to vector<16x512xf32>
    %35 = vector.extract_strided_slice %33 {offsets = [8, 0], sizes = [8, 512], strides = [1, 1]} : vector<24x512xf32> to vector<8x512xf32>
    %36 = vector.extract_strided_slice %33 {offsets = [16, 0], sizes = [8, 512], strides = [1, 1]} : vector<24x512xf32> to vector<8x512xf32>
    %37 = tpu.iota {dimensions = array<i32: 0>} : vector<512x1xi32>
    %c400_i32 = arith.constant 400 : i32
    %38 = vector.broadcast %c400_i32 : i32 to vector<512x1xi32>
    %39 = arith.cmpi slt, %37, %38 : vector<512x1xi32>
    %40 = tpu.transpose %34, [1, 0] : vector<16x512xf32> -> vector<512x16xf32>
    %41 = arith.extui %39 : vector<512x1xi1> to vector<512x1xi32>
    %42 = arith.sitofp %41 : vector<512x1xi32> to vector<512x1xf32>
    %43 = vector.broadcast %42 : vector<512x1xf32> to vector<512x16xf32>
    %44 = arith.mulf %40, %43 : vector<512x16xf32>
    %45 = arith.extui %39 : vector<512x1xi1> to vector<512x1xi32>
    %46 = arith.sitofp %45 : vector<512x1xi32> to vector<512x1xf32>
    %47 = arith.truncf %46 : vector<512x1xf32> to vector<512x1xbf16>
    %48 = arith.truncf %35 : vector<8x512xf32> to vector<8x512xbf16>
    %c0_20 = arith.constant 0 : index
    %c0_21 = arith.constant 0 : index
    %49 = vector.load %arg7[%c0_20, %c0_21] : memref<8x512xbf16, #tpu.memory_space<vmem>>, vector<8x512xbf16>
    %50 = tpu.concatenate %48, %49 in 0 : vector<8x512xbf16>, vector<8x512xbf16> -> vector<16x512xbf16>
    %51 = tpu.iota {dimensions = array<i32: 1>} : vector<1x16xi32>
    %52 = tpu.iota {dimensions = array<i32: 0>} : vector<8x1xi32>
    %cst_22 = arith.constant 1.000000e+00 : bf16
    %53 = vector.broadcast %cst_22 : bf16 to vector<1x512xbf16>
    %cst_23 = arith.constant 0.000000e+00 : f32
    %54 = vector.broadcast %cst_23 : f32 to vector<8x512xf32>
    %c0_i32 = arith.constant 0 : i32
    %c4_i32 = arith.constant 4 : i32
    %55 = arith.addi %c0_i32, %c4_i32 : i32
    %c1_i32 = arith.constant 1 : i32
    %56 = scf.for %arg17 = %c0_i32 to %55 step %c1_i32 iter_args(%arg18 = %54) -> (vector<8x512xf32>)  : i32 {
      %c2_i32 = arith.constant 2 : i32
      %88 = arith.muli %arg17, %c2_i32 : i32
      %89 = vector.broadcast %88 : i32 to vector<1x16xi32>
      %90 = arith.cmpi sge, %51, %89 : vector<1x16xi32>
      %c2_i32_41 = arith.constant 2 : i32
      %91 = arith.addi %88, %c2_i32_41 : i32
      %92 = vector.broadcast %91 : i32 to vector<1x16xi32>
      %93 = arith.cmpi slt, %51, %92 : vector<1x16xi32>
      %94 = arith.andi %90, %93 : vector<1x16xi1>
      %c8_i32 = arith.constant 8 : i32
      %95 = arith.addi %c8_i32, %88 : i32
      %96 = vector.broadcast %95 : i32 to vector<1x16xi32>
      %97 = arith.cmpi sge, %51, %96 : vector<1x16xi32>
      %c8_i32_42 = arith.constant 8 : i32
      %98 = arith.addi %c8_i32_42, %88 : i32
      %c2_i32_43 = arith.constant 2 : i32
      %99 = arith.addi %98, %c2_i32_43 : i32
      %100 = vector.broadcast %99 : i32 to vector<1x16xi32>
      %101 = arith.cmpi slt, %51, %100 : vector<1x16xi32>
      %102 = arith.andi %97, %101 : vector<1x16xi1>
      %103 = arith.ori %94, %102 : vector<1x16xi1>
      %104 = arith.extui %103 : vector<1x16xi1> to vector<1x16xi32>
      %105 = arith.sitofp %104 : vector<1x16xi32> to vector<1x16xf32>
      %106 = vector.broadcast %105 : vector<1x16xf32> to vector<512x16xf32>
      %107 = arith.mulf %44, %106 : vector<512x16xf32>
      %108 = arith.truncf %107 : vector<512x16xf32> to vector<512x16xbf16>
      %cst_44 = arith.constant dense<0.000000e+00> : vector<512x512xf32>
      %109 = tpu.matmul %108, %50, %cst_44 {dimension_numbers = #tpu.dot_dimension_numbers<[1], [0], [0], [1], [0, 0, 1, 1], [], []>} : vector<512x16xbf16>, vector<16x512xbf16>, vector<512x512xf32> -> vector<512x512xf32>
      %cst_45 = arith.constant dense<0xFF800000> : vector<512xf32>
      %110 = vector.multi_reduction <maximumf>, %109, %cst_45 [0] : vector<512x512xf32> to vector<512xf32>
      %111 = vector.shape_cast %110 : vector<512xf32> to vector<1x512xf32>
      %112 = vector.broadcast %111 : vector<1x512xf32> to vector<512x512xf32>
      %113 = arith.subf %109, %112 : vector<512x512xf32>
      %114 = arith.truncf %113 : vector<512x512xf32> to vector<512x512xbf16>
      %115 = math.exp %114 : vector<512x512xbf16>
      %116 = vector.broadcast %47 : vector<512x1xbf16> to vector<512x512xbf16>
      %117 = arith.mulf %115, %116 : vector<512x512xbf16>
      %118 = vector.broadcast %88 : i32 to vector<8x1xi32>
      %119 = arith.cmpi sge, %52, %118 : vector<8x1xi32>
      %c2_i32_46 = arith.constant 2 : i32
      %120 = arith.addi %88, %c2_i32_46 : i32
      %121 = vector.broadcast %120 : i32 to vector<8x1xi32>
      %122 = arith.cmpi slt, %52, %121 : vector<8x1xi32>
      %123 = arith.andi %119, %122 : vector<8x1xi1>
      %124 = arith.extui %123 : vector<8x1xi1> to vector<8x1xi32>
      %125 = arith.sitofp %124 : vector<8x1xi32> to vector<8x1xf32>
      %126 = vector.broadcast %125 : vector<8x1xf32> to vector<8x512xf32>
      %127 = arith.mulf %36, %126 : vector<8x512xf32>
      %128 = arith.truncf %127 : vector<8x512xf32> to vector<8x512xbf16>
      %129 = tpu.concatenate %128, %53 in 0 : vector<8x512xbf16>, vector<1x512xbf16> -> vector<9x512xbf16>
      %cst_47 = arith.constant dense<0.000000e+00> : vector<9x512xf32>
      %130 = tpu.matmul %129, %117, %cst_47 {dimension_numbers = #tpu.dot_dimension_numbers<[1], [0], [0], [1], [0, 0, 1, 1], [], []>} : vector<9x512xbf16>, vector<512x512xbf16>, vector<9x512xf32> -> vector<9x512xf32>
      %131 = vector.extract_strided_slice %130 {offsets = [8, 0], sizes = [1, 512], strides = [1, 1]} : vector<9x512xf32> to vector<1x512xf32>
      %132 = vector.extract_strided_slice %130 {offsets = [0, 0], sizes = [8, 512], strides = [1, 1]} : vector<9x512xf32> to vector<8x512xf32>
      %133 = tpu.reciprocal %131 {approx = true} : vector<1x512xf32> -> vector<1x512xf32>
      %134 = vector.broadcast %133 : vector<1x512xf32> to vector<8x512xf32>
      %135 = arith.mulf %132, %134 : vector<8x512xf32>
      %136 = arith.addf %arg18, %135 : vector<8x512xf32>
      scf.yield %136 : vector<8x512xf32>
    }
    %c4_i32_24 = arith.constant 4 : i32
    %c0_25 = arith.constant 0 : index
    %c0_26 = arith.constant 0 : index
    %57 = vector.load %arg8[%c0_25, %c0_26] : memref<8x1xf32, #tpu.memory_space<vmem>>, vector<8x1xf32>
    %58 = vector.broadcast %57 : vector<8x1xf32> to vector<8x512xf32>
    %59 = arith.mulf %56, %58 : vector<8x512xf32>
    %c0_27 = arith.constant 0 : index
    %c0_28 = arith.constant 0 : index
    %60 = vector.load %arg9[%c0_27, %c0_28] : memref<8x1xf32, #tpu.memory_space<vmem>>, vector<8x1xf32>
    %61 = vector.broadcast %60 : vector<8x1xf32> to vector<8x512xf32>
    %62 = arith.addf %59, %61 : vector<8x512xf32>
    %63 = arith.negf %62 : vector<8x512xf32>
    %64 = math.exp %63 : vector<8x512xf32>
    %cst_29 = arith.constant 1.000000e+00 : f32
    %65 = vector.broadcast %cst_29 : f32 to vector<8x512xf32>
    %66 = arith.addf %65, %64 : vector<8x512xf32>
    %67 = arith.divf %65, %66 : vector<8x512xf32>
    %68 = arith.mulf %62, %67 : vector<8x512xf32>
    %c0_30 = arith.constant 0 : index
    %c0_31 = arith.constant 0 : index
    %69 = vector.load %arg10[%c0_30, %c0_31] : memref<8x8xbf16, #tpu.memory_space<vmem>>, vector<8x8xbf16>
    %70 = arith.truncf %68 : vector<8x512xf32> to vector<8x512xbf16>
    %cst_32 = arith.constant dense<0.000000e+00> : vector<8x512xf32>
    %71 = tpu.matmul %69, %70, %cst_32 {dimension_numbers = #tpu.dot_dimension_numbers<[1], [0], [0], [1], [0, 0, 1, 1], [], []>} : vector<8x8xbf16>, vector<8x512xbf16>, vector<8x512xf32> -> vector<8x512xf32>
    %c0_33 = arith.constant 0 : index
    %c0_34 = arith.constant 0 : index
    %72 = vector.load %arg11[%c0_33, %c0_34] : memref<8x1xf32, #tpu.memory_space<vmem>>, vector<8x1xf32>
    %73 = vector.broadcast %72 : vector<8x1xf32> to vector<8x512xf32>
    %74 = arith.mulf %71, %73 : vector<8x512xf32>
    %c0_35 = arith.constant 0 : index
    %c0_36 = arith.constant 0 : index
    %75 = vector.load %arg12[%c0_35, %c0_36] : memref<8x1xf32, #tpu.memory_space<vmem>>, vector<8x1xf32>
    %76 = vector.broadcast %75 : vector<8x1xf32> to vector<8x512xf32>
    %77 = arith.addf %74, %76 : vector<8x512xf32>
    %78 = arith.addf %77, %27 : vector<8x512xf32>
    %79 = arith.negf %78 : vector<8x512xf32>
    %80 = math.exp %79 : vector<8x512xf32>
    %cst_37 = arith.constant 1.000000e+00 : f32
    %81 = vector.broadcast %cst_37 : f32 to vector<8x512xf32>
    %82 = arith.addf %81, %80 : vector<8x512xf32>
    %83 = arith.divf %81, %82 : vector<8x512xf32>
    %84 = arith.mulf %78, %83 : vector<8x512xf32>
    %c0_38 = arith.constant 0 : index
    %c0_39 = arith.constant 0 : index
    %c0_40 = arith.constant 0 : index
    %85 = vector.load %arg16[%c0_38, %c0_39, %c0_40] : memref<1x8x512xf32, #tpu.memory_space<vmem>>, vector<1x8x512xf32>
    %86 = vector.shape_cast %85 : vector<1x8x512xf32> to vector<8x512xf32>
    %87 = vector.shape_cast %84 : vector<8x512xf32> to vector<1x8x512xf32>
    tpu.vector_store %arg16[%c0_38, %c0_39, %c0_40], %87 {strides = array<i32>} : memref<1x8x512xf32, #tpu.memory_space<vmem>>, vector<1x8x512xf32>,
    return
  }
  func.func @transform_0(%arg0: i32) -> (i32, i32, i32) {
    %c0_i32 = arith.constant 0 : i32
    %c0_i32_0 = arith.constant 0 : i32
    %c0_i32_1 = arith.constant 0 : i32
    return %arg0, %c0_i32, %c0_i32_0 : i32, i32, i32
  }
  func.func @transform_1(%arg0: i32) -> (i32, i32) {
    %c0_i32 = arith.constant 0 : i32
    %c0_i32_0 = arith.constant 0 : i32
    %c0_i32_1 = arith.constant 0 : i32
    return %c0_i32, %c0_i32_0 : i32, i32
  }
  func.func @transform_2(%arg0: i32) -> (i32, i32) {
    %c0_i32 = arith.constant 0 : i32
    %c0_i32_0 = arith.constant 0 : i32
    %c0_i32_1 = arith.constant 0 : i32
    return %c0_i32, %c0_i32_0 : i32, i32
  }
  func.func @transform_3(%arg0: i32) -> (i32, i32) {
    %c0_i32 = arith.constant 0 : i32
    %c0_i32_0 = arith.constant 0 : i32
    %c0_i32_1 = arith.constant 0 : i32
    return %c0_i32, %c0_i32_0 : i32, i32
  }
  func.func @transform_4(%arg0: i32) -> (i32, i32) {
    %c0_i32 = arith.constant 0 : i32
    %c0_i32_0 = arith.constant 0 : i32
    %c0_i32_1 = arith.constant 0 : i32
    return %c0_i32, %c0_i32_0 : i32, i32
  }
  func.func @transform_5(%arg0: i32) -> (i32, i32) {
    %c0_i32 = arith.constant 0 : i32
    %c0_i32_0 = arith.constant 0 : i32
    %c0_i32_1 = arith.constant 0 : i32
    return %c0_i32, %c0_i32_0 : i32, i32
  }
  func.func @transform_6(%arg0: i32) -> (i32, i32) {
    %c0_i32 = arith.constant 0 : i32
    %c0_i32_0 = arith.constant 0 : i32
    %c0_i32_1 = arith.constant 0 : i32
    return %c0_i32, %c0_i32_0 : i32, i32
  }
  func.func @transform_7(%arg0: i32) -> (i32, i32) {
    %c0_i32 = arith.constant 0 : i32
    %c0_i32_0 = arith.constant 0 : i32
    %c0_i32_1 = arith.constant 0 : i32
    return %c0_i32, %c0_i32_0 : i32, i32
  }
  func.func @transform_8(%arg0: i32) -> (i32, i32) {
    %c0_i32 = arith.constant 0 : i32
    %c0_i32_0 = arith.constant 0 : i32
    %c0_i32_1 = arith.constant 0 : i32
    return %c0_i32, %c0_i32_0 : i32, i32
  }
  func.func @transform_9(%arg0: i32) -> (i32, i32) {
    %c0_i32 = arith.constant 0 : i32
    %c0_i32_0 = arith.constant 0 : i32
    %c0_i32_1 = arith.constant 0 : i32
    return %c0_i32, %c0_i32_0 : i32, i32
  }
  func.func @transform_10(%arg0: i32) -> (i32, i32) {
    %c0_i32 = arith.constant 0 : i32
    %c0_i32_0 = arith.constant 0 : i32
    %c0_i32_1 = arith.constant 0 : i32
    return %c0_i32, %c0_i32_0 : i32, i32
  }
  func.func @transform_11(%arg0: i32) -> (i32, i32) {
    %c0_i32 = arith.constant 0 : i32
    %c0_i32_0 = arith.constant 0 : i32
    %c0_i32_1 = arith.constant 0 : i32
    return %c0_i32, %c0_i32_0 : i32, i32
  }
  func.func @transform_12(%arg0: i32) -> (i32, i32) {
    %c0_i32 = arith.constant 0 : i32
    %c0_i32_0 = arith.constant 0 : i32
    %c0_i32_1 = arith.constant 0 : i32
    return %c0_i32, %c0_i32_0 : i32, i32
  }
  func.func @transform_13(%arg0: i32) -> (i32, i32) {
    %c0_i32 = arith.constant 0 : i32
    %c0_i32_0 = arith.constant 0 : i32
    %c0_i32_1 = arith.constant 0 : i32
    return %c0_i32, %c0_i32_0 : i32, i32
  }
  func.func @transform_14(%arg0: i32) -> (i32, i32) {
    %c0_i32 = arith.constant 0 : i32
    %c0_i32_0 = arith.constant 0 : i32
    %c0_i32_1 = arith.constant 0 : i32
    return %c0_i32, %c0_i32_0 : i32, i32
  }
  func.func @transform_15(%arg0: i32) -> (i32, i32, i32) {
    %c0_i32 = arith.constant 0 : i32
    %c0_i32_0 = arith.constant 0 : i32
    %c0_i32_1 = arith.constant 0 : i32
    return %arg0, %c0_i32, %c0_i32_0 : i32, i32, i32
  }
}

</mosaic_0001>

<llo_original>
// kernel: tpu_custom_call.1
$region0: #{tpu_custom_call.1}
  #allocation0 [shape = 'u32[]', space=smem, size = 0x4, offset = 0x4, fixed_abs, tag = 'smem constant byte address 0x4 - core index']
  #allocation1 [shape = 'u32[144,128]{1,0:T(1,128)}', space=vmem, size = 0x12000, scoped, tag = 'internal scratch']
  %s0 = inlined_call_operand.vmem [shape: f32[2,4,512], index: 0, kind: input, shape index: {}]
  %s1 = inlined_call_operand.vmem [shape: bf16[16,4], index: 1, kind: input, shape index: {}]
  %s2 = inlined_call_operand.vmem [shape: f32[8,1], index: 2, kind: input, shape index: {}]
  %s3 = inlined_call_operand.vmem [shape: f32[8,1], index: 3, kind: input, shape index: {}]
  %s4 = inlined_call_operand.vmem [shape: bf16[24,8], index: 4, kind: input, shape index: {}]
  %s5 = inlined_call_operand.vmem [shape: f32[24,1], index: 5, kind: input, shape index: {}]
  %s6 = inlined_call_operand.vmem [shape: bf16[8,512], index: 6, kind: input, shape index: {}]
  %s7 = inlined_call_operand.vmem [shape: f32[8,1], index: 7, kind: input, shape index: {}]
  %s8 = inlined_call_operand.vmem [shape: f32[8,1], index: 8, kind: input, shape index: {}]
  %s9 = inlined_call_operand.vmem [shape: bf16[8,8], index: 9, kind: input, shape index: {}]
  %s10 = inlined_call_operand.vmem [shape: f32[8,1], index: 10, kind: input, shape index: {}]
  %s11 = inlined_call_operand.vmem [shape: f32[8,1], index: 11, kind: input, shape index: {}]
  %s12 = inlined_call_operand.vmem [shape: f32[8,1], index: 12, kind: input, shape index: {}]
  %s13 = inlined_call_operand.vmem [shape: f32[8,1], index: 13, kind: input, shape index: {}]
  %s14 = inlined_call_operand.vmem [shape: f32[8,1], index: 14, kind: input, shape index: {}]
  %s15 = inlined_call_operand.hbm [shape: f32[2,8,512], index: 15, kind: output, shape index: {}]
  %s16 = sld [smem:[#allocation0]]
  $region100: #{tpu_custom_call.1} parent=0
    _
  %s18 = ssub.s32 1, %s16
  %s19 = scalar_select 0, %s18, %s16
  $region1: #{tpu_custom_call.1} parent=0
    #allocation2 [shape = 'u8[32768]{0}', space=vmem, size = 0x8000, scoped, tag = 'output window, operand 0']
    #allocation3 [shape = 's32[2]{0}', space=sflag, size = 0x8, scoped, tag = 'scoped memory for tpu_custom_call.1']
    %20 = vsyncpa [#allocation3], 0
    %s21 = scalar_lea.sflag [#allocation3], 1
    %22 = vsyncpa %s21, 0
    loop: start=0, step=1, limit=4
    $region2: #{tpu_custom_call.1} parent=1 // loop_pre_header
      _
    $region3: #{tpu_custom_call.1} parent=1 // loop_header
      %s24 = sphi 0, %s28
      %p25 = scmp.ge.s32.totalorder %s24, 4
      %s34 = sphi 0, %s36
      %s37 = sphi 0, %s34
      %s38 = sphi 0, %s37
      %s54 = sphi 0, %s38
      %s58 = sphi 0, %s58
      %s60 = sphi 0, %s58
      %s61 = sphi 0, %s60
      %s75 = sphi 0, %s61
      %s79 = sphi 0, %s79
      %s81 = sphi 0, %s79
      %s82 = sphi 0, %s81
      %s96 = sphi 0, %s82
      %s100 = sphi 0, %s100
      %s102 = sphi 0, %s100
      %s103 = sphi 0, %s102
      %s117 = sphi 0, %s103
      %s121 = sphi 0, %s121
      %s123 = sphi 0, %s121
      %s124 = sphi 0, %s123
      %s138 = sphi 0, %s124
      %s142 = sphi 0, %s142
      %s144 = sphi 0, %s142
      %s145 = sphi 0, %s144
      %s159 = sphi 0, %s145
      %s163 = sphi 0, %s163
      %s165 = sphi 0, %s163
      %s166 = sphi 0, %s165
      %s180 = sphi 0, %s166
      %s184 = sphi 0, %s184
      %s186 = sphi 0, %s184
      %s187 = sphi 0, %s186
      %s201 = sphi 0, %s187
      %s205 = sphi 0, %s205
      %s207 = sphi 0, %s205
      %s208 = sphi 0, %s207
      %s222 = sphi 0, %s208
      %s226 = sphi 0, %s226
      %s228 = sphi 0, %s226
      %s229 = sphi 0, %s228
      %s243 = sphi 0, %s229
      %s247 = sphi 0, %s247
      %s249 = sphi 0, %s247
      %s250 = sphi 0, %s249
      %s264 = sphi 0, %s250
      %s268 = sphi 0, %s268
      %s270 = sphi 0, %s268
      %s271 = sphi 0, %s270
      %s285 = sphi 0, %s271
      %s289 = sphi 0, %s289
      %s291 = sphi 0, %s289
      %s292 = sphi 0, %s291
      %s306 = sphi 0, %s292
      %s310 = sphi 0, %s310
      %s312 = sphi 0, %s310
      %s313 = sphi 0, %s312
      %s327 = sphi 0, %s313
      %s331 = sphi 0, %s331
      %s333 = sphi 0, %s331
      %s334 = sphi 0, %s333
      %s348 = sphi 0, %s334
      %s354 = sphi 0, %s356
      %s357 = sphi 0, %s354
      %s358 = sphi 0, %s357
      %s374 = sphi 0, %s358
    $region4: #{tpu_custom_call.1} parent=1 // loop_header_branch
      %27 = sbr.rel (%p25) target = $region8
    $region5: #{tpu_custom_call.1} parent=1 // loop_body
      %s29 = ssub.s32 %s24, 1
      %s30 = ssub.s32 %s24, 2
      %s31 = sadd.s32 %s24, 1
      %s32 = ssub.s32 %s24, %s31
      %p33 = scmp.eq.s32.totalorder %s32, 0
      %s35 = sadd.s32 %s34, 1
      %s36 = scalar_select %p33, %s34, %s35
      %p39 = pneg %p33
      %p40 = scmp.eq.s32.totalorder %s24, 1
      %p41 = por %p39, %p40
      %p42 = scmp.ne.s32.totalorder %s34, %s37
      %p43 = scmp.eq.s32.totalorder %s24, 0
      %p44 = por %p42, %p43
      %p45 = scmp.ne.s32.totalorder %s34, %s37
      %p46 = scmp.eq.s32.totalorder %s29, 1
      %p47 = por %p45, %p46
      %p48 = scmp.ne.s32.totalorder %s37, %s38
      %p49 = scmp.eq.s32.totalorder %s29, 0
      %p50 = por %p48, %p49
      %p51 = scmp.ne.s32.totalorder %s37, %s38
      %p52 = scmp.eq.s32.totalorder %s30, 1
      %p53 = por %p51, %p52
      %p55 = scmp.ne.s32.totalorder %s38, %s54
      %p56 = scmp.eq.s32.totalorder %s30, 0
      %p57 = por %p55, %p56
      %s59 = sadd.s32 %s58, 1
      %p62 = scmp.eq.s32.totalorder %s24, 1
      %p63 = scmp.ne.s32.totalorder %s58, %s60
      %p64 = scmp.eq.s32.totalorder %s24, 0
      %p65 = por %p63, %p64
      %p66 = scmp.ne.s32.totalorder %s58, %s60
      %p67 = scmp.eq.s32.totalorder %s29, 1
      %p68 = por %p66, %p67
      %p69 = scmp.ne.s32.totalorder %s60, %s61
      %p70 = scmp.eq.s32.totalorder %s29, 0
      %p71 = por %p69, %p70
      %p72 = scmp.ne.s32.totalorder %s60, %s61
      %p73 = scmp.eq.s32.totalorder %s30, 1
      %p74 = por %p72, %p73
      %p76 = scmp.ne.s32.totalorder %s61, %s75
      %p77 = scmp.eq.s32.totalorder %s30, 0
      %p78 = por %p76, %p77
      %s80 = sadd.s32 %s79, 1
      %p83 = scmp.eq.s32.totalorder %s24, 1
      %p84 = scmp.ne.s32.totalorder %s79, %s81
      %p85 = scmp.eq.s32.totalorder %s24, 0
      %p86 = por %p84, %p85
      %p87 = scmp.ne.s32.totalorder %s79, %s81
      %p88 = scmp.eq.s32.totalorder %s29, 1
      %p89 = por %p87, %p88
      %p90 = scmp.ne.s32.totalorder %s81, %s82
      %p91 = scmp.eq.s32.totalorder %s29, 0
      %p92 = por %p90, %p91
      %p93 = scmp.ne.s32.totalorder %s81, %s82
      %p94 = scmp.eq.s32.totalorder %s30, 1
      %p95 = por %p93, %p94
      %p97 = scmp.ne.s32.totalorder %s82, %s96
      %p98 = scmp.eq.s32.totalorder %s30, 0
      %p99 = por %p97, %p98
      %s101 = sadd.s32 %s100, 1
      %p104 = scmp.eq.s32.totalorder %s24, 1
      %p105 = scmp.ne.s32.totalorder %s100, %s102
      %p106 = scmp.eq.s32.totalorder %s24, 0
      %p107 = por %p105, %p106
      %p108 = scmp.ne.s32.totalorder %s100, %s102
      %p109 = scmp.eq.s32.totalorder %s29, 1
      %p110 = por %p108, %p109
      %p111 = scmp.ne.s32.totalorder %s102, %s103
      %p112 = scmp.eq.s32.totalorder %s29, 0
      %p113 = por %p111, %p112
      %p114 = scmp.ne.s32.totalorder %s102, %s103
      %p115 = scmp.eq.s32.totalorder %s30, 1
      %p116 = por %p114, %p115
      %p118 = scmp.ne.s32.totalorder %s103, %s117
      %p119 = scmp.eq.s32.totalorder %s30, 0
      %p120 = por %p118, %p119
      %s122 = sadd.s32 %s121, 1
      %p125 = scmp.eq.s32.totalorder %s24, 1
      %p126 = scmp.ne.s32.totalorder %s121, %s123
      %p127 = scmp.eq.s32.totalorder %s24, 0
      %p128 = por %p126, %p127
      %p129 = scmp.ne.s32.totalorder %s121, %s123
      %p130 = scmp.eq.s32.totalorder %s29, 1
      %p131 = por %p129, %p130
      %p132 = scmp.ne.s32.totalorder %s123, %s124
      %p133 = scmp.eq.s32.totalorder %s29, 0
      %p134 = por %p132, %p133
      %p135 = scmp.ne.s32.totalorder %s123, %s124
      %p136 = scmp.eq.s32.totalorder %s30, 1
      %p137 = por %p135, %p136
      %p139 = scmp.ne.s32.totalorder %s124, %s138
      %p140 = scmp.eq.s32.totalorder %s30, 0
      %p141 = por %p139, %p140
      %s143 = sadd.s32 %s142, 1
      %p146 = scmp.eq.s32.totalorder %s24, 1
      %p147 = scmp.ne.s32.totalorder %s142, %s144
      %p148 = scmp.eq.s32.totalorder %s24, 0
      %p149 = por %p147, %p148
      %p150 = scmp.ne.s32.totalorder %s142, %s144
      %p151 = scmp.eq.s32.totalorder %s29, 1
      %p152 = por %p150, %p151
      %p153 = scmp.ne.s32.totalorder %s144, %s145
      %p154 = scmp.eq.s32.totalorder %s29, 0
      %p155 = por %p153, %p154
      %p156 = scmp.ne.s32.totalorder %s144, %s145
      %p157 = scmp.eq.s32.totalorder %s30, 1
      %p158 = por %p156, %p157
      %p160 = scmp.ne.s32.totalorder %s145, %s159
      %p161 = scmp.eq.s32.totalorder %s30, 0
      %p162 = por %p160, %p161
      %s164 = sadd.s32 %s163, 1
      %p167 = scmp.eq.s32.totalorder %s24, 1
      %p168 = scmp.ne.s32.totalorder %s163, %s165
      %p169 = scmp.eq.s32.totalorder %s24, 0
      %p170 = por %p168, %p169
      %p171 = scmp.ne.s32.totalorder %s163, %s165
      %p172 = scmp.eq.s32.totalorder %s29, 1
      %p173 = por %p171, %p172
      %p174 = scmp.ne.s32.totalorder %s165, %s166
      %p175 = scmp.eq.s32.totalorder %s29, 0
      %p176 = por %p174, %p175
      %p177 = scmp.ne.s32.totalorder %s165, %s166
      %p178 = scmp.eq.s32.totalorder %s30, 1
      %p179 = por %p177, %p178
      %p181 = scmp.ne.s32.totalorder %s166, %s180
      %p182 = scmp.eq.s32.totalorder %s30, 0
      %p183 = por %p181, %p182
      %s185 = sadd.s32 %s184, 1
      %p188 = scmp.eq.s32.totalorder %s24, 1
      %p189 = scmp.ne.s32.totalorder %s184, %s186
      %p190 = scmp.eq.s32.totalorder %s24, 0
      %p191 = por %p189, %p190
      %p192 = scmp.ne.s32.totalorder %s184, %s186
      %p193 = scmp.eq.s32.totalorder %s29, 1
      %p194 = por %p192, %p193
      %p195 = scmp.ne.s32.totalorder %s186, %s187
      %p196 = scmp.eq.s32.totalorder %s29, 0
      %p197 = por %p195, %p196
      %p198 = scmp.ne.s32.totalorder %s186, %s187
      %p199 = scmp.eq.s32.totalorder %s30, 1
      %p200 = por %p198, %p199
      %p202 = scmp.ne.s32.totalorder %s187, %s201
      %p203 = scmp.eq.s32.totalorder %s30, 0
      %p204 = por %p202, %p203
      %s206 = sadd.s32 %s205, 1
      %p209 = scmp.eq.s32.totalorder %s24, 1
      %p210 = scmp.ne.s32.totalorder %s205, %s207
      %p211 = scmp.eq.s32.totalorder %s24, 0
      %p212 = por %p210, %p211
      %p213 = scmp.ne.s32.totalorder %s205, %s207
      %p214 = scmp.eq.s32.totalorder %s29, 1
      %p215 = por %p213, %p214
      %p216 = scmp.ne.s32.totalorder %s207, %s208
      %p217 = scmp.eq.s32.totalorder %s29, 0
      %p218 = por %p216, %p217
      %p219 = scmp.ne.s32.totalorder %s207, %s208
      %p220 = scmp.eq.s32.totalorder %s30, 1
      %p221 = por %p219, %p220
      %p223 = scmp.ne.s32.totalorder %s208, %s222
      %p224 = scmp.eq.s32.totalorder %s30, 0
      %p225 = por %p223, %p224
      %s227 = sadd.s32 %s226, 1
      %p230 = scmp.eq.s32.totalorder %s24, 1
      %p231 = scmp.ne.s32.totalorder %s226, %s228
      %p232 = scmp.eq.s32.totalorder %s24, 0
      %p233 = por %p231, %p232
      %p234 = scmp.ne.s32.totalorder %s226, %s228
      %p235 = scmp.eq.s32.totalorder %s29, 1
      %p236 = por %p234, %p235
      %p237 = scmp.ne.s32.totalorder %s228, %s229
      %p238 = scmp.eq.s32.totalorder %s29, 0
      %p239 = por %p237, %p238
      %p240 = scmp.ne.s32.totalorder %s228, %s229
      %p241 = scmp.eq.s32.totalorder %s30, 1
      %p242 = por %p240, %p241
      %p244 = scmp.ne.s32.totalorder %s229, %s243
      %p245 = scmp.eq.s32.totalorder %s30, 0
      %p246 = por %p244, %p245
      %s248 = sadd.s32 %s247, 1
      %p251 = scmp.eq.s32.totalorder %s24, 1
      %p252 = scmp.ne.s32.totalorder %s247, %s249
      %p253 = scmp.eq.s32.totalorder %s24, 0
      %p254 = por %p252, %p253
      %p255 = scmp.ne.s32.totalorder %s247, %s249
      %p256 = scmp.eq.s32.totalorder %s29, 1
      %p257 = por %p255, %p256
      %p258 = scmp.ne.s32.totalorder %s249, %s250
      %p259 = scmp.eq.s32.totalorder %s29, 0
      %p260 = por %p258, %p259
      %p261 = scmp.ne.s32.totalorder %s249, %s250
      %p262 = scmp.eq.s32.totalorder %s30, 1
      %p263 = por %p261, %p262
      %p265 = scmp.ne.s32.totalorder %s250, %s264
      %p266 = scmp.eq.s32.totalorder %s30, 0
      %p267 = por %p265, %p266
      %s269 = sadd.s32 %s268, 1
      %p272 = scmp.eq.s32.totalorder %s24, 1
      %p273 = scmp.ne.s32.totalorder %s268, %s270
      %p274 = scmp.eq.s32.totalorder %s24, 0
      %p275 = por %p273, %p274
      %p276 = scmp.ne.s32.totalorder %s268, %s270
      %p277 = scmp.eq.s32.totalorder %s29, 1
      %p278 = por %p276, %p277
      %p279 = scmp.ne.s32.totalorder %s270, %s271
      %p280 = scmp.eq.s32.totalorder %s29, 0
      %p281 = por %p279, %p280
      %p282 = scmp.ne.s32.totalorder %s270, %s271
      %p283 = scmp.eq.s32.totalorder %s30, 1
      %p284 = por %p282, %p283
      %p286 = scmp.ne.s32.totalorder %s271, %s285
      %p287 = scmp.eq.s32.totalorder %s30, 0
      %p288 = por %p286, %p287
      %s290 = sadd.s32 %s289, 1
      %p293 = scmp.eq.s32.totalorder %s24, 1
      %p294 = scmp.ne.s32.totalorder %s289, %s291
      %p295 = scmp.eq.s32.totalorder %s24, 0
      %p296 = por %p294, %p295
      %p297 = scmp.ne.s32.totalorder %s289, %s291
      %p298 = scmp.eq.s32.totalorder %s29, 1
      %p299 = por %p297, %p298
      %p300 = scmp.ne.s32.totalorder %s291, %s292
      %p301 = scmp.eq.s32.totalorder %s29, 0
      %p302 = por %p300, %p301
      %p303 = scmp.ne.s32.totalorder %s291, %s292
      %p304 = scmp.eq.s32.totalorder %s30, 1
      %p305 = por %p303, %p304
      %p307 = scmp.ne.s32.totalorder %s292, %s306
      %p308 = scmp.eq.s32.totalorder %s30, 0
      %p309 = por %p307, %p308
      %s311 = sadd.s32 %s310, 1
      %p314 = scmp.eq.s32.totalorder %s24, 1
      %p315 = scmp.ne.s32.totalorder %s310, %s312
      %p316 = scmp.eq.s32.totalorder %s24, 0
      %p317 = por %p315, %p316
      %p318 = scmp.ne.s32.totalorder %s310, %s312
      %p319 = scmp.eq.s32.totalorder %s29, 1
      %p320 = por %p318, %p319
      %p321 = scmp.ne.s32.totalorder %s312, %s313
      %p322 = scmp.eq.s32.totalorder %s29, 0
      %p323 = por %p321, %p322
      %p324 = scmp.ne.s32.totalorder %s312, %s313
      %p325 = scmp.eq.s32.totalorder %s30, 1
      %p326 = por %p324, %p325
      %p328 = scmp.ne.s32.totalorder %s313, %s327
      %p329 = scmp.eq.s32.totalorder %s30, 0
      %p330 = por %p328, %p329
      %s332 = sadd.s32 %s331, 1
      %p335 = scmp.eq.s32.totalorder %s24, 1
      %p336 = scmp.ne.s32.totalorder %s331, %s333
      %p337 = scmp.eq.s32.totalorder %s24, 0
      %p338 = por %p336, %p337
      %p339 = scmp.ne.s32.totalorder %s331, %s333
      %p340 = scmp.eq.s32.totalorder %s29, 1
      %p341 = por %p339, %p340
      %p342 = scmp.ne.s32.totalorder %s333, %s334
      %p343 = scmp.eq.s32.totalorder %s29, 0
      %p344 = por %p342, %p343
      %p345 = scmp.ne.s32.totalorder %s333, %s334
      %p346 = scmp.eq.s32.totalorder %s30, 1
      %p347 = por %p345, %p346
      %p349 = scmp.ne.s32.totalorder %s334, %s348
      %p350 = scmp.eq.s32.totalorder %s30, 0
      %p351 = por %p349, %p350
      %s352 = ssub.s32 %s24, %s31
      %p353 = scmp.eq.s32.totalorder %s352, 0
      %s355 = sadd.s32 %s354, 1
      %s356 = scalar_select %p353, %s354, %s355
      %p359 = pneg %p353
      %p360 = scmp.eq.s32.totalorder %s24, 1
      %p361 = por %p359, %p360
      %p362 = scmp.ne.s32.totalorder %s354, %s357
      %p363 = scmp.eq.s32.totalorder %s24, 0
      %p364 = por %p362, %p363
      %p365 = scmp.ne.s32.totalorder %s354, %s357
      %p366 = scmp.eq.s32.totalorder %s29, 1
      %p367 = por %p365, %p366
      %p368 = scmp.ne.s32.totalorder %s357, %s358
      %p369 = scmp.eq.s32.totalorder %s29, 0
      %p370 = por %p368, %p369
      %p371 = scmp.ne.s32.totalorder %s357, %s358
      %p372 = scmp.eq.s32.totalorder %s30, 1
      %p373 = por %p371, %p372
      %p375 = scmp.ne.s32.totalorder %s358, %s374
      %p376 = scmp.eq.s32.totalorder %s30, 0
      %p377 = por %p375, %p376
      %p378 = scmp.le.s32.totalorder 1, %s24
      %p379 = scmp.lt.s32.totalorder %s24, 3
      %p380 = pnand %p378, %p379
      %p381 = pneg %p380
      // Predicated region
      $region9: #{tpu_custom_call.1} parent=5 // pred_check
        _
      $region10: #{tpu_custom_call.1} parent=5 // pred_check_branch
        %383 = sbr.rel (%p380) target = $region12
      $region11: #{tpu_custom_call.1} parent=5 // pred_region
        %s384 = ssub.s32 %s24, 1
        // Predicated region
        $region13: #{tpu_custom_call.1} parent=11 // pred_check
          %p385 = pneg %p71
        $region14: #{tpu_custom_call.1} parent=11 // pred_check_branch
          %387 = sbr.rel (%p385) target = $region16
        $region15: #{tpu_custom_call.1} parent=11 // pred_region
          _
        $region16: #{tpu_custom_call.1} parent=11 // pred_fallthru
          _
        // Predicated region
        $region17: #{tpu_custom_call.1} parent=11 // pred_check
          %p388 = pneg %p92
        $region18: #{tpu_custom_call.1} parent=11 // pred_check_branch
          %390 = sbr.rel (%p388) target = $region20
        $region19: #{tpu_custom_call.1} parent=11 // pred_region
          _
        $region20: #{tpu_custom_call.1} parent=11 // pred_fallthru
          _
        // Predicated region
        $region21: #{tpu_custom_call.1} parent=11 // pred_check
          %p391 = pneg %p113
        $region22: #{tpu_custom_call.1} parent=11 // pred_check_branch
          %393 = sbr.rel (%p391) target = $region24
        $region23: #{tpu_custom_call.1} parent=11 // pred_region
          _
        $region24: #{tpu_custom_call.1} parent=11 // pred_fallthru
          _
        // Predicated region
        $region25: #{tpu_custom_call.1} parent=11 // pred_check
          %p394 = pneg %p134
        $region26: #{tpu_custom_call.1} parent=11 // pred_check_branch
          %396 = sbr.rel (%p394) target = $region28
        $region27: #{tpu_custom_call.1} parent=11 // pred_region
          _
        $region28: #{tpu_custom_call.1} parent=11 // pred_fallthru
          _
        // Predicated region
        $region29: #{tpu_custom_call.1} parent=11 // pred_check
          %p397 = pneg %p155
        $region30: #{tpu_custom_call.1} parent=11 // pred_check_branch
          %399 = sbr.rel (%p397) target = $region32
        $region31: #{tpu_custom_call.1} parent=11 // pred_region
          _
        $region32: #{tpu_custom_call.1} parent=11 // pred_fallthru
          _
        // Predicated region
        $region33: #{tpu_custom_call.1} parent=11 // pred_check
          %p400 = pneg %p176
        $region34: #{tpu_custom_call.1} parent=11 // pred_check_branch
          %402 = sbr.rel (%p400) target = $region36
        $region35: #{tpu_custom_call.1} parent=11 // pred_region
          _
        $region36: #{tpu_custom_call.1} parent=11 // pred_fallthru
          _
        // Predicated region
        $region37: #{tpu_custom_call.1} parent=11 // pred_check
          %p403 = pneg %p197
        $region38: #{tpu_custom_call.1} parent=11 // pred_check_branch
          %405 = sbr.rel (%p403) target = $region40
        $region39: #{tpu_custom_call.1} parent=11 // pred_region
          _
        $region40: #{tpu_custom_call.1} parent=11 // pred_fallthru
          _
        // Predicated region
        $region41: #{tpu_custom_call.1} parent=11 // pred_check
          %p406 = pneg %p218
        $region42: #{tpu_custom_call.1} parent=11 // pred_check_branch
          %408 = sbr.rel (%p406) target = $region44
        $region43: #{tpu_custom_call.1} parent=11 // pred_region
          _
        $region44: #{tpu_custom_call.1} parent=11 // pred_fallthru
          _
        // Predicated region
        $region45: #{tpu_custom_call.1} parent=11 // pred_check
          %p409 = pneg %p239
        $region46: #{tpu_custom_call.1} parent=11 // pred_check_branch
          %411 = sbr.rel (%p409) target = $region48
        $region47: #{tpu_custom_call.1} parent=11 // pred_region
          _
        $region48: #{tpu_custom_call.1} parent=11 // pred_fallthru
          _
        // Predicated region
        $region49: #{tpu_custom_call.1} parent=11 // pred_check
          %p412 = pneg %p260
        $region50: #{tpu_custom_call.1} parent=11 // pred_check_branch
          %414 = sbr.rel (%p412) target = $region52
        $region51: #{tpu_custom_call.1} parent=11 // pred_region
          _
        $region52: #{tpu_custom_call.1} parent=11 // pred_fallthru
          _
        // Predicated region
        $region53: #{tpu_custom_call.1} parent=11 // pred_check
          %p415 = pneg %p281
        $region54: #{tpu_custom_call.1} parent=11 // pred_check_branch
          %417 = sbr.rel (%p415) target = $region56
        $region55: #{tpu_custom_call.1} parent=11 // pred_region
          _
        $region56: #{tpu_custom_call.1} parent=11 // pred_fallthru
          _
        // Predicated region
        $region57: #{tpu_custom_call.1} parent=11 // pred_check
          %p418 = pneg %p302
        $region58: #{tpu_custom_call.1} parent=11 // pred_check_branch
          %420 = sbr.rel (%p418) target = $region60
        $region59: #{tpu_custom_call.1} parent=11 // pred_region
          _
        $region60: #{tpu_custom_call.1} parent=11 // pred_fallthru
          _
        // Predicated region
        $region61: #{tpu_custom_call.1} parent=11 // pred_check
          %p421 = pneg %p323
        $region62: #{tpu_custom_call.1} parent=11 // pred_check_branch
          %423 = sbr.rel (%p421) target = $region64
        $region63: #{tpu_custom_call.1} parent=11 // pred_region
          _
        $region64: #{tpu_custom_call.1} parent=11 // pred_fallthru
          _
        // Predicated region
        $region65: #{tpu_custom_call.1} parent=11 // pred_check
          %p424 = pneg %p344
        $region66: #{tpu_custom_call.1} parent=11 // pred_check_branch
          %426 = sbr.rel (%p424) target = $region68
        $region67: #{tpu_custom_call.1} parent=11 // pred_region
          _
        $region68: #{tpu_custom_call.1} parent=11 // pred_fallthru
          _
      $region12: #{tpu_custom_call.1} parent=5 // pred_fallthru
        _
      %p427 = scmp.lt.s32.totalorder %s24, 2
      // Predicated region
      $region69: #{tpu_custom_call.1} parent=5 // pred_check
        %p428 = pneg %p427
      $region70: #{tpu_custom_call.1} parent=5 // pred_check_branch
        %430 = sbr.rel (%p428) target = $region72
      $region71: #{tpu_custom_call.1} parent=5 // pred_region
        // Predicated region
        $region73: #{tpu_custom_call.1} parent=71 // pred_check
          %p431 = pneg %p44
        $region74: #{tpu_custom_call.1} parent=71 // pred_check_branch
          %433 = sbr.rel (%p431) target = $region76
        $region75: #{tpu_custom_call.1} parent=71 // pred_region
          %p434 = scmp.lt.s32.totalorder %s24, 1
          %s435 = scalar_select %p434, %s24, 1
          %s436 = smul.addr %s435, 4
          %s437 = smul.addr %s436, 4
          %s438 = scalar_lea.vmem %s0, %s437
        $region76: #{tpu_custom_call.1} parent=71 // pred_fallthru
          _
      $region72: #{tpu_custom_call.1} parent=5 // pred_fallthru
        _
      %p439 = scmp.le.s32.totalorder 1, %s24
      %p440 = scmp.lt.s32.totalorder %s24, 3
      %p441 = pnand %p439, %p440
      %p442 = pneg %p441
      // Predicated region
      $region77: #{tpu_custom_call.1} parent=5 // pred_check
        _
      $region78: #{tpu_custom_call.1} parent=5 // pred_check_branch
        %444 = sbr.rel (%p441) target = $region80
      $region79: #{tpu_custom_call.1} parent=5 // pred_region
        %s445 = ssub.s32 %s24, 1
        %p446 = scmp.lt.s32.totalorder %s29, 1
        %s447 = scalar_select %p446, %s29, 1
        %s448 = smul.addr %s447, 4
        %s449 = smul.addr %s448, 4
        %s450 = scalar_lea.vmem %s0, %s449
        %p451 = pneg %p50
        %p452 = pneg %p47
        %p453 = pneg %p71
        %p454 = pneg %p68
        %p455 = pneg %p92
        %p456 = pneg %p89
        %p457 = pneg %p113
        %p458 = pneg %p110
        %p459 = pneg %p134
        %p460 = pneg %p131
        %p461 = pneg %p155
        %p462 = pneg %p152
        %p463 = pneg %p176
        %p464 = pneg %p173
        %p465 = pneg %p197
        %p466 = pneg %p194
        %p467 = pneg %p218
        %p468 = pneg %p215
        %p469 = pneg %p239
        %p470 = pneg %p236
        %p471 = pneg %p260
        %p472 = pneg %p257
        %p473 = pneg %p281
        %p474 = pneg %p278
        %p475 = pneg %p302
        %p476 = pneg %p299
        %p477 = pneg %p323
        %p478 = pneg %p320
        %p479 = pneg %p344
        %p480 = pneg %p341
        %p481 = pneg %p370
        %p482 = pneg %p367
        %s483 = sand.u32 %s357, 1
        %s484 = scalar_lea.sflag [#allocation3], %s483
        %s485 = sand.u32 %s357, 1
        %s486 = smul.addr %s485, 32
        %s487 = scalar_lea.vmem [#allocation2], %s486
        %p488 = scmp.lt.s32.totalorder %s29, 1
        %s489 = scalar_select %p488, %s29, 1
        %s490 = smul.addr %s489, 4
        %s491 = smul.addr %s490, 4
        %s492 = scalar_lea.vmem %s0, %s491
        %v495 = vld [vmem:[%s1] sm:$0xf]
        %v496 = vld [vmem:[%s1 + $0x4] sm:$0xf]
        %v497 = vld [vmem:[%s492] sm:$0xff]
        %v498 = vld [vmem:[%s492 + $0x8] sm:$0xff]
        %v501 = vcombine.high %v497, %v497
        %v502 = vcombine.high %v498, %v498
        %v505 = vpack.c.bf16 %v497, %v497
        %v506 = vpack.c.bf16 %v501, %v501
        %v507 = vpack.c.bf16 %v498, %v498
        %v508 = vpack.c.bf16 %v502, %v502
        %v511 = vunpack.c.l.b16 %v495
        %v512 = vunpack.c.l.b16 %v496
        %v513 = vpack.c.b16 %v512, %v511
        %vm514 = vcmask 31744
        %v516 = vsel %vm514, %v513, 0
        %vm518 = vcmask 1041408
        %v520 = vsel %vm518, %v505, 0
        %v523 = vsel %vm518, %v506, 0
        %v526 = vsel %vm518, %v507, 0
        %v529 = vsel %vm518, %v508, 0
        %531 = vmatprep.subr.bf16.mxu0 %v523
        %532 = vmatpush1.bf16.msra.mxu0 %v520
        %533 = vmatprep.subr.bf16.mxu0 0
        %534 = vmatpush1.bf16.msra.mxu0 0
        %535 = vmatprep.subr.bf16.mxu0 0
        %536 = vmatpush1.bf16.msra.mxu0 0
        %537 = vmatprep.subr.bf16.mxu0 0
        %538 = vmatpush1.bf16.msra.mxu0 0
        %539 = vmatprep.subr.bf16.mxu0 0
        %540 = vmatpush1.bf16.msra.mxu0 0
        %541 = vmatprep.subr.bf16.mxu0 0
        %542 = vmatpush1.bf16.msra.mxu0 0
        %543 = vmatprep.subr.bf16.mxu0 0
        %544 = vmatpush1.bf16.msra.mxu0 0
        %545 = vmatprep.subr.bf16.mxu0 0
        %546 = vmatpush1.bf16.msra.mxu0 0
        %547 = vmatprep.subr.bf16.mxu0 0
        %548 = vmatpush1.bf16.msra.mxu0 0
        %549 = vmatprep.subr.bf16.mxu0 0
        %550 = vmatpush1.bf16.msra.mxu0 0
        %551 = vmatprep.subr.bf16.mxu0 0
        %552 = vmatpush1.bf16.msra.mxu0 0
        %553 = vmatprep.subr.bf16.mxu0 0
        %554 = vmatpush1.bf16.msra.mxu0 0
        %555 = vmatprep.subr.bf16.mxu0 0
        %556 = vmatpush1.bf16.msra.mxu0 0
        %557 = vmatprep.subr.bf16.mxu0 0
        %558 = vmatpush1.bf16.msra.mxu0 0
        %559 = vmatprep.subr.bf16.mxu0 0
        %560 = vmatpush1.bf16.msra.mxu0 0
        %561 = vmatprep.subr.bf16.mxu0 0
        %562 = vmatpush1.bf16.msra.mxu0 0
        %563 = vmatprep.mubr.bf16.mxu0 0
        %564 = vmatmul.mubr.bf16.gmra.mrb[0].mxu0 %v516
        %v565 = vpop.f32.mrb[0].mxu0
        %v566 = vadd.f32 0.0, %v565
        %v567 = vpop.f32.mrb[0].mxu0
        %v568 = vadd.f32 0.0, %v567
        %v569 = vpop.f32.mrb[0].mxu0
        %v570 = vadd.f32 0.0, %v569
        %v571 = vpop.f32.mrb[0].mxu0
        %v572 = vadd.f32 0.0, %v571
        %573 = vdwg.mxu0
        %574 = vmatprep.subr.bf16.mxu0 %v529
        %575 = vmatpush1.bf16.msra.mxu0 %v526
        %576 = vmatprep.subr.bf16.mxu0 0
        %577 = vmatpush1.bf16.msra.mxu0 0
        %578 = vmatprep.subr.bf16.mxu0 0
        %579 = vmatpush1.bf16.msra.mxu0 0
        %580 = vmatprep.subr.bf16.mxu0 0
        %581 = vmatpush1.bf16.msra.mxu0 0
        %582 = vmatprep.subr.bf16.mxu0 0
        %583 = vmatpush1.bf16.msra.mxu0 0
        %584 = vmatprep.subr.bf16.mxu0 0
        %585 = vmatpush1.bf16.msra.mxu0 0
        %586 = vmatprep.subr.bf16.mxu0 0
        %587 = vmatpush1.bf16.msra.mxu0 0
        %588 = vmatprep.subr.bf16.mxu0 0
        %589 = vmatpush1.bf16.msra.mxu0 0
        %590 = vmatprep.subr.bf16.mxu0 0
        %591 = vmatpush1.bf16.msra.mxu0 0
        %592 = vmatprep.subr.bf16.mxu0 0
        %593 = vmatpush1.bf16.msra.mxu0 0
        %594 = vmatprep.subr.bf16.mxu0 0
        %595 = vmatpush1.bf16.msra.mxu0 0
        %596 = vmatprep.subr.bf16.mxu0 0
        %597 = vmatpush1.bf16.msra.mxu0 0
        %598 = vmatprep.subr.bf16.mxu0 0
        %599 = vmatpush1.bf16.msra.mxu0 0
        %600 = vmatprep.subr.bf16.mxu0 0
        %601 = vmatpush1.bf16.msra.mxu0 0
        %602 = vmatprep.subr.bf16.mxu0 0
        %603 = vmatpush1.bf16.msra.mxu0 0
        %604 = vmatprep.subr.bf16.mxu0 0
        %605 = vmatpush1.bf16.msra.mxu0 0
        %606 = vmatprep.mubr.bf16.mxu0 0
        %607 = vmatmul.mubr.bf16.gmra.mrb[0].mxu0 %v516
        %v608 = vpop.f32.mrb[0].mxu0
        %v609 = vadd.f32 0.0, %v608
        %v610 = vpop.f32.mrb[0].mxu0
        %v611 = vadd.f32 0.0, %v610
        %v612 = vpop.f32.mrb[0].mxu0
        %v613 = vadd.f32 0.0, %v612
        %v614 = vpop.f32.mrb[0].mxu0
        %v615 = vadd.f32 0.0, %v614
        %616 = vdwg.mxu0
        %v617 = vld [vmem:[%s2] sm:$0xff]
        %619 = vset.pattern.permute.xlu0 0
        %620 = vperm.xlu0 %619, %v617
        %v621 = vpop.permute.xlu0 %620
        %v623 = vmul.f32 %v566, %v621
        %v624 = vmul.f32 %v568, %v621
        %v625 = vmul.f32 %v609, %v621
        %v626 = vmul.f32 %v611, %v621
        %v627 = vld [vmem:[%s3] sm:$0xff]
        %629 = vset.pattern.permute.xlu0 0
        %630 = vperm.xlu0 %629, %v627
        %v631 = vpop.permute.xlu0 %630
        %v633 = vadd.f32 %v623, %v631
        %v634 = vadd.f32 %v624, %v631
        %v635 = vadd.f32 %v625, %v631
        %v636 = vadd.f32 %v626, %v631
        %v637 = vxor.u32 %v633, 2147483648
        %v638 = vxor.u32 %v634, 2147483648
        %v639 = vxor.u32 %v635, 2147483648
        %v640 = vxor.u32 %v636, 2147483648
        %v641 = vmul.f32 %v637, 1.442695
        %v642 = vpow.pop %v641
        %v643 = vmul.f32 %v638, 1.442695
        %v644 = vpow.pop %v643
        %v645 = vmul.f32 %v639, 1.442695
        %v646 = vpow.pop %v645
        %v647 = vmul.f32 %v640, 1.442695
        %v648 = vpow.pop %v647
        %v649 = vadd.f32 %v642, 1.0
        %v650 = vadd.f32 %v644, 1.0
        %v651 = vadd.f32 %v646, 1.0
        %v652 = vadd.f32 %v648, 1.0
        %v653 = vrcp.pop %v649
        %v654 = vmul.f32 1.0, %v653
        %v655 = vrcp.pop %v650
        %v656 = vmul.f32 1.0, %v655
        %v657 = vrcp.pop %v651
        %v658 = vmul.f32 1.0, %v657
        %v659 = vrcp.pop %v652
        %v660 = vmul.f32 1.0, %v659
        %v661 = vmul.f32 %v633, %v654
        %v662 = vmul.f32 %v634, %v656
        %v663 = vmul.f32 %v635, %v658
        %v664 = vmul.f32 %v636, %v660
        %v665 = vld [vmem:[%s12] sm:$0xff]
        %667 = vset.pattern.permute.xlu0 0
        %668 = vperm.xlu0 %667, %v665
        %v669 = vpop.permute.xlu0 %668
        %v671 = vadd.f32 %v570, %v669
        %v672 = vadd.f32 %v572, %v669
        %v673 = vadd.f32 %v613, %v669
        %v674 = vadd.f32 %v615, %v669
        %v675 = vld [vmem:[%s13] sm:$0xff]
        %677 = vset.pattern.permute.xlu0 0
        %678 = vperm.xlu0 %677, %v675
        %v679 = vpop.permute.xlu0 %678
        %v681 = vmul.f32 %v671, %v679
        %v682 = vmul.f32 %v672, %v679
        %v683 = vmul.f32 %v673, %v679
        %v684 = vmul.f32 %v674, %v679
        %v685 = vld [vmem:[%s14] sm:$0xff]
        %687 = vset.pattern.permute.xlu0 0
        %688 = vperm.xlu0 %687, %v685
        %v689 = vpop.permute.xlu0 %688
        %v691 = vadd.f32 %v681, %v689
        %v692 = vadd.f32 %v682, %v689
        %v693 = vadd.f32 %v683, %v689
        %v694 = vadd.f32 %v684, %v689
        %v695 = vld [vmem:[%s4] sm:$0xf]
        %v696 = vld [vmem:[%s4 + $0x4] sm:$0xf]
        %v697 = vld [vmem:[%s4 + $0x8] sm:$0xf]
        %v698 = vpack.c.bf16 %v661, %v661
        %v699 = vpack.c.bf16 %v662, %v662
        %v700 = vpack.c.bf16 %v663, %v663
        %v701 = vpack.c.bf16 %v664, %v664
        %v702 = vld [vmem:[%s5] sm:$0xff]
        %v703 = vld [vmem:[%s5 + $0x8] sm:$0xff]
        %v704 = vld [vmem:[%s5 + $0x10] sm:$0xff]
        %706 = vset.pattern.permute.xlu0 0
        %707 = vperm.xlu0 %706, %v702
        %v708 = vpop.permute.xlu0 %707
        %711 = vset.pattern.permute.xlu0 0
        %712 = vperm.xlu0 %711, %v703
        %v713 = vpop.permute.xlu0 %712
        %716 = vset.pattern.permute.xlu0 0
        %717 = vperm.xlu0 %716, %v704
        %v718 = vpop.permute.xlu0 %717
        %v723 = vunpack.c.l.b16 %v695
        %v724 = vunpack.c.l.b16 %v696
        %v725 = vunpack.c.l.b16 %v697
        %v726 = vpack.c.b16 %v724, %v723
        %v727 = vpack.c.b16 %v725, %v725
        %vm728 = vcmask 64512
        %v730 = vsel %vm728, %v726, 0
        %v733 = vsel %vm728, %v727, 0
        %vm735 = vcmask 1043456
        %v737 = vsel %vm735, %v698, 0
        %v740 = vsel %vm735, %v699, 0
        %v743 = vsel %vm735, %v700, 0
        %v746 = vsel %vm735, %v701, 0
        %748 = vmatprep.subr.bf16.mxu0 %v740
        %749 = vmatpush1.bf16.msra.mxu0 %v737
        %750 = vmatprep.subr.bf16.mxu0 0
        %751 = vmatpush1.bf16.msra.mxu0 0
        %752 = vmatprep.subr.bf16.mxu0 0
        %753 = vmatpush1.bf16.msra.mxu0 0
        %754 = vmatprep.subr.bf16.mxu0 0
        %755 = vmatpush1.bf16.msra.mxu0 0
        %756 = vmatprep.subr.bf16.mxu0 0
        %757 = vmatpush1.bf16.msra.mxu0 0
        %758 = vmatprep.subr.bf16.mxu0 0
        %759 = vmatpush1.bf16.msra.mxu0 0
        %760 = vmatprep.subr.bf16.mxu0 0
        %761 = vmatpush1.bf16.msra.mxu0 0
        %762 = vmatprep.subr.bf16.mxu0 0
        %763 = vmatpush1.bf16.msra.mxu0 0
        %764 = vmatprep.subr.bf16.mxu0 0
        %765 = vmatpush1.bf16.msra.mxu0 0
        %766 = vmatprep.subr.bf16.mxu0 0
        %767 = vmatpush1.bf16.msra.mxu0 0
        %768 = vmatprep.subr.bf16.mxu0 0
        %769 = vmatpush1.bf16.msra.mxu0 0
        %770 = vmatprep.subr.bf16.mxu0 0
        %771 = vmatpush1.bf16.msra.mxu0 0
        %772 = vmatprep.subr.bf16.mxu0 0
        %773 = vmatpush1.bf16.msra.mxu0 0
        %774 = vmatprep.subr.bf16.mxu0 0
        %775 = vmatpush1.bf16.msra.mxu0 0
        %776 = vmatprep.subr.bf16.mxu0 0
        %777 = vmatpush1.bf16.msra.mxu0 0
        %778 = vmatprep.subr.bf16.mxu0 0
        %779 = vmatpush1.bf16.msra.mxu0 0
        %780 = vmatprep.mubr.bf16.mxu0 0
        %781 = vmatmul.mubr.bf16.gmra.mrb[0].mxu0 %v730
        %v782 = vpop.f32.mrb[0].mxu0
        %v783 = vadd.f32 %v708, %v782
        %v784 = vpop.f32.mrb[0].mxu0
        %v785 = vadd.f32 %v708, %v784
        %v786 = vpop.f32.mrb[0].mxu0
        %v787 = vadd.f32 %v713, %v786
        %v788 = vpop.f32.mrb[0].mxu0
        %v789 = vadd.f32 %v713, %v788
        %790 = vmatprep.mubr.bf16.mxu0 0
        %791 = vmatmul.mubr.bf16.gmra.mrb[0].mxu0 %v733
        %v792 = vpop.f32.mrb[0].mxu0
        %v793 = vadd.f32 %v718, %v792
        %v794 = vpop.f32.mrb[0].mxu0
        %v795 = vadd.f32 %v718, %v794
        %v796 = vpop.f32.mrb[0].mxu0
        %v797 = vpop.f32.mrb[0].mxu0
        %798 = vdwg.mxu0
        %799 = vmatprep.subr.bf16.mxu0 %v746
        %800 = vmatpush1.bf16.msra.mxu0 %v743
        %801 = vmatprep.subr.bf16.mxu0 0
        %802 = vmatpush1.bf16.msra.mxu0 0
        %803 = vmatprep.subr.bf16.mxu0 0
        %804 = vmatpush1.bf16.msra.mxu0 0
        %805 = vmatprep.subr.bf16.mxu0 0
        %806 = vmatpush1.bf16.msra.mxu0 0
        %807 = vmatprep.subr.bf16.mxu0 0
        %808 = vmatpush1.bf16.msra.mxu0 0
        %809 = vmatprep.subr.bf16.mxu0 0
        %810 = vmatpush1.bf16.msra.mxu0 0
        %811 = vmatprep.subr.bf16.mxu0 0
        %812 = vmatpush1.bf16.msra.mxu0 0
        %813 = vmatprep.subr.bf16.mxu0 0
        %814 = vmatpush1.bf16.msra.mxu0 0
        %815 = vmatprep.subr.bf16.mxu0 0
        %816 = vmatpush1.bf16.msra.mxu0 0
        %817 = vmatprep.subr.bf16.mxu0 0
        %818 = vmatpush1.bf16.msra.mxu0 0
        %819 = vmatprep.subr.bf16.mxu0 0
        %820 = vmatpush1.bf16.msra.mxu0 0
        %821 = vmatprep.subr.bf16.mxu0 0
        %822 = vmatpush1.bf16.msra.mxu0 0
        %823 = vmatprep.subr.bf16.mxu0 0
        %824 = vmatpush1.bf16.msra.mxu0 0
        %825 = vmatprep.subr.bf16.mxu0 0
        %826 = vmatpush1.bf16.msra.mxu0 0
        %827 = vmatprep.subr.bf16.mxu0 0
        %828 = vmatpush1.bf16.msra.mxu0 0
        %829 = vmatprep.subr.bf16.mxu0 0
        %830 = vmatpush1.bf16.msra.mxu0 0
        %831 = vmatprep.mubr.bf16.mxu0 0
        %832 = vmatmul.mubr.bf16.gmra.mrb[0].mxu0 %v730
        %v833 = vpop.f32.mrb[0].mxu0
        %v834 = vadd.f32 %v708, %v833
        %v835 = vpop.f32.mrb[0].mxu0
        %v836 = vadd.f32 %v708, %v835
        %v837 = vpop.f32.mrb[0].mxu0
        %v838 = vadd.f32 %v713, %v837
        %v839 = vpop.f32.mrb[0].mxu0
        %v840 = vadd.f32 %v713, %v839
        %841 = vmatprep.mubr.bf16.mxu0 0
        %842 = vmatmul.mubr.bf16.gmra.mrb[0].mxu0 %v733
        %v843 = vpop.f32.mrb[0].mxu0
        %v844 = vadd.f32 %v718, %v843
        %v845 = vpop.f32.mrb[0].mxu0
        %v846 = vadd.f32 %v718, %v845
        %v847 = vpop.f32.mrb[0].mxu0
        %v848 = vpop.f32.mrb[0].mxu0
        %849 = vdwg.mxu0
        %v850 = vlaneseq
        %v851 = vshrl.u32 %v850, 7
        %v852 = vadd.s32 %v851, 8
        %v853 = vadd.s32 %v851, 16
        %v854 = vadd.s32 %v851, 24
        %v855 = vadd.s32 %v851, 32
        %v856 = vadd.s32 %v851, 40
        %v857 = vadd.s32 %v851, 48
        %v858 = vadd.s32 %v851, 56
        %v859 = vadd.s32 %v851, 64
        %v860 = vadd.s32 %v851, 72
        %v861 = vadd.s32 %v851, 80
        %v862 = vadd.s32 %v851, 88
        %v863 = vadd.s32 %v851, 96
        %v864 = vadd.s32 %v851, 104
        %v865 = vadd.s32 %v851, 112
        %v866 = vadd.s32 %v851, 120
        %v867 = vadd.s32 %v851, 128
        %v868 = vadd.s32 %v851, 136
        %v869 = vadd.s32 %v851, 144
        %v870 = vadd.s32 %v851, 152
        %v871 = vadd.s32 %v851, 160
        %v872 = vadd.s32 %v851, 168
        %v873 = vadd.s32 %v851, 176
        %v874 = vadd.s32 %v851, 184
        %v875 = vadd.s32 %v851, 192
        %v876 = vadd.s32 %v851, 200
        %v877 = vadd.s32 %v851, 208
        %v878 = vadd.s32 %v851, 216
        %v879 = vadd.s32 %v851, 224
        %v880 = vadd.s32 %v851, 232
        %v881 = vadd.s32 %v851, 240
        %v882 = vadd.s32 %v851, 248
        %v883 = vadd.s32 %v851, 256
        %v884 = vadd.s32 %v851, 264
        %v885 = vadd.s32 %v851, 272
        %v886 = vadd.s32 %v851, 280
        %v887 = vadd.s32 %v851, 288
        %v888 = vadd.s32 %v851, 296
        %v889 = vadd.s32 %v851, 304
        %v890 = vadd.s32 %v851, 312
        %v891 = vadd.s32 %v851, 320
        %v892 = vadd.s32 %v851, 328
        %v893 = vadd.s32 %v851, 336
        %v894 = vadd.s32 %v851, 344
        %v895 = vadd.s32 %v851, 352
        %v896 = vadd.s32 %v851, 360
        %v897 = vadd.s32 %v851, 368
        %v898 = vadd.s32 %v851, 376
        %v899 = vadd.s32 %v851, 384
        %v900 = vadd.s32 %v851, 392
        %v901 = vadd.s32 %v851, 400
        %v902 = vadd.s32 %v851, 408
        %v903 = vadd.s32 %v851, 416
        %v904 = vadd.s32 %v851, 424
        %v905 = vadd.s32 %v851, 432
        %v906 = vadd.s32 %v851, 440
        %v907 = vadd.s32 %v851, 448
        %v908 = vadd.s32 %v851, 456
        %v909 = vadd.s32 %v851, 464
        %v910 = vadd.s32 %v851, 472
        %v911 = vadd.s32 %v851, 480
        %v912 = vadd.s32 %v851, 488
        %v913 = vadd.s32 %v851, 496
        %v914 = vadd.s32 %v851, 504
        %vm915 = vcmp.lt.s32.totalorder %v851, 400
        %vm916 = vcmp.lt.s32.totalorder %v852, 400
        %vm917 = vcmp.lt.s32.totalorder %v853, 400
        %vm918 = vcmp.lt.s32.totalorder %v854, 400
        %vm919 = vcmp.lt.s32.totalorder %v855, 400
        %vm920 = vcmp.lt.s32.totalorder %v856, 400
        %vm921 = vcmp.lt.s32.totalorder %v857, 400
        %vm922 = vcmp.lt.s32.totalorder %v858, 400
        %vm923 = vcmp.lt.s32.totalorder %v859, 400
        %vm924 = vcmp.lt.s32.totalorder %v860, 400
        %vm925 = vcmp.lt.s32.totalorder %v861, 400
        %vm926 = vcmp.lt.s32.totalorder %v862, 400
        %vm927 = vcmp.lt.s32.totalorder %v863, 400
        %vm928 = vcmp.lt.s32.totalorder %v864, 400
        %vm929 = vcmp.lt.s32.totalorder %v865, 400
        %vm930 = vcmp.lt.s32.totalorder %v866, 400
        %vm931 = vcmp.lt.s32.totalorder %v867, 400
        %vm932 = vcmp.lt.s32.totalorder %v868, 400
        %vm933 = vcmp.lt.s32.totalorder %v869, 400
        %vm934 = vcmp.lt.s32.totalorder %v870, 400
        %vm935 = vcmp.lt.s32.totalorder %v871, 400
        %vm936 = vcmp.lt.s32.totalorder %v872, 400
        %vm937 = vcmp.lt.s32.totalorder %v873, 400
        %vm938 = vcmp.lt.s32.totalorder %v874, 400
        %vm939 = vcmp.lt.s32.totalorder %v875, 400
        %vm940 = vcmp.lt.s32.totalorder %v876, 400
        %vm941 = vcmp.lt.s32.totalorder %v877, 400
        %vm942 = vcmp.lt.s32.totalorder %v878, 400
        %vm943 = vcmp.lt.s32.totalorder %v879, 400
        %vm944 = vcmp.lt.s32.totalorder %v880, 400
        %vm945 = vcmp.lt.s32.totalorder %v881, 400
        %vm946 = vcmp.lt.s32.totalorder %v882, 400
        %vm947 = vcmp.lt.s32.totalorder %v883, 400
        %vm948 = vcmp.lt.s32.totalorder %v884, 400
        %vm949 = vcmp.lt.s32.totalorder %v885, 400
        %vm950 = vcmp.lt.s32.totalorder %v886, 400
        %vm951 = vcmp.lt.s32.totalorder %v887, 400
        %vm952 = vcmp.lt.s32.totalorder %v888, 400
        %vm953 = vcmp.lt.s32.totalorder %v889, 400
        %vm954 = vcmp.lt.s32.totalorder %v890, 400
        %vm955 = vcmp.lt.s32.totalorder %v891, 400
        %vm956 = vcmp.lt.s32.totalorder %v892, 400
        %vm957 = vcmp.lt.s32.totalorder %v893, 400
        %vm958 = vcmp.lt.s32.totalorder %v894, 400
        %vm959 = vcmp.lt.s32.totalorder %v895, 400
        %vm960 = vcmp.lt.s32.totalorder %v896, 400
        %vm961 = vcmp.lt.s32.totalorder %v897, 400
        %vm962 = vcmp.lt.s32.totalorder %v898, 400
        %vm963 = vcmp.lt.s32.totalorder %v899, 400
        %vm964 = vcmp.lt.s32.totalorder %v900, 400
        %vm965 = vcmp.lt.s32.totalorder %v901, 400
        %vm966 = vcmp.lt.s32.totalorder %v902, 400
        %vm967 = vcmp.lt.s32.totalorder %v903, 400
        %vm968 = vcmp.lt.s32.totalorder %v904, 400
        %vm969 = vcmp.lt.s32.totalorder %v905, 400
        %vm970 = vcmp.lt.s32.totalorder %v906, 400
        %vm971 = vcmp.lt.s32.totalorder %v907, 400
        %vm972 = vcmp.lt.s32.totalorder %v908, 400
        %vm973 = vcmp.lt.s32.totalorder %v909, 400
        %vm974 = vcmp.lt.s32.totalorder %v910, 400
        %vm975 = vcmp.lt.s32.totalorder %v911, 400
        %vm976 = vcmp.lt.s32.totalorder %v912, 400
        %vm977 = vcmp.lt.s32.totalorder %v913, 400
        %vm978 = vcmp.lt.s32.totalorder %v914, 400
        %979 = vxpose.xlu0.b32.start [1/16] %v783, 128
        %980 = vxpose.xlu0.b32.cont [2/16] %v787, 128
        %981 = vxpose.xlu0.b32.cont [3/16] 0.0, 128
        %982 = vxpose.xlu0.b32.cont [4/16] 0.0, 128
        %983 = vxpose.xlu0.b32.cont [5/16] 0.0, 128
        %984 = vxpose.xlu0.b32.cont [6/16] 0.0, 128
        %985 = vxpose.xlu0.b32.cont [7/16] 0.0, 128
        %986 = vxpose.xlu0.b32.cont [8/16] 0.0, 128
        %987 = vxpose.xlu0.b32.cont [9/16] 0.0, 128
        %988 = vxpose.xlu0.b32.cont [10/16] 0.0, 128
        %989 = vxpose.xlu0.b32.cont [11/16] 0.0, 128
        %990 = vxpose.xlu0.b32.cont [12/16] 0.0, 128
        %991 = vxpose.xlu0.b32.cont [13/16] 0.0, 128
        %992 = vxpose.xlu0.b32.cont [14/16] 0.0, 128
        %993 = vxpose.xlu0.b32.cont [15/16] 0.0, 128
        %994 = vxpose.xlu0.b32.end [16/16] 0.0, 128
        %v995 = vpop.trf.xlu0
        %v996 = vpop.trf.xlu0
        %v997 = vpop.trf.xlu0
        %v998 = vpop.trf.xlu0
        %v999 = vpop.trf.xlu0
        %v1000 = vpop.trf.xlu0
        %v1001 = vpop.trf.xlu0
        %v1002 = vpop.trf.xlu0
        %v1003 = vpop.trf.xlu0
        %v1004 = vpop.trf.xlu0
        %v1005 = vpop.trf.xlu0
        %v1006 = vpop.trf.xlu0
        %v1007 = vpop.trf.xlu0
        %v1008 = vpop.trf.xlu0
        %v1009 = vpop.trf.xlu0
        %v1010 = vpop.trf.xlu0
        %1011 = vxpose.xlu0.b32.start [1/16] %v785, 128
        %1012 = vxpose.xlu0.b32.cont [2/16] %v789, 128
        %1013 = vxpose.xlu0.b32.cont [3/16] 0.0, 128
        %1014 = vxpose.xlu0.b32.cont [4/16] 0.0, 128
        %1015 = vxpose.xlu0.b32.cont [5/16] 0.0, 128
        %1016 = vxpose.xlu0.b32.cont [6/16] 0.0, 128
        %1017 = vxpose.xlu0.b32.cont [7/16] 0.0, 128
        %1018 = vxpose.xlu0.b32.cont [8/16] 0.0, 128
        %1019 = vxpose.xlu0.b32.cont [9/16] 0.0, 128
        %1020 = vxpose.xlu0.b32.cont [10/16] 0.0, 128
        %1021 = vxpose.xlu0.b32.cont [11/16] 0.0, 128
        %1022 = vxpose.xlu0.b32.cont [12/16] 0.0, 128
        %1023 = vxpose.xlu0.b32.cont [13/16] 0.0, 128
        %1024 = vxpose.xlu0.b32.cont [14/16] 0.0, 128
        %1025 = vxpose.xlu0.b32.cont [15/16] 0.0, 128
        %1026 = vxpose.xlu0.b32.end [16/16] 0.0, 128
        %v1027 = vpop.trf.xlu0
        %v1028 = vpop.trf.xlu0
        %v1029 = vpop.trf.xlu0
        %v1030 = vpop.trf.xlu0
        %v1031 = vpop.trf.xlu0
        %v1032 = vpop.trf.xlu0
        %v1033 = vpop.trf.xlu0
        %v1034 = vpop.trf.xlu0
        %v1035 = vpop.trf.xlu0
        %v1036 = vpop.trf.xlu0
        %v1037 = vpop.trf.xlu0
        %v1038 = vpop.trf.xlu0
        %v1039 = vpop.trf.xlu0
        %v1040 = vpop.trf.xlu0
        %v1041 = vpop.trf.xlu0
        %v1042 = vpop.trf.xlu0
        %1043 = vxpose.xlu0.b32.start [1/16] %v834, 128
        %1044 = vxpose.xlu0.b32.cont [2/16] %v838, 128
        %1045 = vxpose.xlu0.b32.cont [3/16] 0.0, 128
        %1046 = vxpose.xlu0.b32.cont [4/16] 0.0, 128
        %1047 = vxpose.xlu0.b32.cont [5/16] 0.0, 128
        %1048 = vxpose.xlu0.b32.cont [6/16] 0.0, 128
        %1049 = vxpose.xlu0.b32.cont [7/16] 0.0, 128
        %1050 = vxpose.xlu0.b32.cont [8/16] 0.0, 128
        %1051 = vxpose.xlu0.b32.cont [9/16] 0.0, 128
        %1052 = vxpose.xlu0.b32.cont [10/16] 0.0, 128
        %1053 = vxpose.xlu0.b32.cont [11/16] 0.0, 128
        %1054 = vxpose.xlu0.b32.cont [12/16] 0.0, 128
        %1055 = vxpose.xlu0.b32.cont [13/16] 0.0, 128
        %1056 = vxpose.xlu0.b32.cont [14/16] 0.0, 128
        %1057 = vxpose.xlu0.b32.cont [15/16] 0.0, 128
        %1058 = vxpose.xlu0.b32.end [16/16] 0.0, 128
        %v1059 = vpop.trf.xlu0
        %v1060 = vpop.trf.xlu0
        %v1061 = vpop.trf.xlu0
        %v1062 = vpop.trf.xlu0
        %v1063 = vpop.trf.xlu0
        %v1064 = vpop.trf.xlu0
        %v1065 = vpop.trf.xlu0
        %v1066 = vpop.trf.xlu0
        %v1067 = vpop.trf.xlu0
        %v1068 = vpop.trf.xlu0
        %v1069 = vpop.trf.xlu0
        %v1070 = vpop.trf.xlu0
        %v1071 = vpop.trf.xlu0
        %v1072 = vpop.trf.xlu0
        %v1073 = vpop.trf.xlu0
        %v1074 = vpop.trf.xlu0
        %1075 = vxpose.xlu0.b32.start [1/16] %v836, 128
        %1076 = vxpose.xlu0.b32.cont [2/16] %v840, 128
        %1077 = vxpose.xlu0.b32.cont [3/16] 0.0, 128
        %1078 = vxpose.xlu0.b32.cont [4/16] 0.0, 128
        %1079 = vxpose.xlu0.b32.cont [5/16] 0.0, 128
        %1080 = vxpose.xlu0.b32.cont [6/16] 0.0, 128
        %1081 = vxpose.xlu0.b32.cont [7/16] 0.0, 128
        %1082 = vxpose.xlu0.b32.cont [8/16] 0.0, 128
        %1083 = vxpose.xlu0.b32.cont [9/16] 0.0, 128
        %1084 = vxpose.xlu0.b32.cont [10/16] 0.0, 128
        %1085 = vxpose.xlu0.b32.cont [11/16] 0.0, 128
        %1086 = vxpose.xlu0.b32.cont [12/16] 0.0, 128
        %1087 = vxpose.xlu0.b32.cont [13/16] 0.0, 128
        %1088 = vxpose.xlu0.b32.cont [14/16] 0.0, 128
        %1089 = vxpose.xlu0.b32.cont [15/16] 0.0, 128
        %1090 = vxpose.xlu0.b32.end [16/16] 0.0, 128
        %v1091 = vpop.trf.xlu0
        %v1092 = vpop.trf.xlu0
        %v1093 = vpop.trf.xlu0
        %v1094 = vpop.trf.xlu0
        %v1095 = vpop.trf.xlu0
        %v1096 = vpop.trf.xlu0
        %v1097 = vpop.trf.xlu0
        %v1098 = vpop.trf.xlu0
        %v1099 = vpop.trf.xlu0
        %v1100 = vpop.trf.xlu0
        %v1101 = vpop.trf.xlu0
        %v1102 = vpop.trf.xlu0
        %v1103 = vpop.trf.xlu0
        %v1104 = vpop.trf.xlu0
        %v1105 = vpop.trf.xlu0
        %v1106 = vpop.trf.xlu0
        %v1107 = vsel %vm915, 1, 0
        %v1108 = vsel %vm916, 1, 0
        %v1109 = vsel %vm917, 1, 0
        %v1110 = vsel %vm918, 1, 0
        %v1111 = vsel %vm919, 1, 0
        %v1112 = vsel %vm920, 1, 0
        %v1113 = vsel %vm921, 1, 0
        %v1114 = vsel %vm922, 1, 0
        %v1115 = vsel %vm923, 1, 0
        %v1116 = vsel %vm924, 1, 0
        %v1117 = vsel %vm925, 1, 0
        %v1118 = vsel %vm926, 1, 0
        %v1119 = vsel %vm927, 1, 0
        %v1120 = vsel %vm928, 1, 0
        %v1121 = vsel %vm929, 1, 0
        %v1122 = vsel %vm930, 1, 0
        %v1123 = vsel %vm931, 1, 0
        %v1124 = vsel %vm932, 1, 0
        %v1125 = vsel %vm933, 1, 0
        %v1126 = vsel %vm934, 1, 0
        %v1127 = vsel %vm935, 1, 0
        %v1128 = vsel %vm936, 1, 0
        %v1129 = vsel %vm937, 1, 0
        %v1130 = vsel %vm938, 1, 0
        %v1131 = vsel %vm939, 1, 0
        %v1132 = vsel %vm940, 1, 0
        %v1133 = vsel %vm941, 1, 0
        %v1134 = vsel %vm942, 1, 0
        %v1135 = vsel %vm943, 1, 0
        %v1136 = vsel %vm944, 1, 0
        %v1137 = vsel %vm945, 1, 0
        %v1138 = vsel %vm946, 1, 0
        %v1139 = vsel %vm947, 1, 0
        %v1140 = vsel %vm948, 1, 0
        %v1141 = vsel %vm949, 1, 0
        %v1142 = vsel %vm950, 1, 0
        %v1143 = vsel %vm951, 1, 0
        %v1144 = vsel %vm952, 1, 0
        %v1145 = vsel %vm953, 1, 0
        %v1146 = vsel %vm954, 1, 0
        %v1147 = vsel %vm955, 1, 0
        %v1148 = vsel %vm956, 1, 0
        %v1149 = vsel %vm957, 1, 0
        %v1150 = vsel %vm958, 1, 0
        %v1151 = vsel %vm959, 1, 0
        %v1152 = vsel %vm960, 1, 0
        %v1153 = vsel %vm961, 1, 0
        %v1154 = vsel %vm962, 1, 0
        %v1155 = vsel %vm963, 1, 0
        %v1156 = vsel %vm964, 1, 0
        %v1157 = vsel %vm965, 1, 0
        %v1158 = vsel %vm966, 1, 0
        %v1159 = vsel %vm967, 1, 0
        %v1160 = vsel %vm968, 1, 0
        %v1161 = vsel %vm969, 1, 0
        %v1162 = vsel %vm970, 1, 0
        %v1163 = vsel %vm971, 1, 0
        %v1164 = vsel %vm972, 1, 0
        %v1165 = vsel %vm973, 1, 0
        %v1166 = vsel %vm974, 1, 0
        %v1167 = vsel %vm975, 1, 0
        %v1168 = vsel %vm976, 1, 0
        %v1169 = vsel %vm977, 1, 0
        %v1170 = vsel %vm978, 1, 0
        %v1171 = vcvt.s32.f32 %v1107
        %v1172 = vcvt.s32.f32 %v1108
        %v1173 = vcvt.s32.f32 %v1109
        %v1174 = vcvt.s32.f32 %v1110
        %v1175 = vcvt.s32.f32 %v1111
        %v1176 = vcvt.s32.f32 %v1112
        %v1177 = vcvt.s32.f32 %v1113
        %v1178 = vcvt.s32.f32 %v1114
        %v1179 = vcvt.s32.f32 %v1115
        %v1180 = vcvt.s32.f32 %v1116
        %v1181 = vcvt.s32.f32 %v1117
        %v1182 = vcvt.s32.f32 %v1118
        %v1183 = vcvt.s32.f32 %v1119
        %v1184 = vcvt.s32.f32 %v1120
        %v1185 = vcvt.s32.f32 %v1121
        %v1186 = vcvt.s32.f32 %v1122
        %v1187 = vcvt.s32.f32 %v1123
        %v1188 = vcvt.s32.f32 %v1124
        %v1189 = vcvt.s32.f32 %v1125
        %v1190 = vcvt.s32.f32 %v1126
        %v1191 = vcvt.s32.f32 %v1127
        %v1192 = vcvt.s32.f32 %v1128
        %v1193 = vcvt.s32.f32 %v1129
        %v1194 = vcvt.s32.f32 %v1130
        %v1195 = vcvt.s32.f32 %v1131
        %v1196 = vcvt.s32.f32 %v1132
        %v1197 = vcvt.s32.f32 %v1133
        %v1198 = vcvt.s32.f32 %v1134
        %v1199 = vcvt.s32.f32 %v1135
        %v1200 = vcvt.s32.f32 %v1136
        %v1201 = vcvt.s32.f32 %v1137
        %v1202 = vcvt.s32.f32 %v1138
        %v1203 = vcvt.s32.f32 %v1139
        %v1204 = vcvt.s32.f32 %v1140
        %v1205 = vcvt.s32.f32 %v1141
        %v1206 = vcvt.s32.f32 %v1142
        %v1207 = vcvt.s32.f32 %v1143
        %v1208 = vcvt.s32.f32 %v1144
        %v1209 = vcvt.s32.f32 %v1145
        %v1210 = vcvt.s32.f32 %v1146
        %v1211 = vcvt.s32.f32 %v1147
        %v1212 = vcvt.s32.f32 %v1148
        %v1213 = vcvt.s32.f32 %v1149
        %v1214 = vcvt.s32.f32 %v1150
        %v1215 = vcvt.s32.f32 %v1151
        %v1216 = vcvt.s32.f32 %v1152
        %v1217 = vcvt.s32.f32 %v1153
        %v1218 = vcvt.s32.f32 %v1154
        %v1219 = vcvt.s32.f32 %v1155
        %v1220 = vcvt.s32.f32 %v1156
        %v1221 = vcvt.s32.f32 %v1157
        %v1222 = vcvt.s32.f32 %v1158
        %v1223 = vcvt.s32.f32 %v1159
        %v1224 = vcvt.s32.f32 %v1160
        %v1225 = vcvt.s32.f32 %v1161
        %v1226 = vcvt.s32.f32 %v1162
        %v1227 = vcvt.s32.f32 %v1163
        %v1228 = vcvt.s32.f32 %v1164
        %v1229 = vcvt.s32.f32 %v1165
        %v1230 = vcvt.s32.f32 %v1166
        %v1231 = vcvt.s32.f32 %v1167
        %v1232 = vcvt.s32.f32 %v1168
        %v1233 = vcvt.s32.f32 %v1169
        %v1234 = vcvt.s32.f32 %v1170
        %v1235 = vmul.f32 %v995, %v1171
        %v1236 = vmul.f32 %v996, %v1172
        %v1237 = vmul.f32 %v997, %v1173
        %v1238 = vmul.f32 %v998, %v1174
        %v1239 = vmul.f32 %v999, %v1175
        %v1240 = vmul.f32 %v1000, %v1176
        %v1241 = vmul.f32 %v1001, %v1177
        %v1242 = vmul.f32 %v1002, %v1178
        %v1243 = vmul.f32 %v1003, %v1179
        %v1244 = vmul.f32 %v1004, %v1180
        %v1245 = vmul.f32 %v1005, %v1181
        %v1246 = vmul.f32 %v1006, %v1182
        %v1247 = vmul.f32 %v1007, %v1183
        %v1248 = vmul.f32 %v1008, %v1184
        %v1249 = vmul.f32 %v1009, %v1185
        %v1250 = vmul.f32 %v1010, %v1186
        %v1251 = vmul.f32 %v1027, %v1187
        %v1252 = vmul.f32 %v1028, %v1188
        %v1253 = vmul.f32 %v1029, %v1189
        %v1254 = vmul.f32 %v1030, %v1190
        %v1255 = vmul.f32 %v1031, %v1191
        %v1256 = vmul.f32 %v1032, %v1192
        %v1257 = vmul.f32 %v1033, %v1193
        %v1258 = vmul.f32 %v1034, %v1194
        %v1259 = vmul.f32 %v1035, %v1195
        %v1260 = vmul.f32 %v1036, %v1196
        %v1261 = vmul.f32 %v1037, %v1197
        %v1262 = vmul.f32 %v1038, %v1198
        %v1263 = vmul.f32 %v1039, %v1199
        %v1264 = vmul.f32 %v1040, %v1200
        %v1265 = vmul.f32 %v1041, %v1201
        %v1266 = vmul.f32 %v1042, %v1202
        %v1267 = vmul.f32 %v1059, %v1203
        %v1268 = vmul.f32 %v1060, %v1204
        %v1269 = vmul.f32 %v1061, %v1205
        %v1270 = vmul.f32 %v1062, %v1206
        %v1271 = vmul.f32 %v1063, %v1207
        %v1272 = vmul.f32 %v1064, %v1208
        %v1273 = vmul.f32 %v1065, %v1209
        %v1274 = vmul.f32 %v1066, %v1210
        %v1275 = vmul.f32 %v1067, %v1211
        %v1276 = vmul.f32 %v1068, %v1212
        %v1277 = vmul.f32 %v1069, %v1213
        %v1278 = vmul.f32 %v1070, %v1214
        %v1279 = vmul.f32 %v1071, %v1215
        %v1280 = vmul.f32 %v1072, %v1216
        %v1281 = vmul.f32 %v1073, %v1217
        %v1282 = vmul.f32 %v1074, %v1218
        %v1283 = vmul.f32 %v1091, %v1219
        %v1284 = vmul.f32 %v1092, %v1220
        %v1285 = vmul.f32 %v1093, %v1221
        %v1286 = vmul.f32 %v1094, %v1222
        %v1287 = vmul.f32 %v1095, %v1223
        %v1288 = vmul.f32 %v1096, %v1224
        %v1289 = vmul.f32 %v1097, %v1225
        %v1290 = vmul.f32 %v1098, %v1226
        %v1291 = vmul.f32 %v1099, %v1227
        %v1292 = vmul.f32 %v1100, %v1228
        %v1293 = vmul.f32 %v1101, %v1229
        %v1294 = vmul.f32 %v1102, %v1230
        %v1295 = vmul.f32 %v1103, %v1231
        %v1296 = vmul.f32 %v1104, %v1232
        %v1297 = vmul.f32 %v1105, %v1233
        %v1298 = vmul.f32 %v1106, %v1234
        %v1299 = vpack.c.bf16 %v1172, %v1171
        %v1300 = vpack.c.bf16 %v1174, %v1173
        %v1301 = vpack.c.bf16 %v1176, %v1175
        %v1302 = vpack.c.bf16 %v1178, %v1177
        %v1303 = vpack.c.bf16 %v1180, %v1179
        %v1304 = vpack.c.bf16 %v1182, %v1181
        %v1305 = vpack.c.bf16 %v1184, %v1183
        %v1306 = vpack.c.bf16 %v1186, %v1185
        %v1307 = vpack.c.bf16 %v1188, %v1187
        %v1308 = vpack.c.bf16 %v1190, %v1189
        %v1309 = vpack.c.bf16 %v1192, %v1191
        %v1310 = vpack.c.bf16 %v1194, %v1193
        %v1311 = vpack.c.bf16 %v1196, %v1195
        %v1312 = vpack.c.bf16 %v1198, %v1197
        %v1313 = vpack.c.bf16 %v1200, %v1199
        %v1314 = vpack.c.bf16 %v1202, %v1201
        %v1315 = vpack.c.bf16 %v1204, %v1203
        %v1316 = vpack.c.bf16 %v1206, %v1205
        %v1317 = vpack.c.bf16 %v1208, %v1207
        %v1318 = vpack.c.bf16 %v1210, %v1209
        %v1319 = vpack.c.bf16 %v1212, %v1211
        %v1320 = vpack.c.bf16 %v1214, %v1213
        %v1321 = vpack.c.bf16 %v1216, %v1215
        %v1322 = vpack.c.bf16 %v1218, %v1217
        %v1323 = vpack.c.bf16 %v1220, %v1219
        %v1324 = vpack.c.bf16 %v1222, %v1221
        %v1325 = vpack.c.bf16 %v1224, %v1223
        %v1326 = vpack.c.bf16 %v1226, %v1225
        %v1327 = vpack.c.bf16 %v1228, %v1227
        %v1328 = vpack.c.bf16 %v1230, %v1229
        %v1329 = vpack.c.bf16 %v1232, %v1231
        %v1330 = vpack.c.bf16 %v1234, %v1233
        %v1331 = vpack.c.bf16 %v787, %v787
        %v1332 = vpack.c.bf16 %v789, %v789
        %v1333 = vpack.c.bf16 %v838, %v838
        %v1334 = vpack.c.bf16 %v840, %v840
        %v1335 = vld [vmem:[%s6] sm:$0xff]
        %v1336 = vld [vmem:[%s6 + $0x8] sm:$0xff]
        %v1339 = vunpack.c.l.b16 %v1335
        %v1340 = vunpack.c.h.b16 %v1335
        %v1341 = vunpack.c.l.b16 %v1336
        %v1342 = vunpack.c.h.b16 %v1336
        %v1343 = vpack.c.b16 %v1339, %v1339
        %v1344 = vpack.c.b16 %v1340, %v1340
        %v1345 = vpack.c.b16 %v1341, %v1341
        %v1346 = vpack.c.b16 %v1342, %v1342
        %v1349 = vsel %vm735, %v1331, %v1343
        %v1353 = vsel %vm735, %v1332, %v1344
        %v1357 = vsel %vm735, %v1333, %v1345
        %v1361 = vsel %vm735, %v1334, %v1346
        %v1363 = vlaneseq
        %v1364 = vand.u32 %v1363, 127
        loop: start=0, step=1, limit=4
        $region81: #{tpu_custom_call.1} parent=79 // loop_pre_header
          _
        $region82: #{tpu_custom_call.1} parent=79 // loop_header
          %s1366 = sphi 0, %s1370
          %p1367 = scmp.ge.s32.totalorder %s1366, 4
          %v1371 = vphi 0.0, %v3685
          %v1372 = vphi 0.0, %v3686
          %v1373 = vphi 0.0, %v3687
          %v1374 = vphi 0.0, %v3688
        $region83: #{tpu_custom_call.1} parent=79 // loop_header_branch
          %1369 = sbr.rel (%p1367) target = $region87
        $region84: #{tpu_custom_call.1} parent=79 // loop_body
          %s1375 = smul.u32 %s1366, 2
          %v1376 = vstv %s1375
          %vm1377 = vcmp.ge.s32.totalorder %v1364, %v1376
          %s1378 = sadd.s32 %s1375, 2
          %v1379 = vstv %s1378
          %vm1380 = vcmp.lt.s32.totalorder %v1364, %v1379
          %vm1381 = vmand %vm1377, %vm1380
          %s1382 = sadd.s32 %s1375, 8
          %v1383 = vstv %s1382
          %vm1384 = vcmp.ge.s32.totalorder %v1364, %v1383
          %s1385 = sadd.s32 %s1375, 10
          %v1386 = vstv %s1385
          %vm1387 = vcmp.lt.s32.totalorder %v1364, %v1386
          %vm1388 = vmand %vm1384, %vm1387
          %vm1389 = vmor %vm1381, %vm1388
          %v1390 = vsel %vm1389, 1, 0
          %v1391 = vcvt.s32.f32 %v1390
          %v1392 = vmul.f32 %v1235, %v1391
          %v1393 = vmul.f32 %v1236, %v1391
          %v1394 = vmul.f32 %v1237, %v1391
          %v1395 = vmul.f32 %v1238, %v1391
          %v1396 = vmul.f32 %v1239, %v1391
          %v1397 = vmul.f32 %v1240, %v1391
          %v1398 = vmul.f32 %v1241, %v1391
          %v1399 = vmul.f32 %v1242, %v1391
          %v1400 = vmul.f32 %v1243, %v1391
          %v1401 = vmul.f32 %v1244, %v1391
          %v1402 = vmul.f32 %v1245, %v1391
          %v1403 = vmul.f32 %v1246, %v1391
          %v1404 = vmul.f32 %v1247, %v1391
          %v1405 = vmul.f32 %v1248, %v1391
          %v1406 = vmul.f32 %v1249, %v1391
          %v1407 = vmul.f32 %v1250, %v1391
          %v1408 = vmul.f32 %v1251, %v1391
          %v1409 = vmul.f32 %v1252, %v1391
          %v1410 = vmul.f32 %v1253, %v1391
          %v1411 = vmul.f32 %v1254, %v1391
          %v1412 = vmul.f32 %v1255, %v1391
          %v1413 = vmul.f32 %v1256, %v1391
          %v1414 = vmul.f32 %v1257, %v1391
          %v1415 = vmul.f32 %v1258, %v1391
          %v1416 = vmul.f32 %v1259, %v1391
          %v1417 = vmul.f32 %v1260, %v1391
          %v1418 = vmul.f32 %v1261, %v1391
          %v1419 = vmul.f32 %v1262, %v1391
          %v1420 = vmul.f32 %v1263, %v1391
          %v1421 = vmul.f32 %v1264, %v1391
          %v1422 = vmul.f32 %v1265, %v1391
          %v1423 = vmul.f32 %v1266, %v1391
          %v1424 = vmul.f32 %v1267, %v1391
          %v1425 = vmul.f32 %v1268, %v1391
          %v1426 = vmul.f32 %v1269, %v1391
          %v1427 = vmul.f32 %v1270, %v1391
          %v1428 = vmul.f32 %v1271, %v1391
          %v1429 = vmul.f32 %v1272, %v1391
          %v1430 = vmul.f32 %v1273, %v1391
          %v1431 = vmul.f32 %v1274, %v1391
          %v1432 = vmul.f32 %v1275, %v1391
          %v1433 = vmul.f32 %v1276, %v1391
          %v1434 = vmul.f32 %v1277, %v1391
          %v1435 = vmul.f32 %v1278, %v1391
          %v1436 = vmul.f32 %v1279, %v1391
          %v1437 = vmul.f32 %v1280, %v1391
          %v1438 = vmul.f32 %v1281, %v1391
          %v1439 = vmul.f32 %v1282, %v1391
          %v1440 = vmul.f32 %v1283, %v1391
          %v1441 = vmul.f32 %v1284, %v1391
          %v1442 = vmul.f32 %v1285, %v1391
          %v1443 = vmul.f32 %v1286, %v1391
          %v1444 = vmul.f32 %v1287, %v1391
          %v1445 = vmul.f32 %v1288, %v1391
          %v1446 = vmul.f32 %v1289, %v1391
          %v1447 = vmul.f32 %v1290, %v1391
          %v1448 = vmul.f32 %v1291, %v1391
          %v1449 = vmul.f32 %v1292, %v1391
          %v1450 = vmul.f32 %v1293, %v1391
          %v1451 = vmul.f32 %v1294, %v1391
          %v1452 = vmul.f32 %v1295, %v1391
          %v1453 = vmul.f32 %v1296, %v1391
          %v1454 = vmul.f32 %v1297, %v1391
          %v1455 = vmul.f32 %v1298, %v1391
          %v1456 = vpack.c.bf16 %v1393, %v1392
          %v1457 = vpack.c.bf16 %v1395, %v1394
          %v1458 = vpack.c.bf16 %v1397, %v1396
          %v1459 = vpack.c.bf16 %v1399, %v1398
          %v1460 = vpack.c.bf16 %v1401, %v1400
          %v1461 = vpack.c.bf16 %v1403, %v1402
          %v1462 = vpack.c.bf16 %v1405, %v1404
          %v1463 = vpack.c.bf16 %v1407, %v1406
          %v1464 = vpack.c.bf16 %v1409, %v1408
          %v1465 = vpack.c.bf16 %v1411, %v1410
          %v1466 = vpack.c.bf16 %v1413, %v1412
          %v1467 = vpack.c.bf16 %v1415, %v1414
          %v1468 = vpack.c.bf16 %v1417, %v1416
          %v1469 = vpack.c.bf16 %v1419, %v1418
          %v1470 = vpack.c.bf16 %v1421, %v1420
          %v1471 = vpack.c.bf16 %v1423, %v1422
          %v1472 = vpack.c.bf16 %v1425, %v1424
          %v1473 = vpack.c.bf16 %v1427, %v1426
          %v1474 = vpack.c.bf16 %v1429, %v1428
          %v1475 = vpack.c.bf16 %v1431, %v1430
          %v1476 = vpack.c.bf16 %v1433, %v1432
          %v1477 = vpack.c.bf16 %v1435, %v1434
          %v1478 = vpack.c.bf16 %v1437, %v1436
          %v1479 = vpack.c.bf16 %v1439, %v1438
          %v1480 = vpack.c.bf16 %v1441, %v1440
          %v1481 = vpack.c.bf16 %v1443, %v1442
          %v1482 = vpack.c.bf16 %v1445, %v1444
          %v1483 = vpack.c.bf16 %v1447, %v1446
          %v1484 = vpack.c.bf16 %v1449, %v1448
          %v1485 = vpack.c.bf16 %v1451, %v1450
          %v1486 = vpack.c.bf16 %v1453, %v1452
          %v1487 = vpack.c.bf16 %v1455, %v1454
          %vm1488 = vcmask 130048
          %v1490 = vsel %vm1488, %v1456, 0
          %v1493 = vsel %vm1488, %v1457, 0
          %v1496 = vsel %vm1488, %v1458, 0
          %v1499 = vsel %vm1488, %v1459, 0
          %v1502 = vsel %vm1488, %v1460, 0
          %v1505 = vsel %vm1488, %v1461, 0
          %v1508 = vsel %vm1488, %v1462, 0
          %v1511 = vsel %vm1488, %v1463, 0
          %v1514 = vsel %vm1488, %v1464, 0
          %v1517 = vsel %vm1488, %v1465, 0
          %v1520 = vsel %vm1488, %v1466, 0
          %v1523 = vsel %vm1488, %v1467, 0
          %v1526 = vsel %vm1488, %v1468, 0
          %v1529 = vsel %vm1488, %v1469, 0
          %v1532 = vsel %vm1488, %v1470, 0
          %v1535 = vsel %vm1488, %v1471, 0
          %v1538 = vsel %vm1488, %v1472, 0
          %v1541 = vsel %vm1488, %v1473, 0
          %v1544 = vsel %vm1488, %v1474, 0
          %v1547 = vsel %vm1488, %v1475, 0
          %v1550 = vsel %vm1488, %v1476, 0
          %v1553 = vsel %vm1488, %v1477, 0
          %v1556 = vsel %vm1488, %v1478, 0
          %v1559 = vsel %vm1488, %v1479, 0
          %v1562 = vsel %vm1488, %v1480, 0
          %v1565 = vsel %vm1488, %v1481, 0
          %v1568 = vsel %vm1488, %v1482, 0
          %v1571 = vsel %vm1488, %v1483, 0
          %v1574 = vsel %vm1488, %v1484, 0
          %v1577 = vsel %vm1488, %v1485, 0
          %v1580 = vsel %vm1488, %v1486, 0
          %v1583 = vsel %vm1488, %v1487, 0
          %1585 = vmatprep.subr.bf16.mxu0 %v1353
          %1586 = vmatpush1.bf16.msra.mxu0 %v1349
          %1587 = vmatprep.subr.bf16.mxu0 0
          %1588 = vmatpush1.bf16.msra.mxu0 0
          %1589 = vmatprep.subr.bf16.mxu0 0
          %1590 = vmatpush1.bf16.msra.mxu0 0
          %1591 = vmatprep.subr.bf16.mxu0 0
          %1592 = vmatpush1.bf16.msra.mxu0 0
          %1593 = vmatprep.subr.bf16.mxu0 0
          %1594 = vmatpush1.bf16.msra.mxu0 0
          %1595 = vmatprep.subr.bf16.mxu0 0
          %1596 = vmatpush1.bf16.msra.mxu0 0
          %1597 = vmatprep.subr.bf16.mxu0 0
          %1598 = vmatpush1.bf16.msra.mxu0 0
          %1599 = vmatprep.subr.bf16.mxu0 0
          %1600 = vmatpush1.bf16.msra.mxu0 0
          %1601 = vmatprep.subr.bf16.mxu0 0
          %1602 = vmatpush1.bf16.msra.mxu0 0
          %1603 = vmatprep.subr.bf16.mxu0 0
          %1604 = vmatpush1.bf16.msra.mxu0 0
          %1605 = vmatprep.subr.bf16.mxu0 0
          %1606 = vmatpush1.bf16.msra.mxu0 0
          %1607 = vmatprep.subr.bf16.mxu0 0
          %1608 = vmatpush1.bf16.msra.mxu0 0
          %1609 = vmatprep.subr.bf16.mxu0 0
          %1610 = vmatpush1.bf16.msra.mxu0 0
          %1611 = vmatprep.subr.bf16.mxu0 0
          %1612 = vmatpush1.bf16.msra.mxu0 0
          %1613 = vmatprep.subr.bf16.mxu0 0
          %1614 = vmatpush1.bf16.msra.mxu0 0
          %1615 = vmatprep.subr.bf16.mxu0 0
          %1616 = vmatpush1.bf16.msra.mxu0 0
          %1617 = vmatprep.mubr.bf16.mxu0 0
          %1618 = vmatmul.mubr.bf16.gmra.mrb[0].mxu0 %v1490
          %v1619 = vpop.f32.mrb[0].mxu0
          %v1620 = vadd.f32 0.0, %v1619
          %v1621 = vpop.f32.mrb[0].mxu0
          %v1622 = vadd.f32 0.0, %v1621
          %v1623 = vpop.f32.mrb[0].mxu0
          %v1624 = vadd.f32 0.0, %v1623
          %v1625 = vpop.f32.mrb[0].mxu0
          %v1626 = vadd.f32 0.0, %v1625
          %1627 = vmatprep.mubr.bf16.mxu0 0
          %1628 = vmatmul.mubr.bf16.gmra.mrb[0].mxu0 %v1493
          %v1629 = vpop.f32.mrb[0].mxu0
          %v1630 = vadd.f32 0.0, %v1629
          %v1631 = vpop.f32.mrb[0].mxu0
          %v1632 = vadd.f32 0.0, %v1631
          %v1633 = vpop.f32.mrb[0].mxu0
          %v1634 = vadd.f32 0.0, %v1633
          %v1635 = vpop.f32.mrb[0].mxu0
          %v1636 = vadd.f32 0.0, %v1635
          %1637 = vmatprep.mubr.bf16.mxu0 0
          %1638 = vmatmul.mubr.bf16.gmra.mrb[0].mxu0 %v1496
          %v1639 = vpop.f32.mrb[0].mxu0
          %v1640 = vadd.f32 0.0, %v1639
          %v1641 = vpop.f32.mrb[0].mxu0
          %v1642 = vadd.f32 0.0, %v1641
          %v1643 = vpop.f32.mrb[0].mxu0
          %v1644 = vadd.f32 0.0, %v1643
          %v1645 = vpop.f32.mrb[0].mxu0
          %v1646 = vadd.f32 0.0, %v1645
          %1647 = vmatprep.mubr.bf16.mxu0 0
          %1648 = vmatmul.mubr.bf16.gmra.mrb[0].mxu0 %v1499
          %v1649 = vpop.f32.mrb[0].mxu0
          %v1650 = vadd.f32 0.0, %v1649
          %v1651 = vpop.f32.mrb[0].mxu0
          %v1652 = vadd.f32 0.0, %v1651
          %v1653 = vpop.f32.mrb[0].mxu0
          %v1654 = vadd.f32 0.0, %v1653
          %v1655 = vpop.f32.mrb[0].mxu0
          %v1656 = vadd.f32 0.0, %v1655
          %1657 = vmatprep.mubr.bf16.mxu0 0
          %1658 = vmatmul.mubr.bf16.gmra.mrb[0].mxu0 %v1502
          %v1659 = vpop.f32.mrb[0].mxu0
          %v1660 = vadd.f32 0.0, %v1659
          %v1661 = vpop.f32.mrb[0].mxu0
          %v1662 = vadd.f32 0.0, %v1661
          %v1663 = vpop.f32.mrb[0].mxu0
          %v1664 = vadd.f32 0.0, %v1663
          %v1665 = vpop.f32.mrb[0].mxu0
          %v1666 = vadd.f32 0.0, %v1665
          %1667 = vmatprep.mubr.bf16.mxu0 0
          %1668 = vmatmul.mubr.bf16.gmra.mrb[0].mxu0 %v1505
          %v1669 = vpop.f32.mrb[0].mxu0
          %v1670 = vadd.f32 0.0, %v1669
          %v1671 = vpop.f32.mrb[0].mxu0
          %v1672 = vadd.f32 0.0, %v1671
          %v1673 = vpop.f32.mrb[0].mxu0
          %v1674 = vadd.f32 0.0, %v1673
          %v1675 = vpop.f32.mrb[0].mxu0
          %v1676 = vadd.f32 0.0, %v1675
          %1677 = vmatprep.mubr.bf16.mxu0 0
          %1678 = vmatmul.mubr.bf16.gmra.mrb[0].mxu0 %v1508
          %v1679 = vpop.f32.mrb[0].mxu0
          %v1680 = vadd.f32 0.0, %v1679
          %v1681 = vpop.f32.mrb[0].mxu0
          %v1682 = vadd.f32 0.0, %v1681
          %v1683 = vpop.f32.mrb[0].mxu0
          %v1684 = vadd.f32 0.0, %v1683
          %v1685 = vpop.f32.mrb[0].mxu0
          %v1686 = vadd.f32 0.0, %v1685
          %1687 = vmatprep.mubr.bf16.mxu0 0
          %1688 = vmatmul.mubr.bf16.gmra.mrb[0].mxu0 %v1511
          %v1689 = vpop.f32.mrb[0].mxu0
          %v1690 = vadd.f32 0.0, %v1689
          %v1691 = vpop.f32.mrb[0].mxu0
          %v1692 = vadd.f32 0.0, %v1691
          %v1693 = vpop.f32.mrb[0].mxu0
          %v1694 = vadd.f32 0.0, %v1693
          %v1695 = vpop.f32.mrb[0].mxu0
          %v1696 = vadd.f32 0.0, %v1695
          %1697 = vmatprep.mubr.bf16.mxu0 0
          %1698 = vmatmul.mubr.bf16.gmra.mrb[0].mxu0 %v1514
          %v1699 = vpop.f32.mrb[0].mxu0
          %v1700 = vadd.f32 0.0, %v1699
          %v1701 = vpop.f32.mrb[0].mxu0
          %v1702 = vadd.f32 0.0, %v1701
          %v1703 = vpop.f32.mrb[0].mxu0
          %v1704 = vadd.f32 0.0, %v1703
          %v1705 = vpop.f32.mrb[0].mxu0
          %v1706 = vadd.f32 0.0, %v1705
          %1707 = vmatprep.mubr.bf16.mxu0 0
          %1708 = vmatmul.mubr.bf16.gmra.mrb[0].mxu0 %v1517
          %v1709 = vpop.f32.mrb[0].mxu0
          %v1710 = vadd.f32 0.0, %v1709
          %v1711 = vpop.f32.mrb[0].mxu0
          %v1712 = vadd.f32 0.0, %v1711
          %v1713 = vpop.f32.mrb[0].mxu0
          %v1714 = vadd.f32 0.0, %v1713
          %v1715 = vpop.f32.mrb[0].mxu0
          %v1716 = vadd.f32 0.0, %v1715
          %1717 = vmatprep.mubr.bf16.mxu0 0
          %1718 = vmatmul.mubr.bf16.gmra.mrb[0].mxu0 %v1520
          %v1719 = vpop.f32.mrb[0].mxu0
          %v1720 = vadd.f32 0.0, %v1719
          %v1721 = vpop.f32.mrb[0].mxu0
          %v1722 = vadd.f32 0.0, %v1721
          %v1723 = vpop.f32.mrb[0].mxu0
          %v1724 = vadd.f32 0.0, %v1723
          %v1725 = vpop.f32.mrb[0].mxu0
          %v1726 = vadd.f32 0.0, %v1725
          %1727 = vmatprep.mubr.bf16.mxu0 0
          %1728 = vmatmul.mubr.bf16.gmra.mrb[0].mxu0 %v1523
          %v1729 = vpop.f32.mrb[0].mxu0
          %v1730 = vadd.f32 0.0, %v1729
          %v1731 = vpop.f32.mrb[0].mxu0
          %v1732 = vadd.f32 0.0, %v1731
          %v1733 = vpop.f32.mrb[0].mxu0
          %v1734 = vadd.f32 0.0, %v1733
          %v1735 = vpop.f32.mrb[0].mxu0
          %v1736 = vadd.f32 0.0, %v1735
          %1737 = vmatprep.mubr.bf16.mxu0 0
          %1738 = vmatmul.mubr.bf16.gmra.mrb[0].mxu0 %v1526
          %v1739 = vpop.f32.mrb[0].mxu0
          %v1740 = vadd.f32 0.0, %v1739
          %v1741 = vpop.f32.mrb[0].mxu0
          %v1742 = vadd.f32 0.0, %v1741
          %v1743 = vpop.f32.mrb[0].mxu0
          %v1744 = vadd.f32 0.0, %v1743
          %v1745 = vpop.f32.mrb[0].mxu0
          %v1746 = vadd.f32 0.0, %v1745
          %1747 = vmatprep.mubr.bf16.mxu0 0
          %1748 = vmatmul.mubr.bf16.gmra.mrb[0].mxu0 %v1529
          %v1749 = vpop.f32.mrb[0].mxu0
          %v1750 = vadd.f32 0.0, %v1749
          %v1751 = vpop.f32.mrb[0].mxu0
          %v1752 = vadd.f32 0.0, %v1751
          %v1753 = vpop.f32.mrb[0].mxu0
          %v1754 = vadd.f32 0.0, %v1753
          %v1755 = vpop.f32.mrb[0].mxu0
          %v1756 = vadd.f32 0.0, %v1755
          %1757 = vmatprep.mubr.bf16.mxu0 0
          %1758 = vmatmul.mubr.bf16.gmra.mrb[0].mxu0 %v1532
          %v1759 = vpop.f32.mrb[0].mxu0
          %v1760 = vadd.f32 0.0, %v1759
          %v1761 = vpop.f32.mrb[0].mxu0
          %v1762 = vadd.f32 0.0, %v1761
          %v1763 = vpop.f32.mrb[0].mxu0
          %v1764 = vadd.f32 0.0, %v1763
          %v1765 = vpop.f32.mrb[0].mxu0
          %v1766 = vadd.f32 0.0, %v1765
          %1767 = vmatprep.mubr.bf16.mxu0 0
          %1768 = vmatmul.mubr.bf16.gmra.mrb[0].mxu0 %v1535
          %v1769 = vpop.f32.mrb[0].mxu0
          %v1770 = vadd.f32 0.0, %v1769
          %v1771 = vpop.f32.mrb[0].mxu0
          %v1772 = vadd.f32 0.0, %v1771
          %v1773 = vpop.f32.mrb[0].mxu0
          %v1774 = vadd.f32 0.0, %v1773
          %v1775 = vpop.f32.mrb[0].mxu0
          %v1776 = vadd.f32 0.0, %v1775
          %1777 = vmatprep.mubr.bf16.mxu0 0
          %1778 = vmatmul.mubr.bf16.gmra.mrb[0].mxu0 %v1538
          %v1779 = vpop.f32.mrb[0].mxu0
          %v1780 = vadd.f32 0.0, %v1779
          %v1781 = vpop.f32.mrb[0].mxu0
          %v1782 = vadd.f32 0.0, %v1781
          %v1783 = vpop.f32.mrb[0].mxu0
          %v1784 = vadd.f32 0.0, %v1783
          %v1785 = vpop.f32.mrb[0].mxu0
          %v1786 = vadd.f32 0.0, %v1785
          %1787 = vmatprep.mubr.bf16.mxu0 0
          %1788 = vmatmul.mubr.bf16.gmra.mrb[0].mxu0 %v1541
          %v1789 = vpop.f32.mrb[0].mxu0
          %v1790 = vadd.f32 0.0, %v1789
          %v1791 = vpop.f32.mrb[0].mxu0
          %v1792 = vadd.f32 0.0, %v1791
          %v1793 = vpop.f32.mrb[0].mxu0
          %v1794 = vadd.f32 0.0, %v1793
          %v1795 = vpop.f32.mrb[0].mxu0
          %v1796 = vadd.f32 0.0, %v1795
          %1797 = vmatprep.mubr.bf16.mxu0 0
          %1798 = vmatmul.mubr.bf16.gmra.mrb[0].mxu0 %v1544
          %v1799 = vpop.f32.mrb[0].mxu0
          %v1800 = vadd.f32 0.0, %v1799
          %v1801 = vpop.f32.mrb[0].mxu0
          %v1802 = vadd.f32 0.0, %v1801
          %v1803 = vpop.f32.mrb[0].mxu0
          %v1804 = vadd.f32 0.0, %v1803
          %v1805 = vpop.f32.mrb[0].mxu0
          %v1806 = vadd.f32 0.0, %v1805
          %1807 = vmatprep.mubr.bf16.mxu0 0
          %1808 = vmatmul.mubr.bf16.gmra.mrb[0].mxu0 %v1547
          %v1809 = vpop.f32.mrb[0].mxu0
          %v1810 = vadd.f32 0.0, %v1809
          %v1811 = vpop.f32.mrb[0].mxu0
          %v1812 = vadd.f32 0.0, %v1811
          %v1813 = vpop.f32.mrb[0].mxu0
          %v1814 = vadd.f32 0.0, %v1813
          %v1815 = vpop.f32.mrb[0].mxu0
          %v1816 = vadd.f32 0.0, %v1815
          %1817 = vmatprep.mubr.bf16.mxu0 0
          %1818 = vmatmul.mubr.bf16.gmra.mrb[0].mxu0 %v1550
          %v1819 = vpop.f32.mrb[0].mxu0
          %v1820 = vadd.f32 0.0, %v1819
          %v1821 = vpop.f32.mrb[0].mxu0
          %v1822 = vadd.f32 0.0, %v1821
          %v1823 = vpop.f32.mrb[0].mxu0
          %v1824 = vadd.f32 0.0, %v1823
          %v1825 = vpop.f32.mrb[0].mxu0
          %v1826 = vadd.f32 0.0, %v1825
          %1827 = vmatprep.mubr.bf16.mxu0 0
          %1828 = vmatmul.mubr.bf16.gmra.mrb[0].mxu0 %v1553
          %v1829 = vpop.f32.mrb[0].mxu0
          %v1830 = vadd.f32 0.0, %v1829
          %v1831 = vpop.f32.mrb[0].mxu0
          %v1832 = vadd.f32 0.0, %v1831
          %v1833 = vpop.f32.mrb[0].mxu0
          %v1834 = vadd.f32 0.0, %v1833
          %v1835 = vpop.f32.mrb[0].mxu0
          %v1836 = vadd.f32 0.0, %v1835
          %1837 = vmatprep.mubr.bf16.mxu0 0
          %1838 = vmatmul.mubr.bf16.gmra.mrb[0].mxu0 %v1556
          %v1839 = vpop.f32.mrb[0].mxu0
          %v1840 = vadd.f32 0.0, %v1839
          %v1841 = vpop.f32.mrb[0].mxu0
          %v1842 = vadd.f32 0.0, %v1841
          %v1843 = vpop.f32.mrb[0].mxu0
          %v1844 = vadd.f32 0.0, %v1843
          %v1845 = vpop.f32.mrb[0].mxu0
          %v1846 = vadd.f32 0.0, %v1845
          %1847 = vmatprep.mubr.bf16.mxu0 0
          %1848 = vmatmul.mubr.bf16.gmra.mrb[0].mxu0 %v1559
          %v1849 = vpop.f32.mrb[0].mxu0
          %v1850 = vadd.f32 0.0, %v1849
          %v1851 = vpop.f32.mrb[0].mxu0
          %v1852 = vadd.f32 0.0, %v1851
          %v1853 = vpop.f32.mrb[0].mxu0
          %v1854 = vadd.f32 0.0, %v1853
          %v1855 = vpop.f32.mrb[0].mxu0
          %v1856 = vadd.f32 0.0, %v1855
          %1857 = vmatprep.mubr.bf16.mxu0 0
          %1858 = vmatmul.mubr.bf16.gmra.mrb[0].mxu0 %v1562
          %v1859 = vpop.f32.mrb[0].mxu0
          %v1860 = vadd.f32 0.0, %v1859
          %v1861 = vpop.f32.mrb[0].mxu0
          %v1862 = vadd.f32 0.0, %v1861
          %v1863 = vpop.f32.mrb[0].mxu0
          %v1864 = vadd.f32 0.0, %v1863
          %v1865 = vpop.f32.mrb[0].mxu0
          %v1866 = vadd.f32 0.0, %v1865
          %1867 = vmatprep.mubr.bf16.mxu0 0
          %1868 = vmatmul.mubr.bf16.gmra.mrb[0].mxu0 %v1565
          %v1869 = vpop.f32.mrb[0].mxu0
          %v1870 = vadd.f32 0.0, %v1869
          %v1871 = vpop.f32.mrb[0].mxu0
          %v1872 = vadd.f32 0.0, %v1871
          %v1873 = vpop.f32.mrb[0].mxu0
          %v1874 = vadd.f32 0.0, %v1873
          %v1875 = vpop.f32.mrb[0].mxu0
          %v1876 = vadd.f32 0.0, %v1875
          %1877 = vmatprep.mubr.bf16.mxu0 0
          %1878 = vmatmul.mubr.bf16.gmra.mrb[0].mxu0 %v1568
          %v1879 = vpop.f32.mrb[0].mxu0
          %v1880 = vadd.f32 0.0, %v1879
          %v1881 = vpop.f32.mrb[0].mxu0
          %v1882 = vadd.f32 0.0, %v1881
          %v1883 = vpop.f32.mrb[0].mxu0
          %v1884 = vadd.f32 0.0, %v1883
          %v1885 = vpop.f32.mrb[0].mxu0
          %v1886 = vadd.f32 0.0, %v1885
          %1887 = vmatprep.mubr.bf16.mxu0 0
          %1888 = vmatmul.mubr.bf16.gmra.mrb[0].mxu0 %v1571
          %v1889 = vpop.f32.mrb[0].mxu0
          %v1890 = vadd.f32 0.0, %v1889
          %v1891 = vpop.f32.mrb[0].mxu0
          %v1892 = vadd.f32 0.0, %v1891
          %v1893 = vpop.f32.mrb[0].mxu0
          %v1894 = vadd.f32 0.0, %v1893
          %v1895 = vpop.f32.mrb[0].mxu0
          %v1896 = vadd.f32 0.0, %v1895
          %1897 = vmatprep.mubr.bf16.mxu0 0
          %1898 = vmatmul.mubr.bf16.gmra.mrb[0].mxu0 %v1574
          %v1899 = vpop.f32.mrb[0].mxu0
          %v1900 = vadd.f32 0.0, %v1899
          %v1901 = vpop.f32.mrb[0].mxu0
          %v1902 = vadd.f32 0.0, %v1901
          %v1903 = vpop.f32.mrb[0].mxu0
          %v1904 = vadd.f32 0.0, %v1903
          %v1905 = vpop.f32.mrb[0].mxu0
          %v1906 = vadd.f32 0.0, %v1905
          %1907 = vmatprep.mubr.bf16.mxu0 0
          %1908 = vmatmul.mubr.bf16.gmra.mrb[0].mxu0 %v1577
          %v1909 = vpop.f32.mrb[0].mxu0
          %v1910 = vadd.f32 0.0, %v1909
          %v1911 = vpop.f32.mrb[0].mxu0
          %v1912 = vadd.f32 0.0, %v1911
          %v1913 = vpop.f32.mrb[0].mxu0
          %v1914 = vadd.f32 0.0, %v1913
          %v1915 = vpop.f32.mrb[0].mxu0
          %v1916 = vadd.f32 0.0, %v1915
          %1917 = vmatprep.mubr.bf16.mxu0 0
          %1918 = vmatmul.mubr.bf16.gmra.mrb[0].mxu0 %v1580
          %v1919 = vpop.f32.mrb[0].mxu0
          %v1920 = vadd.f32 0.0, %v1919
          %v1921 = vpop.f32.mrb[0].mxu0
          %v1922 = vadd.f32 0.0, %v1921
          %v1923 = vpop.f32.mrb[0].mxu0
          %v1924 = vadd.f32 0.0, %v1923
          %v1925 = vpop.f32.mrb[0].mxu0
          %v1926 = vadd.f32 0.0, %v1925
          %1927 = vmatprep.mubr.bf16.mxu0 0
          %1928 = vmatmul.mubr.bf16.gmra.mrb[0].mxu0 %v1583
          %v1929 = vpop.f32.mrb[0].mxu0
          %v1930 = vadd.f32 0.0, %v1929
          %v1931 = vpop.f32.mrb[0].mxu0
          %v1932 = vadd.f32 0.0, %v1931
          %v1933 = vpop.f32.mrb[0].mxu0
          %v1934 = vadd.f32 0.0, %v1933
          %v1935 = vpop.f32.mrb[0].mxu0
          %v1936 = vadd.f32 0.0, %v1935
          %1937 = vdwg.mxu0
          %1938 = vmatprep.subr.bf16.mxu0 %v1361
          %1939 = vmatpush1.bf16.msra.mxu0 %v1357
          %1940 = vmatprep.subr.bf16.mxu0 0
          %1941 = vmatpush1.bf16.msra.mxu0 0
          %1942 = vmatprep.subr.bf16.mxu0 0
          %1943 = vmatpush1.bf16.msra.mxu0 0
          %1944 = vmatprep.subr.bf16.mxu0 0
          %1945 = vmatpush1.bf16.msra.mxu0 0
          %1946 = vmatprep.subr.bf16.mxu0 0
          %1947 = vmatpush1.bf16.msra.mxu0 0
          %1948 = vmatprep.subr.bf16.mxu0 0
          %1949 = vmatpush1.bf16.msra.mxu0 0
          %1950 = vmatprep.subr.bf16.mxu0 0
          %1951 = vmatpush1.bf16.msra.mxu0 0
          %1952 = vmatprep.subr.bf16.mxu0 0
          %1953 = vmatpush1.bf16.msra.mxu0 0
          %1954 = vmatprep.subr.bf16.mxu0 0
          %1955 = vmatpush1.bf16.msra.mxu0 0
          %1956 = vmatprep.subr.bf16.mxu0 0
          %1957 = vmatpush1.bf16.msra.mxu0 0
          %1958 = vmatprep.subr.bf16.mxu0 0
          %1959 = vmatpush1.bf16.msra.mxu0 0
          %1960 = vmatprep.subr.bf16.mxu0 0
          %1961 = vmatpush1.bf16.msra.mxu0 0
          %1962 = vmatprep.subr.bf16.mxu0 0
          %1963 = vmatpush1.bf16.msra.mxu0 0
          %1964 = vmatprep.subr.bf16.mxu0 0
          %1965 = vmatpush1.bf16.msra.mxu0 0
          %1966 = vmatprep.subr.bf16.mxu0 0
          %1967 = vmatpush1.bf16.msra.mxu0 0
          %1968 = vmatprep.subr.bf16.mxu0 0
          %1969 = vmatpush1.bf16.msra.mxu0 0
          %1970 = vmatprep.mubr.bf16.mxu0 0
          %1971 = vmatmul.mubr.bf16.gmra.mrb[0].mxu0 %v1490
          %v1972 = vpop.f32.mrb[0].mxu0
          %v1973 = vadd.f32 0.0, %v1972
          %v1974 = vpop.f32.mrb[0].mxu0
          %v1975 = vadd.f32 0.0, %v1974
          %v1976 = vpop.f32.mrb[0].mxu0
          %v1977 = vadd.f32 0.0, %v1976
          %v1978 = vpop.f32.mrb[0].mxu0
          %v1979 = vadd.f32 0.0, %v1978
          %1980 = vmatprep.mubr.bf16.mxu0 0
          %1981 = vmatmul.mubr.bf16.gmra.mrb[0].mxu0 %v1493
          %v1982 = vpop.f32.mrb[0].mxu0
          %v1983 = vadd.f32 0.0, %v1982
          %v1984 = vpop.f32.mrb[0].mxu0
          %v1985 = vadd.f32 0.0, %v1984
          %v1986 = vpop.f32.mrb[0].mxu0
          %v1987 = vadd.f32 0.0, %v1986
          %v1988 = vpop.f32.mrb[0].mxu0
          %v1989 = vadd.f32 0.0, %v1988
          %1990 = vmatprep.mubr.bf16.mxu0 0
          %1991 = vmatmul.mubr.bf16.gmra.mrb[0].mxu0 %v1496
          %v1992 = vpop.f32.mrb[0].mxu0
          %v1993 = vadd.f32 0.0, %v1992
          %v1994 = vpop.f32.mrb[0].mxu0
          %v1995 = vadd.f32 0.0, %v1994
          %v1996 = vpop.f32.mrb[0].mxu0
          %v1997 = vadd.f32 0.0, %v1996
          %v1998 = vpop.f32.mrb[0].mxu0
          %v1999 = vadd.f32 0.0, %v1998
          %2000 = vmatprep.mubr.bf16.mxu0 0
          %2001 = vmatmul.mubr.bf16.gmra.mrb[0].mxu0 %v1499
          %v2002 = vpop.f32.mrb[0].mxu0
          %v2003 = vadd.f32 0.0, %v2002
          %v2004 = vpop.f32.mrb[0].mxu0
          %v2005 = vadd.f32 0.0, %v2004
          %v2006 = vpop.f32.mrb[0].mxu0
          %v2007 = vadd.f32 0.0, %v2006
          %v2008 = vpop.f32.mrb[0].mxu0
          %v2009 = vadd.f32 0.0, %v2008
          %2010 = vmatprep.mubr.bf16.mxu0 0
          %2011 = vmatmul.mubr.bf16.gmra.mrb[0].mxu0 %v1502
          %v2012 = vpop.f32.mrb[0].mxu0
          %v2013 = vadd.f32 0.0, %v2012
          %v2014 = vpop.f32.mrb[0].mxu0
          %v2015 = vadd.f32 0.0, %v2014
          %v2016 = vpop.f32.mrb[0].mxu0
          %v2017 = vadd.f32 0.0, %v2016
          %v2018 = vpop.f32.mrb[0].mxu0
          %v2019 = vadd.f32 0.0, %v2018
          %2020 = vmatprep.mubr.bf16.mxu0 0
          %2021 = vmatmul.mubr.bf16.gmra.mrb[0].mxu0 %v1505
          %v2022 = vpop.f32.mrb[0].mxu0
          %v2023 = vadd.f32 0.0, %v2022
          %v2024 = vpop.f32.mrb[0].mxu0
          %v2025 = vadd.f32 0.0, %v2024
          %v2026 = vpop.f32.mrb[0].mxu0
          %v2027 = vadd.f32 0.0, %v2026
          %v2028 = vpop.f32.mrb[0].mxu0
          %v2029 = vadd.f32 0.0, %v2028
          %2030 = vmatprep.mubr.bf16.mxu0 0
          %2031 = vmatmul.mubr.bf16.gmra.mrb[0].mxu0 %v1508
          %v2032 = vpop.f32.mrb[0].mxu0
          %v2033 = vadd.f32 0.0, %v2032
          %v2034 = vpop.f32.mrb[0].mxu0
          %v2035 = vadd.f32 0.0, %v2034
          %v2036 = vpop.f32.mrb[0].mxu0
          %v2037 = vadd.f32 0.0, %v2036
          %v2038 = vpop.f32.mrb[0].mxu0
          %v2039 = vadd.f32 0.0, %v2038
          %2040 = vmatprep.mubr.bf16.mxu0 0
          %2041 = vmatmul.mubr.bf16.gmra.mrb[0].mxu0 %v1511
          %v2042 = vpop.f32.mrb[0].mxu0
          %v2043 = vadd.f32 0.0, %v2042
          %v2044 = vpop.f32.mrb[0].mxu0
          %v2045 = vadd.f32 0.0, %v2044
          %v2046 = vpop.f32.mrb[0].mxu0
          %v2047 = vadd.f32 0.0, %v2046
          %v2048 = vpop.f32.mrb[0].mxu0
          %v2049 = vadd.f32 0.0, %v2048
          %2050 = vmatprep.mubr.bf16.mxu0 0
          %2051 = vmatmul.mubr.bf16.gmra.mrb[0].mxu0 %v1514
          %v2052 = vpop.f32.mrb[0].mxu0
          %v2053 = vadd.f32 0.0, %v2052
          %v2054 = vpop.f32.mrb[0].mxu0
          %v2055 = vadd.f32 0.0, %v2054
          %v2056 = vpop.f32.mrb[0].mxu0
          %v2057 = vadd.f32 0.0, %v2056
          %v2058 = vpop.f32.mrb[0].mxu0
          %v2059 = vadd.f32 0.0, %v2058
          %2060 = vmatprep.mubr.bf16.mxu0 0
          %2061 = vmatmul.mubr.bf16.gmra.mrb[0].mxu0 %v1517
          %v2062 = vpop.f32.mrb[0].mxu0
          %v2063 = vadd.f32 0.0, %v2062
          %v2064 = vpop.f32.mrb[0].mxu0
          %v2065 = vadd.f32 0.0, %v2064
          %v2066 = vpop.f32.mrb[0].mxu0
          %v2067 = vadd.f32 0.0, %v2066
          %v2068 = vpop.f32.mrb[0].mxu0
          %v2069 = vadd.f32 0.0, %v2068
          %2070 = vmatprep.mubr.bf16.mxu0 0
          %2071 = vmatmul.mubr.bf16.gmra.mrb[0].mxu0 %v1520
          %v2072 = vpop.f32.mrb[0].mxu0
          %v2073 = vadd.f32 0.0, %v2072
          %v2074 = vpop.f32.mrb[0].mxu0
          %v2075 = vadd.f32 0.0, %v2074
          %v2076 = vpop.f32.mrb[0].mxu0
          %v2077 = vadd.f32 0.0, %v2076
          %v2078 = vpop.f32.mrb[0].mxu0
          %v2079 = vadd.f32 0.0, %v2078
          %2080 = vmatprep.mubr.bf16.mxu0 0
          %2081 = vmatmul.mubr.bf16.gmra.mrb[0].mxu0 %v1523
          %v2082 = vpop.f32.mrb[0].mxu0
          %v2083 = vadd.f32 0.0, %v2082
          %v2084 = vpop.f32.mrb[0].mxu0
          %v2085 = vadd.f32 0.0, %v2084
          %v2086 = vpop.f32.mrb[0].mxu0
          %v2087 = vadd.f32 0.0, %v2086
          %v2088 = vpop.f32.mrb[0].mxu0
          %v2089 = vadd.f32 0.0, %v2088
          %2090 = vmatprep.mubr.bf16.mxu0 0
          %2091 = vmatmul.mubr.bf16.gmra.mrb[0].mxu0 %v1526
          %v2092 = vpop.f32.mrb[0].mxu0
          %v2093 = vadd.f32 0.0, %v2092
          %v2094 = vpop.f32.mrb[0].mxu0
          %v2095 = vadd.f32 0.0, %v2094
          %v2096 = vpop.f32.mrb[0].mxu0
          %v2097 = vadd.f32 0.0, %v2096
          %v2098 = vpop.f32.mrb[0].mxu0
          %v2099 = vadd.f32 0.0, %v2098
          %2100 = vmatprep.mubr.bf16.mxu0 0
          %2101 = vmatmul.mubr.bf16.gmra.mrb[0].mxu0 %v1529
          %v2102 = vpop.f32.mrb[0].mxu0
          %v2103 = vadd.f32 0.0, %v2102
          %v2104 = vpop.f32.mrb[0].mxu0
          %v2105 = vadd.f32 0.0, %v2104
          %v2106 = vpop.f32.mrb[0].mxu0
          %v2107 = vadd.f32 0.0, %v2106
          %v2108 = vpop.f32.mrb[0].mxu0
          %v2109 = vadd.f32 0.0, %v2108
          %2110 = vmatprep.mubr.bf16.mxu0 0
          %2111 = vmatmul.mubr.bf16.gmra.mrb[0].mxu0 %v1532
          %v2112 = vpop.f32.mrb[0].mxu0
          %v2113 = vadd.f32 0.0, %v2112
          %v2114 = vpop.f32.mrb[0].mxu0
          %v2115 = vadd.f32 0.0, %v2114
          %v2116 = vpop.f32.mrb[0].mxu0
          %v2117 = vadd.f32 0.0, %v2116
          %v2118 = vpop.f32.mrb[0].mxu0
          %v2119 = vadd.f32 0.0, %v2118
          %2120 = vmatprep.mubr.bf16.mxu0 0
          %2121 = vmatmul.mubr.bf16.gmra.mrb[0].mxu0 %v1535
          %v2122 = vpop.f32.mrb[0].mxu0
          %v2123 = vadd.f32 0.0, %v2122
          %v2124 = vpop.f32.mrb[0].mxu0
          %v2125 = vadd.f32 0.0, %v2124
          %v2126 = vpop.f32.mrb[0].mxu0
          %v2127 = vadd.f32 0.0, %v2126
          %v2128 = vpop.f32.mrb[0].mxu0
          %v2129 = vadd.f32 0.0, %v2128
          %2130 = vmatprep.mubr.bf16.mxu0 0
          %2131 = vmatmul.mubr.bf16.gmra.mrb[0].mxu0 %v1538
          %v2132 = vpop.f32.mrb[0].mxu0
          %v2133 = vadd.f32 0.0, %v2132
          %v2134 = vpop.f32.mrb[0].mxu0
          %v2135 = vadd.f32 0.0, %v2134
          %v2136 = vpop.f32.mrb[0].mxu0
          %v2137 = vadd.f32 0.0, %v2136
          %v2138 = vpop.f32.mrb[0].mxu0
          %v2139 = vadd.f32 0.0, %v2138
          %2140 = vmatprep.mubr.bf16.mxu0 0
          %2141 = vmatmul.mubr.bf16.gmra.mrb[0].mxu0 %v1541
          %v2142 = vpop.f32.mrb[0].mxu0
          %v2143 = vadd.f32 0.0, %v2142
          %v2144 = vpop.f32.mrb[0].mxu0
          %v2145 = vadd.f32 0.0, %v2144
          %v2146 = vpop.f32.mrb[0].mxu0
          %v2147 = vadd.f32 0.0, %v2146
          %v2148 = vpop.f32.mrb[0].mxu0
          %v2149 = vadd.f32 0.0, %v2148
          %2150 = vmatprep.mubr.bf16.mxu0 0
          %2151 = vmatmul.mubr.bf16.gmra.mrb[0].mxu0 %v1544
          %v2152 = vpop.f32.mrb[0].mxu0
          %v2153 = vadd.f32 0.0, %v2152
          %v2154 = vpop.f32.mrb[0].mxu0
          %v2155 = vadd.f32 0.0, %v2154
          %v2156 = vpop.f32.mrb[0].mxu0
          %v2157 = vadd.f32 0.0, %v2156
          %v2158 = vpop.f32.mrb[0].mxu0
          %v2159 = vadd.f32 0.0, %v2158
          %2160 = vmatprep.mubr.bf16.mxu0 0
          %2161 = vmatmul.mubr.bf16.gmra.mrb[0].mxu0 %v1547
          %v2162 = vpop.f32.mrb[0].mxu0
          %v2163 = vadd.f32 0.0, %v2162
          %v2164 = vpop.f32.mrb[0].mxu0
          %v2165 = vadd.f32 0.0, %v2164
          %v2166 = vpop.f32.mrb[0].mxu0
          %v2167 = vadd.f32 0.0, %v2166
          %v2168 = vpop.f32.mrb[0].mxu0
          %v2169 = vadd.f32 0.0, %v2168
          %2170 = vmatprep.mubr.bf16.mxu0 0
          %2171 = vmatmul.mubr.bf16.gmra.mrb[0].mxu0 %v1550
          %v2172 = vpop.f32.mrb[0].mxu0
          %v2173 = vadd.f32 0.0, %v2172
          %v2174 = vpop.f32.mrb[0].mxu0
          %v2175 = vadd.f32 0.0, %v2174
          %v2176 = vpop.f32.mrb[0].mxu0
          %v2177 = vadd.f32 0.0, %v2176
          %v2178 = vpop.f32.mrb[0].mxu0
          %v2179 = vadd.f32 0.0, %v2178
          %2180 = vmatprep.mubr.bf16.mxu0 0
          %2181 = vmatmul.mubr.bf16.gmra.mrb[0].mxu0 %v1553
          %v2182 = vpop.f32.mrb[0].mxu0
          %v2183 = vadd.f32 0.0, %v2182
          %v2184 = vpop.f32.mrb[0].mxu0
          %v2185 = vadd.f32 0.0, %v2184
          %v2186 = vpop.f32.mrb[0].mxu0
          %v2187 = vadd.f32 0.0, %v2186
          %v2188 = vpop.f32.mrb[0].mxu0
          %v2189 = vadd.f32 0.0, %v2188
          %2190 = vmatprep.mubr.bf16.mxu0 0
          %2191 = vmatmul.mubr.bf16.gmra.mrb[0].mxu0 %v1556
          %v2192 = vpop.f32.mrb[0].mxu0
          %v2193 = vadd.f32 0.0, %v2192
          %v2194 = vpop.f32.mrb[0].mxu0
          %v2195 = vadd.f32 0.0, %v2194
          %v2196 = vpop.f32.mrb[0].mxu0
          %v2197 = vadd.f32 0.0, %v2196
          %v2198 = vpop.f32.mrb[0].mxu0
          %v2199 = vadd.f32 0.0, %v2198
          %2200 = vmatprep.mubr.bf16.mxu0 0
          %2201 = vmatmul.mubr.bf16.gmra.mrb[0].mxu0 %v1559
          %v2202 = vpop.f32.mrb[0].mxu0
          %v2203 = vadd.f32 0.0, %v2202
          %v2204 = vpop.f32.mrb[0].mxu0
          %v2205 = vadd.f32 0.0, %v2204
          %v2206 = vpop.f32.mrb[0].mxu0
          %v2207 = vadd.f32 0.0, %v2206
          %v2208 = vpop.f32.mrb[0].mxu0
          %v2209 = vadd.f32 0.0, %v2208
          %2210 = vmatprep.mubr.bf16.mxu0 0
          %2211 = vmatmul.mubr.bf16.gmra.mrb[0].mxu0 %v1562
          %v2212 = vpop.f32.mrb[0].mxu0
          %v2213 = vadd.f32 0.0, %v2212
          %v2214 = vpop.f32.mrb[0].mxu0
          %v2215 = vadd.f32 0.0, %v2214
          %v2216 = vpop.f32.mrb[0].mxu0
          %v2217 = vadd.f32 0.0, %v2216
          %v2218 = vpop.f32.mrb[0].mxu0
          %v2219 = vadd.f32 0.0, %v2218
          %2220 = vmatprep.mubr.bf16.mxu0 0
          %2221 = vmatmul.mubr.bf16.gmra.mrb[0].mxu0 %v1565
          %v2222 = vpop.f32.mrb[0].mxu0
          %v2223 = vadd.f32 0.0, %v2222
          %v2224 = vpop.f32.mrb[0].mxu0
          %v2225 = vadd.f32 0.0, %v2224
          %v2226 = vpop.f32.mrb[0].mxu0
          %v2227 = vadd.f32 0.0, %v2226
          %v2228 = vpop.f32.mrb[0].mxu0
          %v2229 = vadd.f32 0.0, %v2228
          %2230 = vmatprep.mubr.bf16.mxu0 0
          %2231 = vmatmul.mubr.bf16.gmra.mrb[0].mxu0 %v1568
          %v2232 = vpop.f32.mrb[0].mxu0
          %v2233 = vadd.f32 0.0, %v2232
          %v2234 = vpop.f32.mrb[0].mxu0
          %v2235 = vadd.f32 0.0, %v2234
          %v2236 = vpop.f32.mrb[0].mxu0
          %v2237 = vadd.f32 0.0, %v2236
          %v2238 = vpop.f32.mrb[0].mxu0
          %v2239 = vadd.f32 0.0, %v2238
          %2240 = vmatprep.mubr.bf16.mxu0 0
          %2241 = vmatmul.mubr.bf16.gmra.mrb[0].mxu0 %v1571
          %v2242 = vpop.f32.mrb[0].mxu0
          %v2243 = vadd.f32 0.0, %v2242
          %v2244 = vpop.f32.mrb[0].mxu0
          %v2245 = vadd.f32 0.0, %v2244
          %v2246 = vpop.f32.mrb[0].mxu0
          %v2247 = vadd.f32 0.0, %v2246
          %v2248 = vpop.f32.mrb[0].mxu0
          %v2249 = vadd.f32 0.0, %v2248
          %2250 = vmatprep.mubr.bf16.mxu0 0
          %2251 = vmatmul.mubr.bf16.gmra.mrb[0].mxu0 %v1574
          %v2252 = vpop.f32.mrb[0].mxu0
          %v2253 = vadd.f32 0.0, %v2252
          %v2254 = vpop.f32.mrb[0].mxu0
          %v2255 = vadd.f32 0.0, %v2254
          %v2256 = vpop.f32.mrb[0].mxu0
          %v2257 = vadd.f32 0.0, %v2256
          %v2258 = vpop.f32.mrb[0].mxu0
          %v2259 = vadd.f32 0.0, %v2258
          %2260 = vmatprep.mubr.bf16.mxu0 0
          %2261 = vmatmul.mubr.bf16.gmra.mrb[0].mxu0 %v1577
          %v2262 = vpop.f32.mrb[0].mxu0
          %v2263 = vadd.f32 0.0, %v2262
          %v2264 = vpop.f32.mrb[0].mxu0
          %v2265 = vadd.f32 0.0, %v2264
          %v2266 = vpop.f32.mrb[0].mxu0
          %v2267 = vadd.f32 0.0, %v2266
          %v2268 = vpop.f32.mrb[0].mxu0
          %v2269 = vadd.f32 0.0, %v2268
          %2270 = vmatprep.mubr.bf16.mxu0 0
          %2271 = vmatmul.mubr.bf16.gmra.mrb[0].mxu0 %v1580
          %v2272 = vpop.f32.mrb[0].mxu0
          %v2273 = vadd.f32 0.0, %v2272
          %v2274 = vpop.f32.mrb[0].mxu0
          %v2275 = vadd.f32 0.0, %v2274
          %v2276 = vpop.f32.mrb[0].mxu0
          %v2277 = vadd.f32 0.0, %v2276
          %v2278 = vpop.f32.mrb[0].mxu0
          %v2279 = vadd.f32 0.0, %v2278
          %2280 = vmatprep.mubr.bf16.mxu0 0
          %2281 = vmatmul.mubr.bf16.gmra.mrb[0].mxu0 %v1583
          %v2282 = vpop.f32.mrb[0].mxu0
          %v2283 = vadd.f32 0.0, %v2282
          %v2284 = vpop.f32.mrb[0].mxu0
          %v2285 = vadd.f32 0.0, %v2284
          %v2286 = vpop.f32.mrb[0].mxu0
          %v2287 = vadd.f32 0.0, %v2286
          %v2288 = vpop.f32.mrb[0].mxu0
          %v2289 = vadd.f32 0.0, %v2288
          %2290 = vdwg.mxu0
          %v2291 = vmax.f32 %v1620, %v1624
          %v2292 = vmax.f32 %v2291, %v1630
          %v2293 = vmax.f32 %v2292, %v1634
          %v2294 = vmax.f32 %v2293, %v1640
          %v2295 = vmax.f32 %v2294, %v1644
          %v2296 = vmax.f32 %v2295, %v1650
          %v2297 = vmax.f32 %v2296, %v1654
          %v2298 = vmax.f32 %v2297, %v1660
          %v2299 = vmax.f32 %v2298, %v1664
          %v2300 = vmax.f32 %v2299, %v1670
          %v2301 = vmax.f32 %v2300, %v1674
          %v2302 = vmax.f32 %v2301, %v1680
          %v2303 = vmax.f32 %v2302, %v1684
          %v2304 = vmax.f32 %v2303, %v1690
          %v2305 = vmax.f32 %v2304, %v1694
          %v2306 = vmax.f32 %v2305, %v1700
          %v2307 = vmax.f32 %v2306, %v1704
          %v2308 = vmax.f32 %v2307, %v1710
          %v2309 = vmax.f32 %v2308, %v1714
          %v2310 = vmax.f32 %v2309, %v1720
          %v2311 = vmax.f32 %v2310, %v1724
          %v2312 = vmax.f32 %v2311, %v1730
          %v2313 = vmax.f32 %v2312, %v1734
          %v2314 = vmax.f32 %v2313, %v1740
          %v2315 = vmax.f32 %v2314, %v1744
          %v2316 = vmax.f32 %v2315, %v1750
          %v2317 = vmax.f32 %v2316, %v1754
          %v2318 = vmax.f32 %v2317, %v1760
          %v2319 = vmax.f32 %v2318, %v1764
          %v2320 = vmax.f32 %v2319, %v1770
          %v2321 = vmax.f32 %v2320, %v1774
          %v2322 = vmax.f32 %v2321, %v1780
          %v2323 = vmax.f32 %v2322, %v1784
          %v2324 = vmax.f32 %v2323, %v1790
          %v2325 = vmax.f32 %v2324, %v1794
          %v2326 = vmax.f32 %v2325, %v1800
          %v2327 = vmax.f32 %v2326, %v1804
          %v2328 = vmax.f32 %v2327, %v1810
          %v2329 = vmax.f32 %v2328, %v1814
          %v2330 = vmax.f32 %v2329, %v1820
          %v2331 = vmax.f32 %v2330, %v1824
          %v2332 = vmax.f32 %v2331, %v1830
          %v2333 = vmax.f32 %v2332, %v1834
          %v2334 = vmax.f32 %v2333, %v1840
          %v2335 = vmax.f32 %v2334, %v1844
          %v2336 = vmax.f32 %v2335, %v1850
          %v2337 = vmax.f32 %v2336, %v1854
          %v2338 = vmax.f32 %v2337, %v1860
          %v2339 = vmax.f32 %v2338, %v1864
          %v2340 = vmax.f32 %v2339, %v1870
          %v2341 = vmax.f32 %v2340, %v1874
          %v2342 = vmax.f32 %v2341, %v1880
          %v2343 = vmax.f32 %v2342, %v1884
          %v2344 = vmax.f32 %v2343, %v1890
          %v2345 = vmax.f32 %v2344, %v1894
          %v2346 = vmax.f32 %v2345, %v1900
          %v2347 = vmax.f32 %v2346, %v1904
          %v2348 = vmax.f32 %v2347, %v1910
          %v2349 = vmax.f32 %v2348, %v1914
          %v2350 = vmax.f32 %v2349, %v1920
          %v2351 = vmax.f32 %v2350, %v1924
          %v2352 = vmax.f32 %v2351, %v1930
          %v2353 = vmax.f32 %v2352, %v1934
          %v2354 = vrot.slane %v2353, 4
          %v2355 = vmax.f32 %v2353, %v2354
          %v2356 = vrot.slane %v2355, 2
          %v2357 = vmax.f32 %v2355, %v2356
          %v2358 = vrot.slane %v2357, 1
          %v2359 = vmax.f32 %v2357, %v2358
          %v2360 = vmax.f32 %v1622, %v1626
          %v2361 = vmax.f32 %v2360, %v1632
          %v2362 = vmax.f32 %v2361, %v1636
          %v2363 = vmax.f32 %v2362, %v1642
          %v2364 = vmax.f32 %v2363, %v1646
          %v2365 = vmax.f32 %v2364, %v1652
          %v2366 = vmax.f32 %v2365, %v1656
          %v2367 = vmax.f32 %v2366, %v1662
          %v2368 = vmax.f32 %v2367, %v1666
          %v2369 = vmax.f32 %v2368, %v1672
          %v2370 = vmax.f32 %v2369, %v1676
          %v2371 = vmax.f32 %v2370, %v1682
          %v2372 = vmax.f32 %v2371, %v1686
          %v2373 = vmax.f32 %v2372, %v1692
          %v2374 = vmax.f32 %v2373, %v1696
          %v2375 = vmax.f32 %v2374, %v1702
          %v2376 = vmax.f32 %v2375, %v1706
          %v2377 = vmax.f32 %v2376, %v1712
          %v2378 = vmax.f32 %v2377, %v1716
          %v2379 = vmax.f32 %v2378, %v1722
          %v2380 = vmax.f32 %v2379, %v1726
          %v2381 = vmax.f32 %v2380, %v1732
          %v2382 = vmax.f32 %v2381, %v1736
          %v2383 = vmax.f32 %v2382, %v1742
          %v2384 = vmax.f32 %v2383, %v1746
          %v2385 = vmax.f32 %v2384, %v1752
          %v2386 = vmax.f32 %v2385, %v1756
          %v2387 = vmax.f32 %v2386, %v1762
          %v2388 = vmax.f32 %v2387, %v1766
          %v2389 = vmax.f32 %v2388, %v1772
          %v2390 = vmax.f32 %v2389, %v1776
          %v2391 = vmax.f32 %v2390, %v1782
          %v2392 = vmax.f32 %v2391, %v1786
          %v2393 = vmax.f32 %v2392, %v1792
          %v2394 = vmax.f32 %v2393, %v1796
          %v2395 = vmax.f32 %v2394, %v1802
          %v2396 = vmax.f32 %v2395, %v1806
          %v2397 = vmax.f32 %v2396, %v1812
          %v2398 = vmax.f32 %v2397, %v1816
          %v2399 = vmax.f32 %v2398, %v1822
          %v2400 = vmax.f32 %v2399, %v1826
          %v2401 = vmax.f32 %v2400, %v1832
          %v2402 = vmax.f32 %v2401, %v1836
          %v2403 = vmax.f32 %v2402, %v1842
          %v2404 = vmax.f32 %v2403, %v1846
          %v2405 = vmax.f32 %v2404, %v1852
          %v2406 = vmax.f32 %v2405, %v1856
          %v2407 = vmax.f32 %v2406, %v1862
          %v2408 = vmax.f32 %v2407, %v1866
          %v2409 = vmax.f32 %v2408, %v1872
          %v2410 = vmax.f32 %v2409, %v1876
          %v2411 = vmax.f32 %v2410, %v1882
          %v2412 = vmax.f32 %v2411, %v1886
          %v2413 = vmax.f32 %v2412, %v1892
          %v2414 = vmax.f32 %v2413, %v1896
          %v2415 = vmax.f32 %v2414, %v1902
          %v2416 = vmax.f32 %v2415, %v1906
          %v2417 = vmax.f32 %v2416, %v1912
          %v2418 = vmax.f32 %v2417, %v1916
          %v2419 = vmax.f32 %v2418, %v1922
          %v2420 = vmax.f32 %v2419, %v1926
          %v2421 = vmax.f32 %v2420, %v1932
          %v2422 = vmax.f32 %v2421, %v1936
          %v2423 = vrot.slane %v2422, 4
          %v2424 = vmax.f32 %v2422, %v2423
          %v2425 = vrot.slane %v2424, 2
          %v2426 = vmax.f32 %v2424, %v2425
          %v2427 = vrot.slane %v2426, 1
          %v2428 = vmax.f32 %v2426, %v2427
          %v2429 = vmax.f32 %v1973, %v1977
          %v2430 = vmax.f32 %v2429, %v1983
          %v2431 = vmax.f32 %v2430, %v1987
          %v2432 = vmax.f32 %v2431, %v1993
          %v2433 = vmax.f32 %v2432, %v1997
          %v2434 = vmax.f32 %v2433, %v2003
          %v2435 = vmax.f32 %v2434, %v2007
          %v2436 = vmax.f32 %v2435, %v2013
          %v2437 = vmax.f32 %v2436, %v2017
          %v2438 = vmax.f32 %v2437, %v2023
          %v2439 = vmax.f32 %v2438, %v2027
          %v2440 = vmax.f32 %v2439, %v2033
          %v2441 = vmax.f32 %v2440, %v2037
          %v2442 = vmax.f32 %v2441, %v2043
          %v2443 = vmax.f32 %v2442, %v2047
          %v2444 = vmax.f32 %v2443, %v2053
          %v2445 = vmax.f32 %v2444, %v2057
          %v2446 = vmax.f32 %v2445, %v2063
          %v2447 = vmax.f32 %v2446, %v2067
          %v2448 = vmax.f32 %v2447, %v2073
          %v2449 = vmax.f32 %v2448, %v2077
          %v2450 = vmax.f32 %v2449, %v2083
          %v2451 = vmax.f32 %v2450, %v2087
          %v2452 = vmax.f32 %v2451, %v2093
          %v2453 = vmax.f32 %v2452, %v2097
          %v2454 = vmax.f32 %v2453, %v2103
          %v2455 = vmax.f32 %v2454, %v2107
          %v2456 = vmax.f32 %v2455, %v2113
          %v2457 = vmax.f32 %v2456, %v2117
          %v2458 = vmax.f32 %v2457, %v2123
          %v2459 = vmax.f32 %v2458, %v2127
          %v2460 = vmax.f32 %v2459, %v2133
          %v2461 = vmax.f32 %v2460, %v2137
          %v2462 = vmax.f32 %v2461, %v2143
          %v2463 = vmax.f32 %v2462, %v2147
          %v2464 = vmax.f32 %v2463, %v2153
          %v2465 = vmax.f32 %v2464, %v2157
          %v2466 = vmax.f32 %v2465, %v2163
          %v2467 = vmax.f32 %v2466, %v2167
          %v2468 = vmax.f32 %v2467, %v2173
          %v2469 = vmax.f32 %v2468, %v2177
          %v2470 = vmax.f32 %v2469, %v2183
          %v2471 = vmax.f32 %v2470, %v2187
          %v2472 = vmax.f32 %v2471, %v2193
          %v2473 = vmax.f32 %v2472, %v2197
          %v2474 = vmax.f32 %v2473, %v2203
          %v2475 = vmax.f32 %v2474, %v2207
          %v2476 = vmax.f32 %v2475, %v2213
          %v2477 = vmax.f32 %v2476, %v2217
          %v2478 = vmax.f32 %v2477, %v2223
          %v2479 = vmax.f32 %v2478, %v2227
          %v2480 = vmax.f32 %v2479, %v2233
          %v2481 = vmax.f32 %v2480, %v2237
          %v2482 = vmax.f32 %v2481, %v2243
          %v2483 = vmax.f32 %v2482, %v2247
          %v2484 = vmax.f32 %v2483, %v2253
          %v2485 = vmax.f32 %v2484, %v2257
          %v2486 = vmax.f32 %v2485, %v2263
          %v2487 = vmax.f32 %v2486, %v2267
          %v2488 = vmax.f32 %v2487, %v2273
          %v2489 = vmax.f32 %v2488, %v2277
          %v2490 = vmax.f32 %v2489, %v2283
          %v2491 = vmax.f32 %v2490, %v2287
          %v2492 = vrot.slane %v2491, 4
          %v2493 = vmax.f32 %v2491, %v2492
          %v2494 = vrot.slane %v2493, 2
          %v2495 = vmax.f32 %v2493, %v2494
          %v2496 = vrot.slane %v2495, 1
          %v2497 = vmax.f32 %v2495, %v2496
          %v2498 = vmax.f32 %v1975, %v1979
          %v2499 = vmax.f32 %v2498, %v1985
          %v2500 = vmax.f32 %v2499, %v1989
          %v2501 = vmax.f32 %v2500, %v1995
          %v2502 = vmax.f32 %v2501, %v1999
          %v2503 = vmax.f32 %v2502, %v2005
          %v2504 = vmax.f32 %v2503, %v2009
          %v2505 = vmax.f32 %v2504, %v2015
          %v2506 = vmax.f32 %v2505, %v2019
          %v2507 = vmax.f32 %v2506, %v2025
          %v2508 = vmax.f32 %v2507, %v2029
          %v2509 = vmax.f32 %v2508, %v2035
          %v2510 = vmax.f32 %v2509, %v2039
          %v2511 = vmax.f32 %v2510, %v2045
          %v2512 = vmax.f32 %v2511, %v2049
          %v2513 = vmax.f32 %v2512, %v2055
          %v2514 = vmax.f32 %v2513, %v2059
          %v2515 = vmax.f32 %v2514, %v2065
          %v2516 = vmax.f32 %v2515, %v2069
          %v2517 = vmax.f32 %v2516, %v2075
          %v2518 = vmax.f32 %v2517, %v2079
          %v2519 = vmax.f32 %v2518, %v2085
          %v2520 = vmax.f32 %v2519, %v2089
          %v2521 = vmax.f32 %v2520, %v2095
          %v2522 = vmax.f32 %v2521, %v2099
          %v2523 = vmax.f32 %v2522, %v2105
          %v2524 = vmax.f32 %v2523, %v2109
          %v2525 = vmax.f32 %v2524, %v2115
          %v2526 = vmax.f32 %v2525, %v2119
          %v2527 = vmax.f32 %v2526, %v2125
          %v2528 = vmax.f32 %v2527, %v2129
          %v2529 = vmax.f32 %v2528, %v2135
          %v2530 = vmax.f32 %v2529, %v2139
          %v2531 = vmax.f32 %v2530, %v2145
          %v2532 = vmax.f32 %v2531, %v2149
          %v2533 = vmax.f32 %v2532, %v2155
          %v2534 = vmax.f32 %v2533, %v2159
          %v2535 = vmax.f32 %v2534, %v2165
          %v2536 = vmax.f32 %v2535, %v2169
          %v2537 = vmax.f32 %v2536, %v2175
          %v2538 = vmax.f32 %v2537, %v2179
          %v2539 = vmax.f32 %v2538, %v2185
          %v2540 = vmax.f32 %v2539, %v2189
          %v2541 = vmax.f32 %v2540, %v2195
          %v2542 = vmax.f32 %v2541, %v2199
          %v2543 = vmax.f32 %v2542, %v2205
          %v2544 = vmax.f32 %v2543, %v2209
          %v2545 = vmax.f32 %v2544, %v2215
          %v2546 = vmax.f32 %v2545, %v2219
          %v2547 = vmax.f32 %v2546, %v2225
          %v2548 = vmax.f32 %v2547, %v2229
          %v2549 = vmax.f32 %v2548, %v2235
          %v2550 = vmax.f32 %v2549, %v2239
          %v2551 = vmax.f32 %v2550, %v2245
          %v2552 = vmax.f32 %v2551, %v2249
          %v2553 = vmax.f32 %v2552, %v2255
          %v2554 = vmax.f32 %v2553, %v2259
          %v2555 = vmax.f32 %v2554, %v2265
          %v2556 = vmax.f32 %v2555, %v2269
          %v2557 = vmax.f32 %v2556, %v2275
          %v2558 = vmax.f32 %v2557, %v2279
          %v2559 = vmax.f32 %v2558, %v2285
          %v2560 = vmax.f32 %v2559, %v2289
          %v2561 = vrot.slane %v2560, 4
          %v2562 = vmax.f32 %v2560, %v2561
          %v2563 = vrot.slane %v2562, 2
          %v2564 = vmax.f32 %v2562, %v2563
          %v2565 = vrot.slane %v2564, 1
          %v2566 = vmax.f32 %v2564, %v2565
          %v2567 = vsub.f32 %v1620, %v2359
          %v2568 = vsub.f32 %v1622, %v2428
          %v2569 = vsub.f32 %v1973, %v2497
          %v2570 = vsub.f32 %v1975, %v2566
          %v2571 = vsub.f32 %v1624, %v2359
          %v2572 = vsub.f32 %v1626, %v2428
          %v2573 = vsub.f32 %v1977, %v2497
          %v2574 = vsub.f32 %v1979, %v2566
          %v2575 = vsub.f32 %v1630, %v2359
          %v2576 = vsub.f32 %v1632, %v2428
          %v2577 = vsub.f32 %v1983, %v2497
          %v2578 = vsub.f32 %v1985, %v2566
          %v2579 = vsub.f32 %v1634, %v2359
          %v2580 = vsub.f32 %v1636, %v2428
          %v2581 = vsub.f32 %v1987, %v2497
          %v2582 = vsub.f32 %v1989, %v2566
          %v2583 = vsub.f32 %v1640, %v2359
          %v2584 = vsub.f32 %v1642, %v2428
          %v2585 = vsub.f32 %v1993, %v2497
          %v2586 = vsub.f32 %v1995, %v2566
          %v2587 = vsub.f32 %v1644, %v2359
          %v2588 = vsub.f32 %v1646, %v2428
          %v2589 = vsub.f32 %v1997, %v2497
          %v2590 = vsub.f32 %v1999, %v2566
          %v2591 = vsub.f32 %v1650, %v2359
          %v2592 = vsub.f32 %v1652, %v2428
          %v2593 = vsub.f32 %v2003, %v2497
          %v2594 = vsub.f32 %v2005, %v2566
          %v2595 = vsub.f32 %v1654, %v2359
          %v2596 = vsub.f32 %v1656, %v2428
          %v2597 = vsub.f32 %v2007, %v2497
          %v2598 = vsub.f32 %v2009, %v2566
          %v2599 = vsub.f32 %v1660, %v2359
          %v2600 = vsub.f32 %v1662, %v2428
          %v2601 = vsub.f32 %v2013, %v2497
          %v2602 = vsub.f32 %v2015, %v2566
          %v2603 = vsub.f32 %v1664, %v2359
          %v2604 = vsub.f32 %v1666, %v2428
          %v2605 = vsub.f32 %v2017, %v2497
          %v2606 = vsub.f32 %v2019, %v2566
          %v2607 = vsub.f32 %v1670, %v2359
          %v2608 = vsub.f32 %v1672, %v2428
          %v2609 = vsub.f32 %v2023, %v2497
          %v2610 = vsub.f32 %v2025, %v2566
          %v2611 = vsub.f32 %v1674, %v2359
          %v2612 = vsub.f32 %v1676, %v2428
          %v2613 = vsub.f32 %v2027, %v2497
          %v2614 = vsub.f32 %v2029, %v2566
          %v2615 = vsub.f32 %v1680, %v2359
          %v2616 = vsub.f32 %v1682, %v2428
          %v2617 = vsub.f32 %v2033, %v2497
          %v2618 = vsub.f32 %v2035, %v2566
          %v2619 = vsub.f32 %v1684, %v2359
          %v2620 = vsub.f32 %v1686, %v2428
          %v2621 = vsub.f32 %v2037, %v2497
          %v2622 = vsub.f32 %v2039, %v2566
          %v2623 = vsub.f32 %v1690, %v2359
          %v2624 = vsub.f32 %v1692, %v2428
          %v2625 = vsub.f32 %v2043, %v2497
          %v2626 = vsub.f32 %v2045, %v2566
          %v2627 = vsub.f32 %v1694, %v2359
          %v2628 = vsub.f32 %v1696, %v2428
          %v2629 = vsub.f32 %v2047, %v2497
          %v2630 = vsub.f32 %v2049, %v2566
          %v2631 = vsub.f32 %v1700, %v2359
          %v2632 = vsub.f32 %v1702, %v2428
          %v2633 = vsub.f32 %v2053, %v2497
          %v2634 = vsub.f32 %v2055, %v2566
          %v2635 = vsub.f32 %v1704, %v2359
          %v2636 = vsub.f32 %v1706, %v2428
          %v2637 = vsub.f32 %v2057, %v2497
          %v2638 = vsub.f32 %v2059, %v2566
          %v2639 = vsub.f32 %v1710, %v2359
          %v2640 = vsub.f32 %v1712, %v2428
          %v2641 = vsub.f32 %v2063, %v2497
          %v2642 = vsub.f32 %v2065, %v2566
          %v2643 = vsub.f32 %v1714, %v2359
          %v2644 = vsub.f32 %v1716, %v2428
          %v2645 = vsub.f32 %v2067, %v2497
          %v2646 = vsub.f32 %v2069, %v2566
          %v2647 = vsub.f32 %v1720, %v2359
          %v2648 = vsub.f32 %v1722, %v2428
          %v2649 = vsub.f32 %v2073, %v2497
          %v2650 = vsub.f32 %v2075, %v2566
          %v2651 = vsub.f32 %v1724, %v2359
          %v2652 = vsub.f32 %v1726, %v2428
          %v2653 = vsub.f32 %v2077, %v2497
          %v2654 = vsub.f32 %v2079, %v2566
          %v2655 = vsub.f32 %v1730, %v2359
          %v2656 = vsub.f32 %v1732, %v2428
          %v2657 = vsub.f32 %v2083, %v2497
          %v2658 = vsub.f32 %v2085, %v2566
          %v2659 = vsub.f32 %v1734, %v2359
          %v2660 = vsub.f32 %v1736, %v2428
          %v2661 = vsub.f32 %v2087, %v2497
          %v2662 = vsub.f32 %v2089, %v2566
          %v2663 = vsub.f32 %v1740, %v2359
          %v2664 = vsub.f32 %v1742, %v2428
          %v2665 = vsub.f32 %v2093, %v2497
          %v2666 = vsub.f32 %v2095, %v2566
          %v2667 = vsub.f32 %v1744, %v2359
          %v2668 = vsub.f32 %v1746, %v2428
          %v2669 = vsub.f32 %v2097, %v2497
          %v2670 = vsub.f32 %v2099, %v2566
          %v2671 = vsub.f32 %v1750, %v2359
          %v2672 = vsub.f32 %v1752, %v2428
          %v2673 = vsub.f32 %v2103, %v2497
          %v2674 = vsub.f32 %v2105, %v2566
          %v2675 = vsub.f32 %v1754, %v2359
          %v2676 = vsub.f32 %v1756, %v2428
          %v2677 = vsub.f32 %v2107, %v2497
          %v2678 = vsub.f32 %v2109, %v2566
          %v2679 = vsub.f32 %v1760, %v2359
          %v2680 = vsub.f32 %v1762, %v2428
          %v2681 = vsub.f32 %v2113, %v2497
          %v2682 = vsub.f32 %v2115, %v2566
          %v2683 = vsub.f32 %v1764, %v2359
          %v2684 = vsub.f32 %v1766, %v2428
          %v2685 = vsub.f32 %v2117, %v2497
          %v2686 = vsub.f32 %v2119, %v2566
          %v2687 = vsub.f32 %v1770, %v2359
          %v2688 = vsub.f32 %v1772, %v2428
          %v2689 = vsub.f32 %v2123, %v2497
          %v2690 = vsub.f32 %v2125, %v2566
          %v2691 = vsub.f32 %v1774, %v2359
          %v2692 = vsub.f32 %v1776, %v2428
          %v2693 = vsub.f32 %v2127, %v2497
          %v2694 = vsub.f32 %v2129, %v2566
          %v2695 = vsub.f32 %v1780, %v2359
          %v2696 = vsub.f32 %v1782, %v2428
          %v2697 = vsub.f32 %v2133, %v2497
          %v2698 = vsub.f32 %v2135, %v2566
          %v2699 = vsub.f32 %v1784, %v2359
          %v2700 = vsub.f32 %v1786, %v2428
          %v2701 = vsub.f32 %v2137, %v2497
          %v2702 = vsub.f32 %v2139, %v2566
          %v2703 = vsub.f32 %v1790, %v2359
          %v2704 = vsub.f32 %v1792, %v2428
          %v2705 = vsub.f32 %v2143, %v2497
          %v2706 = vsub.f32 %v2145, %v2566
          %v2707 = vsub.f32 %v1794, %v2359
          %v2708 = vsub.f32 %v1796, %v2428
          %v2709 = vsub.f32 %v2147, %v2497
          %v2710 = vsub.f32 %v2149, %v2566
          %v2711 = vsub.f32 %v1800, %v2359
          %v2712 = vsub.f32 %v1802, %v2428
          %v2713 = vsub.f32 %v2153, %v2497
          %v2714 = vsub.f32 %v2155, %v2566
          %v2715 = vsub.f32 %v1804, %v2359
          %v2716 = vsub.f32 %v1806, %v2428
          %v2717 = vsub.f32 %v2157, %v2497
          %v2718 = vsub.f32 %v2159, %v2566
          %v2719 = vsub.f32 %v1810, %v2359
          %v2720 = vsub.f32 %v1812, %v2428
          %v2721 = vsub.f32 %v2163, %v2497
          %v2722 = vsub.f32 %v2165, %v2566
          %v2723 = vsub.f32 %v1814, %v2359
          %v2724 = vsub.f32 %v1816, %v2428
          %v2725 = vsub.f32 %v2167, %v2497
          %v2726 = vsub.f32 %v2169, %v2566
          %v2727 = vsub.f32 %v1820, %v2359
          %v2728 = vsub.f32 %v1822, %v2428
          %v2729 = vsub.f32 %v2173, %v2497
          %v2730 = vsub.f32 %v2175, %v2566
          %v2731 = vsub.f32 %v1824, %v2359
          %v2732 = vsub.f32 %v1826, %v2428
          %v2733 = vsub.f32 %v2177, %v2497
          %v2734 = vsub.f32 %v2179, %v2566
          %v2735 = vsub.f32 %v1830, %v2359
          %v2736 = vsub.f32 %v1832, %v2428
          %v2737 = vsub.f32 %v2183, %v2497
          %v2738 = vsub.f32 %v2185, %v2566
          %v2739 = vsub.f32 %v1834, %v2359
          %v2740 = vsub.f32 %v1836, %v2428
          %v2741 = vsub.f32 %v2187, %v2497
          %v2742 = vsub.f32 %v2189, %v2566
          %v2743 = vsub.f32 %v1840, %v2359
          %v2744 = vsub.f32 %v1842, %v2428
          %v2745 = vsub.f32 %v2193, %v2497
          %v2746 = vsub.f32 %v2195, %v2566
          %v2747 = vsub.f32 %v1844, %v2359
          %v2748 = vsub.f32 %v1846, %v2428
          %v2749 = vsub.f32 %v2197, %v2497
          %v2750 = vsub.f32 %v2199, %v2566
          %v2751 = vsub.f32 %v1850, %v2359
          %v2752 = vsub.f32 %v1852, %v2428
          %v2753 = vsub.f32 %v2203, %v2497
          %v2754 = vsub.f32 %v2205, %v2566
          %v2755 = vsub.f32 %v1854, %v2359
          %v2756 = vsub.f32 %v1856, %v2428
          %v2757 = vsub.f32 %v2207, %v2497
          %v2758 = vsub.f32 %v2209, %v2566
          %v2759 = vsub.f32 %v1860, %v2359
          %v2760 = vsub.f32 %v1862, %v2428
          %v2761 = vsub.f32 %v2213, %v2497
          %v2762 = vsub.f32 %v2215, %v2566
          %v2763 = vsub.f32 %v1864, %v2359
          %v2764 = vsub.f32 %v1866, %v2428
          %v2765 = vsub.f32 %v2217, %v2497
          %v2766 = vsub.f32 %v2219, %v2566
          %v2767 = vsub.f32 %v1870, %v2359
          %v2768 = vsub.f32 %v1872, %v2428
          %v2769 = vsub.f32 %v2223, %v2497
          %v2770 = vsub.f32 %v2225, %v2566
          %v2771 = vsub.f32 %v1874, %v2359
          %v2772 = vsub.f32 %v1876, %v2428
          %v2773 = vsub.f32 %v2227, %v2497
          %v2774 = vsub.f32 %v2229, %v2566
          %v2775 = vsub.f32 %v1880, %v2359
          %v2776 = vsub.f32 %v1882, %v2428
          %v2777 = vsub.f32 %v2233, %v2497
          %v2778 = vsub.f32 %v2235, %v2566
          %v2779 = vsub.f32 %v1884, %v2359
          %v2780 = vsub.f32 %v1886, %v2428
          %v2781 = vsub.f32 %v2237, %v2497
          %v2782 = vsub.f32 %v2239, %v2566
          %v2783 = vsub.f32 %v1890, %v2359
          %v2784 = vsub.f32 %v1892, %v2428
          %v2785 = vsub.f32 %v2243, %v2497
          %v2786 = vsub.f32 %v2245, %v2566
          %v2787 = vsub.f32 %v1894, %v2359
          %v2788 = vsub.f32 %v1896, %v2428
          %v2789 = vsub.f32 %v2247, %v2497
          %v2790 = vsub.f32 %v2249, %v2566
          %v2791 = vsub.f32 %v1900, %v2359
          %v2792 = vsub.f32 %v1902, %v2428
          %v2793 = vsub.f32 %v2253, %v2497
          %v2794 = vsub.f32 %v2255, %v2566
          %v2795 = vsub.f32 %v1904, %v2359
          %v2796 = vsub.f32 %v1906, %v2428
          %v2797 = vsub.f32 %v2257, %v2497
          %v2798 = vsub.f32 %v2259, %v2566
          %v2799 = vsub.f32 %v1910, %v2359
          %v2800 = vsub.f32 %v1912, %v2428
          %v2801 = vsub.f32 %v2263, %v2497
          %v2802 = vsub.f32 %v2265, %v2566
          %v2803 = vsub.f32 %v1914, %v2359
          %v2804 = vsub.f32 %v1916, %v2428
          %v2805 = vsub.f32 %v2267, %v2497
          %v2806 = vsub.f32 %v2269, %v2566
          %v2807 = vsub.f32 %v1920, %v2359
          %v2808 = vsub.f32 %v1922, %v2428
          %v2809 = vsub.f32 %v2273, %v2497
          %v2810 = vsub.f32 %v2275, %v2566
          %v2811 = vsub.f32 %v1924, %v2359
          %v2812 = vsub.f32 %v1926, %v2428
          %v2813 = vsub.f32 %v2277, %v2497
          %v2814 = vsub.f32 %v2279, %v2566
          %v2815 = vsub.f32 %v1930, %v2359
          %v2816 = vsub.f32 %v1932, %v2428
          %v2817 = vsub.f32 %v2283, %v2497
          %v2818 = vsub.f32 %v2285, %v2566
          %v2819 = vsub.f32 %v1934, %v2359
          %v2820 = vsub.f32 %v1936, %v2428
          %v2821 = vsub.f32 %v2287, %v2497
          %v2822 = vsub.f32 %v2289, %v2566
          %v2823 = vpack.c.bf16 %v2571, %v2567
          %v2824 = vpack.c.bf16 %v2572, %v2568
          %v2825 = vpack.c.bf16 %v2573, %v2569
          %v2826 = vpack.c.bf16 %v2574, %v2570
          %v2827 = vpack.c.bf16 %v2579, %v2575
          %v2828 = vpack.c.bf16 %v2580, %v2576
          %v2829 = vpack.c.bf16 %v2581, %v2577
          %v2830 = vpack.c.bf16 %v2582, %v2578
          %v2831 = vpack.c.bf16 %v2587, %v2583
          %v2832 = vpack.c.bf16 %v2588, %v2584
          %v2833 = vpack.c.bf16 %v2589, %v2585
          %v2834 = vpack.c.bf16 %v2590, %v2586
          %v2835 = vpack.c.bf16 %v2595, %v2591
          %v2836 = vpack.c.bf16 %v2596, %v2592
          %v2837 = vpack.c.bf16 %v2597, %v2593
          %v2838 = vpack.c.bf16 %v2598, %v2594
          %v2839 = vpack.c.bf16 %v2603, %v2599
          %v2840 = vpack.c.bf16 %v2604, %v2600
          %v2841 = vpack.c.bf16 %v2605, %v2601
          %v2842 = vpack.c.bf16 %v2606, %v2602
          %v2843 = vpack.c.bf16 %v2611, %v2607
          %v2844 = vpack.c.bf16 %v2612, %v2608
          %v2845 = vpack.c.bf16 %v2613, %v2609
          %v2846 = vpack.c.bf16 %v2614, %v2610
          %v2847 = vpack.c.bf16 %v2619, %v2615
          %v2848 = vpack.c.bf16 %v2620, %v2616
          %v2849 = vpack.c.bf16 %v2621, %v2617
          %v2850 = vpack.c.bf16 %v2622, %v2618
          %v2851 = vpack.c.bf16 %v2627, %v2623
          %v2852 = vpack.c.bf16 %v2628, %v2624
          %v2853 = vpack.c.bf16 %v2629, %v2625
          %v2854 = vpack.c.bf16 %v2630, %v2626
          %v2855 = vpack.c.bf16 %v2635, %v2631
          %v2856 = vpack.c.bf16 %v2636, %v2632
          %v2857 = vpack.c.bf16 %v2637, %v2633
          %v2858 = vpack.c.bf16 %v2638, %v2634
          %v2859 = vpack.c.bf16 %v2643, %v2639
          %v2860 = vpack.c.bf16 %v2644, %v2640
          %v2861 = vpack.c.bf16 %v2645, %v2641
          %v2862 = vpack.c.bf16 %v2646, %v2642
          %v2863 = vpack.c.bf16 %v2651, %v2647
          %v2864 = vpack.c.bf16 %v2652, %v2648
          %v2865 = vpack.c.bf16 %v2653, %v2649
          %v2866 = vpack.c.bf16 %v2654, %v2650
          %v2867 = vpack.c.bf16 %v2659, %v2655
          %v2868 = vpack.c.bf16 %v2660, %v2656
          %v2869 = vpack.c.bf16 %v2661, %v2657
          %v2870 = vpack.c.bf16 %v2662, %v2658
          %v2871 = vpack.c.bf16 %v2667, %v2663
          %v2872 = vpack.c.bf16 %v2668, %v2664
          %v2873 = vpack.c.bf16 %v2669, %v2665
          %v2874 = vpack.c.bf16 %v2670, %v2666
          %v2875 = vpack.c.bf16 %v2675, %v2671
          %v2876 = vpack.c.bf16 %v2676, %v2672
          %v2877 = vpack.c.bf16 %v2677, %v2673
          %v2878 = vpack.c.bf16 %v2678, %v2674
          %v2879 = vpack.c.bf16 %v2683, %v2679
          %v2880 = vpack.c.bf16 %v2684, %v2680
          %v2881 = vpack.c.bf16 %v2685, %v2681
          %v2882 = vpack.c.bf16 %v2686, %v2682
          %v2883 = vpack.c.bf16 %v2691, %v2687
          %v2884 = vpack.c.bf16 %v2692, %v2688
          %v2885 = vpack.c.bf16 %v2693, %v2689
          %v2886 = vpack.c.bf16 %v2694, %v2690
          %v2887 = vpack.c.bf16 %v2699, %v2695
          %v2888 = vpack.c.bf16 %v2700, %v2696
          %v2889 = vpack.c.bf16 %v2701, %v2697
          %v2890 = vpack.c.bf16 %v2702, %v2698
          %v2891 = vpack.c.bf16 %v2707, %v2703
          %v2892 = vpack.c.bf16 %v2708, %v2704
          %v2893 = vpack.c.bf16 %v2709, %v2705
          %v2894 = vpack.c.bf16 %v2710, %v2706
          %v2895 = vpack.c.bf16 %v2715, %v2711
          %v2896 = vpack.c.bf16 %v2716, %v2712
          %v2897 = vpack.c.bf16 %v2717, %v2713
          %v2898 = vpack.c.bf16 %v2718, %v2714
          %v2899 = vpack.c.bf16 %v2723, %v2719
          %v2900 = vpack.c.bf16 %v2724, %v2720
          %v2901 = vpack.c.bf16 %v2725, %v2721
          %v2902 = vpack.c.bf16 %v2726, %v2722
          %v2903 = vpack.c.bf16 %v2731, %v2727
          %v2904 = vpack.c.bf16 %v2732, %v2728
          %v2905 = vpack.c.bf16 %v2733, %v2729
          %v2906 = vpack.c.bf16 %v2734, %v2730
          %v2907 = vpack.c.bf16 %v2739, %v2735
          %v2908 = vpack.c.bf16 %v2740, %v2736
          %v2909 = vpack.c.bf16 %v2741, %v2737
          %v2910 = vpack.c.bf16 %v2742, %v2738
          %v2911 = vpack.c.bf16 %v2747, %v2743
          %v2912 = vpack.c.bf16 %v2748, %v2744
          %v2913 = vpack.c.bf16 %v2749, %v2745
          %v2914 = vpack.c.bf16 %v2750, %v2746
          %v2915 = vpack.c.bf16 %v2755, %v2751
          %v2916 = vpack.c.bf16 %v2756, %v2752
          %v2917 = vpack.c.bf16 %v2757, %v2753
          %v2918 = vpack.c.bf16 %v2758, %v2754
          %v2919 = vpack.c.bf16 %v2763, %v2759
          %v2920 = vpack.c.bf16 %v2764, %v2760
          %v2921 = vpack.c.bf16 %v2765, %v2761
          %v2922 = vpack.c.bf16 %v2766, %v2762
          %v2923 = vpack.c.bf16 %v2771, %v2767
          %v2924 = vpack.c.bf16 %v2772, %v2768
          %v2925 = vpack.c.bf16 %v2773, %v2769
          %v2926 = vpack.c.bf16 %v2774, %v2770
          %v2927 = vpack.c.bf16 %v2779, %v2775
          %v2928 = vpack.c.bf16 %v2780, %v2776
          %v2929 = vpack.c.bf16 %v2781, %v2777
          %v2930 = vpack.c.bf16 %v2782, %v2778
          %v2931 = vpack.c.bf16 %v2787, %v2783
          %v2932 = vpack.c.bf16 %v2788, %v2784
          %v2933 = vpack.c.bf16 %v2789, %v2785
          %v2934 = vpack.c.bf16 %v2790, %v2786
          %v2935 = vpack.c.bf16 %v2795, %v2791
          %v2936 = vpack.c.bf16 %v2796, %v2792
          %v2937 = vpack.c.bf16 %v2797, %v2793
          %v2938 = vpack.c.bf16 %v2798, %v2794
          %v2939 = vpack.c.bf16 %v2803, %v2799
          %v2940 = vpack.c.bf16 %v2804, %v2800
          %v2941 = vpack.c.bf16 %v2805, %v2801
          %v2942 = vpack.c.bf16 %v2806, %v2802
          %v2943 = vpack.c.bf16 %v2811, %v2807
          %v2944 = vpack.c.bf16 %v2812, %v2808
          %v2945 = vpack.c.bf16 %v2813, %v2809
          %v2946 = vpack.c.bf16 %v2814, %v2810
          %v2947 = vpack.c.bf16 %v2819, %v2815
          %v2948 = vpack.c.bf16 %v2820, %v2816
          %v2949 = vpack.c.bf16 %v2821, %v2817
          %v2950 = vpack.c.bf16 %v2822, %v2818
          %v2952 = vmul.bf16 %v2823, 1069105081
          %v2953 = vpow.bf16.pop %v2952
          %v2955 = vmul.bf16 %v2824, 1069105081
          %v2956 = vpow.bf16.pop %v2955
          %v2958 = vmul.bf16 %v2825, 1069105081
          %v2959 = vpow.bf16.pop %v2958
          %v2961 = vmul.bf16 %v2826, 1069105081
          %v2962 = vpow.bf16.pop %v2961
          %v2964 = vmul.bf16 %v2827, 1069105081
          %v2965 = vpow.bf16.pop %v2964
          %v2967 = vmul.bf16 %v2828, 1069105081
          %v2968 = vpow.bf16.pop %v2967
          %v2970 = vmul.bf16 %v2829, 1069105081
          %v2971 = vpow.bf16.pop %v2970
          %v2973 = vmul.bf16 %v2830, 1069105081
          %v2974 = vpow.bf16.pop %v2973
          %v2976 = vmul.bf16 %v2831, 1069105081
          %v2977 = vpow.bf16.pop %v2976
          %v2979 = vmul.bf16 %v2832, 1069105081
          %v2980 = vpow.bf16.pop %v2979
          %v2982 = vmul.bf16 %v2833, 1069105081
          %v2983 = vpow.bf16.pop %v2982
          %v2985 = vmul.bf16 %v2834, 1069105081
          %v2986 = vpow.bf16.pop %v2985
          %v2988 = vmul.bf16 %v2835, 1069105081
          %v2989 = vpow.bf16.pop %v2988
          %v2991 = vmul.bf16 %v2836, 1069105081
          %v2992 = vpow.bf16.pop %v2991
          %v2994 = vmul.bf16 %v2837, 1069105081
          %v2995 = vpow.bf16.pop %v2994
          %v2997 = vmul.bf16 %v2838, 1069105081
          %v2998 = vpow.bf16.pop %v2997
          %v3000 = vmul.bf16 %v2839, 1069105081
          %v3001 = vpow.bf16.pop %v3000
          %v3003 = vmul.bf16 %v2840, 1069105081
          %v3004 = vpow.bf16.pop %v3003
          %v3006 = vmul.bf16 %v2841, 1069105081
          %v3007 = vpow.bf16.pop %v3006
          %v3009 = vmul.bf16 %v2842, 1069105081
          %v3010 = vpow.bf16.pop %v3009
          %v3012 = vmul.bf16 %v2843, 1069105081
          %v3013 = vpow.bf16.pop %v3012
          %v3015 = vmul.bf16 %v2844, 1069105081
          %v3016 = vpow.bf16.pop %v3015
          %v3018 = vmul.bf16 %v2845, 1069105081
          %v3019 = vpow.bf16.pop %v3018
          %v3021 = vmul.bf16 %v2846, 1069105081
          %v3022 = vpow.bf16.pop %v3021
          %v3024 = vmul.bf16 %v2847, 1069105081
          %v3025 = vpow.bf16.pop %v3024
          %v3027 = vmul.bf16 %v2848, 1069105081
          %v3028 = vpow.bf16.pop %v3027
          %v3030 = vmul.bf16 %v2849, 1069105081
          %v3031 = vpow.bf16.pop %v3030
          %v3033 = vmul.bf16 %v2850, 1069105081
          %v3034 = vpow.bf16.pop %v3033
          %v3036 = vmul.bf16 %v2851, 1069105081
          %v3037 = vpow.bf16.pop %v3036
          %v3039 = vmul.bf16 %v2852, 1069105081
          %v3040 = vpow.bf16.pop %v3039
          %v3042 = vmul.bf16 %v2853, 1069105081
          %v3043 = vpow.bf16.pop %v3042
          %v3045 = vmul.bf16 %v2854, 1069105081
          %v3046 = vpow.bf16.pop %v3045
          %v3048 = vmul.bf16 %v2855, 1069105081
          %v3049 = vpow.bf16.pop %v3048
          %v3051 = vmul.bf16 %v2856, 1069105081
          %v3052 = vpow.bf16.pop %v3051
          %v3054 = vmul.bf16 %v2857, 1069105081
          %v3055 = vpow.bf16.pop %v3054
          %v3057 = vmul.bf16 %v2858, 1069105081
          %v3058 = vpow.bf16.pop %v3057
          %v3060 = vmul.bf16 %v2859, 1069105081
          %v3061 = vpow.bf16.pop %v3060
          %v3063 = vmul.bf16 %v2860, 1069105081
          %v3064 = vpow.bf16.pop %v3063
          %v3066 = vmul.bf16 %v2861, 1069105081
          %v3067 = vpow.bf16.pop %v3066
          %v3069 = vmul.bf16 %v2862, 1069105081
          %v3070 = vpow.bf16.pop %v3069
          %v3072 = vmul.bf16 %v2863, 1069105081
          %v3073 = vpow.bf16.pop %v3072
          %v3075 = vmul.bf16 %v2864, 1069105081
          %v3076 = vpow.bf16.pop %v3075
          %v3078 = vmul.bf16 %v2865, 1069105081
          %v3079 = vpow.bf16.pop %v3078
          %v3081 = vmul.bf16 %v2866, 1069105081
          %v3082 = vpow.bf16.pop %v3081
          %v3084 = vmul.bf16 %v2867, 1069105081
          %v3085 = vpow.bf16.pop %v3084
          %v3087 = vmul.bf16 %v2868, 1069105081
          %v3088 = vpow.bf16.pop %v3087
          %v3090 = vmul.bf16 %v2869, 1069105081
          %v3091 = vpow.bf16.pop %v3090
          %v3093 = vmul.bf16 %v2870, 1069105081
          %v3094 = vpow.bf16.pop %v3093
          %v3096 = vmul.bf16 %v2871, 1069105081
          %v3097 = vpow.bf16.pop %v3096
          %v3099 = vmul.bf16 %v2872, 1069105081
          %v3100 = vpow.bf16.pop %v3099
          %v3102 = vmul.bf16 %v2873, 1069105081
          %v3103 = vpow.bf16.pop %v3102
          %v3105 = vmul.bf16 %v2874, 1069105081
          %v3106 = vpow.bf16.pop %v3105
          %v3108 = vmul.bf16 %v2875, 1069105081
          %v3109 = vpow.bf16.pop %v3108
          %v3111 = vmul.bf16 %v2876, 1069105081
          %v3112 = vpow.bf16.pop %v3111
          %v3114 = vmul.bf16 %v2877, 1069105081
          %v3115 = vpow.bf16.pop %v3114
          %v3117 = vmul.bf16 %v2878, 1069105081
          %v3118 = vpow.bf16.pop %v3117
          %v3120 = vmul.bf16 %v2879, 1069105081
          %v3121 = vpow.bf16.pop %v3120
          %v3123 = vmul.bf16 %v2880, 1069105081
          %v3124 = vpow.bf16.pop %v3123
          %v3126 = vmul.bf16 %v2881, 1069105081
          %v3127 = vpow.bf16.pop %v3126
          %v3129 = vmul.bf16 %v2882, 1069105081
          %v3130 = vpow.bf16.pop %v3129
          %v3132 = vmul.bf16 %v2883, 1069105081
          %v3133 = vpow.bf16.pop %v3132
          %v3135 = vmul.bf16 %v2884, 1069105081
          %v3136 = vpow.bf16.pop %v3135
          %v3138 = vmul.bf16 %v2885, 1069105081
          %v3139 = vpow.bf16.pop %v3138
          %v3141 = vmul.bf16 %v2886, 1069105081
          %v3142 = vpow.bf16.pop %v3141
          %v3144 = vmul.bf16 %v2887, 1069105081
          %v3145 = vpow.bf16.pop %v3144
          %v3147 = vmul.bf16 %v2888, 1069105081
          %v3148 = vpow.bf16.pop %v3147
          %v3150 = vmul.bf16 %v2889, 1069105081
          %v3151 = vpow.bf16.pop %v3150
          %v3153 = vmul.bf16 %v2890, 1069105081
          %v3154 = vpow.bf16.pop %v3153
          %v3156 = vmul.bf16 %v2891, 1069105081
          %v3157 = vpow.bf16.pop %v3156
          %v3159 = vmul.bf16 %v2892, 1069105081
          %v3160 = vpow.bf16.pop %v3159
          %v3162 = vmul.bf16 %v2893, 1069105081
          %v3163 = vpow.bf16.pop %v3162
          %v3165 = vmul.bf16 %v2894, 1069105081
          %v3166 = vpow.bf16.pop %v3165
          %v3168 = vmul.bf16 %v2895, 1069105081
          %v3169 = vpow.bf16.pop %v3168
          %v3171 = vmul.bf16 %v2896, 1069105081
          %v3172 = vpow.bf16.pop %v3171
          %v3174 = vmul.bf16 %v2897, 1069105081
          %v3175 = vpow.bf16.pop %v3174
          %v3177 = vmul.bf16 %v2898, 1069105081
          %v3178 = vpow.bf16.pop %v3177
          %v3180 = vmul.bf16 %v2899, 1069105081
          %v3181 = vpow.bf16.pop %v3180
          %v3183 = vmul.bf16 %v2900, 1069105081
          %v3184 = vpow.bf16.pop %v3183
          %v3186 = vmul.bf16 %v2901, 1069105081
          %v3187 = vpow.bf16.pop %v3186
          %v3189 = vmul.bf16 %v2902, 1069105081
          %v3190 = vpow.bf16.pop %v3189
          %v3192 = vmul.bf16 %v2903, 1069105081
          %v3193 = vpow.bf16.pop %v3192
          %v3195 = vmul.bf16 %v2904, 1069105081
          %v3196 = vpow.bf16.pop %v3195
          %v3198 = vmul.bf16 %v2905, 1069105081
          %v3199 = vpow.bf16.pop %v3198
          %v3201 = vmul.bf16 %v2906, 1069105081
          %v3202 = vpow.bf16.pop %v3201
          %v3204 = vmul.bf16 %v2907, 1069105081
          %v3205 = vpow.bf16.pop %v3204
          %v3207 = vmul.bf16 %v2908, 1069105081
          %v3208 = vpow.bf16.pop %v3207
          %v3210 = vmul.bf16 %v2909, 1069105081
          %v3211 = vpow.bf16.pop %v3210
          %v3213 = vmul.bf16 %v2910, 1069105081
          %v3214 = vpow.bf16.pop %v3213
          %v3216 = vmul.bf16 %v2911, 1069105081
          %v3217 = vpow.bf16.pop %v3216
          %v3219 = vmul.bf16 %v2912, 1069105081
          %v3220 = vpow.bf16.pop %v3219
          %v3222 = vmul.bf16 %v2913, 1069105081
          %v3223 = vpow.bf16.pop %v3222
          %v3225 = vmul.bf16 %v2914, 1069105081
          %v3226 = vpow.bf16.pop %v3225
          %v3228 = vmul.bf16 %v2915, 1069105081
          %v3229 = vpow.bf16.pop %v3228
          %v3231 = vmul.bf16 %v2916, 1069105081
          %v3232 = vpow.bf16.pop %v3231
          %v3234 = vmul.bf16 %v2917, 1069105081
          %v3235 = vpow.bf16.pop %v3234
          %v3237 = vmul.bf16 %v2918, 1069105081
          %v3238 = vpow.bf16.pop %v3237
          %v3240 = vmul.bf16 %v2919, 1069105081
          %v3241 = vpow.bf16.pop %v3240
          %v3243 = vmul.bf16 %v2920, 1069105081
          %v3244 = vpow.bf16.pop %v3243
          %v3246 = vmul.bf16 %v2921, 1069105081
          %v3247 = vpow.bf16.pop %v3246
          %v3249 = vmul.bf16 %v2922, 1069105081
          %v3250 = vpow.bf16.pop %v3249
          %v3252 = vmul.bf16 %v2923, 1069105081
          %v3253 = vpow.bf16.pop %v3252
          %v3255 = vmul.bf16 %v2924, 1069105081
          %v3256 = vpow.bf16.pop %v3255
          %v3258 = vmul.bf16 %v2925, 1069105081
          %v3259 = vpow.bf16.pop %v3258
          %v3261 = vmul.bf16 %v2926, 1069105081
          %v3262 = vpow.bf16.pop %v3261
          %v3264 = vmul.bf16 %v2927, 1069105081
          %v3265 = vpow.bf16.pop %v3264
          %v3267 = vmul.bf16 %v2928, 1069105081
          %v3268 = vpow.bf16.pop %v3267
          %v3270 = vmul.bf16 %v2929, 1069105081
          %v3271 = vpow.bf16.pop %v3270
          %v3273 = vmul.bf16 %v2930, 1069105081
          %v3274 = vpow.bf16.pop %v3273
          %v3276 = vmul.bf16 %v2931, 1069105081
          %v3277 = vpow.bf16.pop %v3276
          %v3279 = vmul.bf16 %v2932, 1069105081
          %v3280 = vpow.bf16.pop %v3279
          %v3282 = vmul.bf16 %v2933, 1069105081
          %v3283 = vpow.bf16.pop %v3282
          %v3285 = vmul.bf16 %v2934, 1069105081
          %v3286 = vpow.bf16.pop %v3285
          %v3288 = vmul.bf16 %v2935, 1069105081
          %v3289 = vpow.bf16.pop %v3288
          %v3291 = vmul.bf16 %v2936, 1069105081
          %v3292 = vpow.bf16.pop %v3291
          %v3294 = vmul.bf16 %v2937, 1069105081
          %v3295 = vpow.bf16.pop %v3294
          %v3297 = vmul.bf16 %v2938, 1069105081
          %v3298 = vpow.bf16.pop %v3297
          %v3300 = vmul.bf16 %v2939, 1069105081
          %v3301 = vpow.bf16.pop %v3300
          %v3303 = vmul.bf16 %v2940, 1069105081
          %v3304 = vpow.bf16.pop %v3303
          %v3306 = vmul.bf16 %v2941, 1069105081
          %v3307 = vpow.bf16.pop %v3306
          %v3309 = vmul.bf16 %v2942, 1069105081
          %v3310 = vpow.bf16.pop %v3309
          %v3312 = vmul.bf16 %v2943, 1069105081
          %v3313 = vpow.bf16.pop %v3312
          %v3315 = vmul.bf16 %v2944, 1069105081
          %v3316 = vpow.bf16.pop %v3315
          %v3318 = vmul.bf16 %v2945, 1069105081
          %v3319 = vpow.bf16.pop %v3318
          %v3321 = vmul.bf16 %v2946, 1069105081
          %v3322 = vpow.bf16.pop %v3321
          %v3324 = vmul.bf16 %v2947, 1069105081
          %v3325 = vpow.bf16.pop %v3324
          %v3327 = vmul.bf16 %v2948, 1069105081
          %v3328 = vpow.bf16.pop %v3327
          %v3330 = vmul.bf16 %v2949, 1069105081
          %v3331 = vpow.bf16.pop %v3330
          %v3333 = vmul.bf16 %v2950, 1069105081
          %v3334 = vpow.bf16.pop %v3333
          %v3335 = vmul.bf16 %v2953, %v1299
          %v3336 = vmul.bf16 %v2956, %v1299
          %v3337 = vmul.bf16 %v2959, %v1299
          %v3338 = vmul.bf16 %v2962, %v1299
          %v3339 = vmul.bf16 %v2965, %v1300
          %v3340 = vmul.bf16 %v2968, %v1300
          %v3341 = vmul.bf16 %v2971, %v1300
          %v3342 = vmul.bf16 %v2974, %v1300
          %v3343 = vmul.bf16 %v2977, %v1301
          %v3344 = vmul.bf16 %v2980, %v1301
          %v3345 = vmul.bf16 %v2983, %v1301
          %v3346 = vmul.bf16 %v2986, %v1301
          %v3347 = vmul.bf16 %v2989, %v1302
          %v3348 = vmul.bf16 %v2992, %v1302
          %v3349 = vmul.bf16 %v2995, %v1302
          %v3350 = vmul.bf16 %v2998, %v1302
          %v3351 = vmul.bf16 %v3001, %v1303
          %v3352 = vmul.bf16 %v3004, %v1303
          %v3353 = vmul.bf16 %v3007, %v1303
          %v3354 = vmul.bf16 %v3010, %v1303
          %v3355 = vmul.bf16 %v3013, %v1304
          %v3356 = vmul.bf16 %v3016, %v1304
          %v3357 = vmul.bf16 %v3019, %v1304
          %v3358 = vmul.bf16 %v3022, %v1304
          %v3359 = vmul.bf16 %v3025, %v1305
          %v3360 = vmul.bf16 %v3028, %v1305
          %v3361 = vmul.bf16 %v3031, %v1305
          %v3362 = vmul.bf16 %v3034, %v1305
          %v3363 = vmul.bf16 %v3037, %v1306
          %v3364 = vmul.bf16 %v3040, %v1306
          %v3365 = vmul.bf16 %v3043, %v1306
          %v3366 = vmul.bf16 %v3046, %v1306
          %v3367 = vmul.bf16 %v3049, %v1307
          %v3368 = vmul.bf16 %v3052, %v1307
          %v3369 = vmul.bf16 %v3055, %v1307
          %v3370 = vmul.bf16 %v3058, %v1307
          %v3371 = vmul.bf16 %v3061, %v1308
          %v3372 = vmul.bf16 %v3064, %v1308
          %v3373 = vmul.bf16 %v3067, %v1308
          %v3374 = vmul.bf16 %v3070, %v1308
          %v3375 = vmul.bf16 %v3073, %v1309
          %v3376 = vmul.bf16 %v3076, %v1309
          %v3377 = vmul.bf16 %v3079, %v1309
          %v3378 = vmul.bf16 %v3082, %v1309
          %v3379 = vmul.bf16 %v3085, %v1310
          %v3380 = vmul.bf16 %v3088, %v1310
          %v3381 = vmul.bf16 %v3091, %v1310
          %v3382 = vmul.bf16 %v3094, %v1310
          %v3383 = vmul.bf16 %v3097, %v1311
          %v3384 = vmul.bf16 %v3100, %v1311
          %v3385 = vmul.bf16 %v3103, %v1311
          %v3386 = vmul.bf16 %v3106, %v1311
          %v3387 = vmul.bf16 %v3109, %v1312
          %v3388 = vmul.bf16 %v3112, %v1312
          %v3389 = vmul.bf16 %v3115, %v1312
          %v3390 = vmul.bf16 %v3118, %v1312
          %v3391 = vmul.bf16 %v3121, %v1313
          %v3392 = vmul.bf16 %v3124, %v1313
          %v3393 = vmul.bf16 %v3127, %v1313
          %v3394 = vmul.bf16 %v3130, %v1313
          %v3395 = vmul.bf16 %v3133, %v1314
          %v3396 = vmul.bf16 %v3136, %v1314
          %v3397 = vmul.bf16 %v3139, %v1314
          %v3398 = vmul.bf16 %v3142, %v1314
          %v3399 = vmul.bf16 %v3145, %v1315
          %v3400 = vmul.bf16 %v3148, %v1315
          %v3401 = vmul.bf16 %v3151, %v1315
          %v3402 = vmul.bf16 %v3154, %v1315
          %v3403 = vmul.bf16 %v3157, %v1316
          %v3404 = vmul.bf16 %v3160, %v1316
          %v3405 = vmul.bf16 %v3163, %v1316
          %v3406 = vmul.bf16 %v3166, %v1316
          %v3407 = vmul.bf16 %v3169, %v1317
          %v3408 = vmul.bf16 %v3172, %v1317
          %v3409 = vmul.bf16 %v3175, %v1317
          %v3410 = vmul.bf16 %v3178, %v1317
          %v3411 = vmul.bf16 %v3181, %v1318
          %v3412 = vmul.bf16 %v3184, %v1318
          %v3413 = vmul.bf16 %v3187, %v1318
          %v3414 = vmul.bf16 %v3190, %v1318
          %v3415 = vmul.bf16 %v3193, %v1319
          %v3416 = vmul.bf16 %v3196, %v1319
          %v3417 = vmul.bf16 %v3199, %v1319
          %v3418 = vmul.bf16 %v3202, %v1319
          %v3419 = vmul.bf16 %v3205, %v1320
          %v3420 = vmul.bf16 %v3208, %v1320
          %v3421 = vmul.bf16 %v3211, %v1320
          %v3422 = vmul.bf16 %v3214, %v1320
          %v3423 = vmul.bf16 %v3217, %v1321
          %v3424 = vmul.bf16 %v3220, %v1321
          %v3425 = vmul.bf16 %v3223, %v1321
          %v3426 = vmul.bf16 %v3226, %v1321
          %v3427 = vmul.bf16 %v3229, %v1322
          %v3428 = vmul.bf16 %v3232, %v1322
          %v3429 = vmul.bf16 %v3235, %v1322
          %v3430 = vmul.bf16 %v3238, %v1322
          %v3431 = vmul.bf16 %v3241, %v1323
          %v3432 = vmul.bf16 %v3244, %v1323
          %v3433 = vmul.bf16 %v3247, %v1323
          %v3434 = vmul.bf16 %v3250, %v1323
          %v3435 = vmul.bf16 %v3253, %v1324
          %v3436 = vmul.bf16 %v3256, %v1324
          %v3437 = vmul.bf16 %v3259, %v1324
          %v3438 = vmul.bf16 %v3262, %v1324
          %v3439 = vmul.bf16 %v3265, %v1325
          %v3440 = vmul.bf16 %v3268, %v1325
          %v3441 = vmul.bf16 %v3271, %v1325
          %v3442 = vmul.bf16 %v3274, %v1325
          %v3443 = vmul.bf16 %v3277, %v1326
          %v3444 = vmul.bf16 %v3280, %v1326
          %v3445 = vmul.bf16 %v3283, %v1326
          %v3446 = vmul.bf16 %v3286, %v1326
          %v3447 = vmul.bf16 %v3289, %v1327
          %v3448 = vmul.bf16 %v3292, %v1327
          %v3449 = vmul.bf16 %v3295, %v1327
          %v3450 = vmul.bf16 %v3298, %v1327
          %v3451 = vmul.bf16 %v3301, %v1328
          %v3452 = vmul.bf16 %v3304, %v1328
          %v3453 = vmul.bf16 %v3307, %v1328
          %v3454 = vmul.bf16 %v3310, %v1328
          %v3455 = vmul.bf16 %v3313, %v1329
          %v3456 = vmul.bf16 %v3316, %v1329
          %v3457 = vmul.bf16 %v3319, %v1329
          %v3458 = vmul.bf16 %v3322, %v1329
          %v3459 = vmul.bf16 %v3325, %v1330
          %v3460 = vmul.bf16 %v3328, %v1330
          %v3461 = vmul.bf16 %v3331, %v1330
          %v3462 = vmul.bf16 %v3334, %v1330
          %vm3463 = vcmp.ge.s32.totalorder %v851, %v1376
          %vm3464 = vcmp.lt.s32.totalorder %v851, %v1379
          %vm3465 = vmand %vm3463, %vm3464
          %v3466 = vsel %vm3465, 1, 0
          %v3467 = vcvt.s32.f32 %v3466
          %v3468 = vmul.f32 %v793, %v3467
          %v3469 = vmul.f32 %v795, %v3467
          %v3470 = vmul.f32 %v844, %v3467
          %v3471 = vmul.f32 %v846, %v3467
          %v3472 = vpack.c.bf16 %v3468, %v3468
          %v3473 = vpack.c.bf16 %v3469, %v3469
          %v3474 = vpack.c.bf16 %v3470, %v3470
          %v3475 = vpack.c.bf16 %v3471, %v3471
          %v3478 = vsel %vm735, %v3472, 1065369472
          %v3481 = vsel %vm735, %v3473, 1065369472
          %v3484 = vsel %vm735, %v3474, 1065369472
          %v3487 = vsel %vm735, %v3475, 1065369472
          %3489 = vmatprep.subr.bf16.mxu0 %v3336
          %3490 = vmatpush1.bf16.msra.mxu0 %v3335
          %3491 = vmatprep.subr.bf16.mxu0 %v3340
          %3492 = vmatpush1.bf16.msra.mxu0 %v3339
          %3493 = vmatprep.subr.bf16.mxu0 %v3344
          %3494 = vmatpush1.bf16.msra.mxu0 %v3343
          %3495 = vmatprep.subr.bf16.mxu0 %v3348
          %3496 = vmatpush1.bf16.msra.mxu0 %v3347
          %3497 = vmatprep.subr.bf16.mxu0 %v3352
          %3498 = vmatpush1.bf16.msra.mxu0 %v3351
          %3499 = vmatprep.subr.bf16.mxu0 %v3356
          %3500 = vmatpush1.bf16.msra.mxu0 %v3355
          %3501 = vmatprep.subr.bf16.mxu0 %v3360
          %3502 = vmatpush1.bf16.msra.mxu0 %v3359
          %3503 = vmatprep.subr.bf16.mxu0 %v3364
          %3504 = vmatpush1.bf16.msra.mxu0 %v3363
          %3505 = vmatprep.subr.bf16.mxu0 %v3368
          %3506 = vmatpush1.bf16.msra.mxu0 %v3367
          %3507 = vmatprep.subr.bf16.mxu0 %v3372
          %3508 = vmatpush1.bf16.msra.mxu0 %v3371
          %3509 = vmatprep.subr.bf16.mxu0 %v3376
          %3510 = vmatpush1.bf16.msra.mxu0 %v3375
          %3511 = vmatprep.subr.bf16.mxu0 %v3380
          %3512 = vmatpush1.bf16.msra.mxu0 %v3379
          %3513 = vmatprep.subr.bf16.mxu0 %v3384
          %3514 = vmatpush1.bf16.msra.mxu0 %v3383
          %3515 = vmatprep.subr.bf16.mxu0 %v3388
          %3516 = vmatpush1.bf16.msra.mxu0 %v3387
          %3517 = vmatprep.subr.bf16.mxu0 %v3392
          %3518 = vmatpush1.bf16.msra.mxu0 %v3391
          %3519 = vmatprep.subr.bf16.mxu0 %v3396
          %3520 = vmatpush1.bf16.msra.mxu0 %v3395
          %3521 = vmatprep.mubr.bf16.mxu0 %v3481
          %3522 = vmatmul.mubr.bf16.gmra.mrb[0].mxu0 %v3478
          %v3523 = vpop.f32.mrb[0].mxu0
          %v3524 = vadd.f32 0.0, %v3523
          %v3525 = vpop.f32.mrb[0].mxu0
          %v3526 = vadd.f32 0.0, %v3525
          %v3527 = vpop.f32.mrb[0].mxu0
          %v3528 = vadd.f32 0.0, %v3527
          %v3529 = vpop.f32.mrb[0].mxu0
          %v3530 = vadd.f32 0.0, %v3529
          %3531 = vdwg.mxu0
          %3532 = vmatprep.subr.bf16.mxu0 %v3400
          %3533 = vmatpush1.bf16.msra.mxu0 %v3399
          %3534 = vmatprep.subr.bf16.mxu0 %v3404
          %3535 = vmatpush1.bf16.msra.mxu0 %v3403
          %3536 = vmatprep.subr.bf16.mxu0 %v3408
          %3537 = vmatpush1.bf16.msra.mxu0 %v3407
          %3538 = vmatprep.subr.bf16.mxu0 %v3412
          %3539 = vmatpush1.bf16.msra.mxu0 %v3411
          %3540 = vmatprep.subr.bf16.mxu0 %v3416
          %3541 = vmatpush1.bf16.msra.mxu0 %v3415
          %3542 = vmatprep.subr.bf16.mxu0 %v3420
          %3543 = vmatpush1.bf16.msra.mxu0 %v3419
          %3544 = vmatprep.subr.bf16.mxu0 %v3424
          %3545 = vmatpush1.bf16.msra.mxu0 %v3423
          %3546 = vmatprep.subr.bf16.mxu0 %v3428
          %3547 = vmatpush1.bf16.msra.mxu0 %v3427
          %3548 = vmatprep.subr.bf16.mxu0 %v3432
          %3549 = vmatpush1.bf16.msra.mxu0 %v3431
          %3550 = vmatprep.subr.bf16.mxu0 %v3436
          %3551 = vmatpush1.bf16.msra.mxu0 %v3435
          %3552 = vmatprep.subr.bf16.mxu0 %v3440
          %3553 = vmatpush1.bf16.msra.mxu0 %v3439
          %3554 = vmatprep.subr.bf16.mxu0 %v3444
          %3555 = vmatpush1.bf16.msra.mxu0 %v3443
          %3556 = vmatprep.subr.bf16.mxu0 %v3448
          %3557 = vmatpush1.bf16.msra.mxu0 %v3447
          %3558 = vmatprep.subr.bf16.mxu0 %v3452
          %3559 = vmatpush1.bf16.msra.mxu0 %v3451
          %3560 = vmatprep.subr.bf16.mxu0 %v3456
          %3561 = vmatpush1.bf16.msra.mxu0 %v3455
          %3562 = vmatprep.subr.bf16.mxu0 %v3460
          %3563 = vmatpush1.bf16.msra.mxu0 %v3459
          %3564 = vmatprep.mubr.bf16.mxu0 %v3487
          %3565 = vmatmul.mubr.bf16.gmra.mrb[0].mxu0 %v3484
          %v3566 = vpop.f32.mrb[0].mxu0
          %v3567 = vadd.f32 %v3524, %v3566
          %v3568 = vpop.f32.mrb[0].mxu0
          %v3569 = vadd.f32 %v3526, %v3568
          %v3570 = vpop.f32.mrb[0].mxu0
          %v3571 = vadd.f32 %v3528, %v3570
          %v3572 = vpop.f32.mrb[0].mxu0
          %v3573 = vadd.f32 %v3530, %v3572
          %3574 = vdwg.mxu0
          %3575 = vmatprep.subr.bf16.mxu0 %v3338
          %3576 = vmatpush1.bf16.msra.mxu0 %v3337
          %3577 = vmatprep.subr.bf16.mxu0 %v3342
          %3578 = vmatpush1.bf16.msra.mxu0 %v3341
          %3579 = vmatprep.subr.bf16.mxu0 %v3346
          %3580 = vmatpush1.bf16.msra.mxu0 %v3345
          %3581 = vmatprep.subr.bf16.mxu0 %v3350
          %3582 = vmatpush1.bf16.msra.mxu0 %v3349
          %3583 = vmatprep.subr.bf16.mxu0 %v3354
          %3584 = vmatpush1.bf16.msra.mxu0 %v3353
          %3585 = vmatprep.subr.bf16.mxu0 %v3358
          %3586 = vmatpush1.bf16.msra.mxu0 %v3357
          %3587 = vmatprep.subr.bf16.mxu0 %v3362
          %3588 = vmatpush1.bf16.msra.mxu0 %v3361
          %3589 = vmatprep.subr.bf16.mxu0 %v3366
          %3590 = vmatpush1.bf16.msra.mxu0 %v3365
          %3591 = vmatprep.subr.bf16.mxu0 %v3370
          %3592 = vmatpush1.bf16.msra.mxu0 %v3369
          %3593 = vmatprep.subr.bf16.mxu0 %v3374
          %3594 = vmatpush1.bf16.msra.mxu0 %v3373
          %3595 = vmatprep.subr.bf16.mxu0 %v3378
          %3596 = vmatpush1.bf16.msra.mxu0 %v3377
          %3597 = vmatprep.subr.bf16.mxu0 %v3382
          %3598 = vmatpush1.bf16.msra.mxu0 %v3381
          %3599 = vmatprep.subr.bf16.mxu0 %v3386
          %3600 = vmatpush1.bf16.msra.mxu0 %v3385
          %3601 = vmatprep.subr.bf16.mxu0 %v3390
          %3602 = vmatpush1.bf16.msra.mxu0 %v3389
          %3603 = vmatprep.subr.bf16.mxu0 %v3394
          %3604 = vmatpush1.bf16.msra.mxu0 %v3393
          %3605 = vmatprep.subr.bf16.mxu0 %v3398
          %3606 = vmatpush1.bf16.msra.mxu0 %v3397
          %3607 = vmatprep.mubr.bf16.mxu0 %v3481
          %3608 = vmatmul.mubr.bf16.gmra.mrb[0].mxu0 %v3478
          %v3609 = vpop.f32.mrb[0].mxu0
          %v3610 = vadd.f32 0.0, %v3609
          %v3611 = vpop.f32.mrb[0].mxu0
          %v3612 = vadd.f32 0.0, %v3611
          %v3613 = vpop.f32.mrb[0].mxu0
          %v3614 = vadd.f32 0.0, %v3613
          %v3615 = vpop.f32.mrb[0].mxu0
          %v3616 = vadd.f32 0.0, %v3615
          %3617 = vdwg.mxu0
          %3618 = vmatprep.subr.bf16.mxu0 %v3402
          %3619 = vmatpush1.bf16.msra.mxu0 %v3401
          %3620 = vmatprep.subr.bf16.mxu0 %v3406
          %3621 = vmatpush1.bf16.msra.mxu0 %v3405
          %3622 = vmatprep.subr.bf16.mxu0 %v3410
          %3623 = vmatpush1.bf16.msra.mxu0 %v3409
          %3624 = vmatprep.subr.bf16.mxu0 %v3414
          %3625 = vmatpush1.bf16.msra.mxu0 %v3413
          %3626 = vmatprep.subr.bf16.mxu0 %v3418
          %3627 = vmatpush1.bf16.msra.mxu0 %v3417
          %3628 = vmatprep.subr.bf16.mxu0 %v3422
          %3629 = vmatpush1.bf16.msra.mxu0 %v3421
          %3630 = vmatprep.subr.bf16.mxu0 %v3426
          %3631 = vmatpush1.bf16.msra.mxu0 %v3425
          %3632 = vmatprep.subr.bf16.mxu0 %v3430
          %3633 = vmatpush1.bf16.msra.mxu0 %v3429
          %3634 = vmatprep.subr.bf16.mxu0 %v3434
          %3635 = vmatpush1.bf16.msra.mxu0 %v3433
          %3636 = vmatprep.subr.bf16.mxu0 %v3438
          %3637 = vmatpush1.bf16.msra.mxu0 %v3437
          %3638 = vmatprep.subr.bf16.mxu0 %v3442
          %3639 = vmatpush1.bf16.msra.mxu0 %v3441
          %3640 = vmatprep.subr.bf16.mxu0 %v3446
          %3641 = vmatpush1.bf16.msra.mxu0 %v3445
          %3642 = vmatprep.subr.bf16.mxu0 %v3450
          %3643 = vmatpush1.bf16.msra.mxu0 %v3449
          %3644 = vmatprep.subr.bf16.mxu0 %v3454
          %3645 = vmatpush1.bf16.msra.mxu0 %v3453
          %3646 = vmatprep.subr.bf16.mxu0 %v3458
          %3647 = vmatpush1.bf16.msra.mxu0 %v3457
          %3648 = vmatprep.subr.bf16.mxu0 %v3462
          %3649 = vmatpush1.bf16.msra.mxu0 %v3461
          %3650 = vmatprep.mubr.bf16.mxu0 %v3487
          %3651 = vmatmul.mubr.bf16.gmra.mrb[0].mxu0 %v3484
          %v3652 = vpop.f32.mrb[0].mxu0
          %v3653 = vadd.f32 %v3610, %v3652
          %v3654 = vpop.f32.mrb[0].mxu0
          %v3655 = vadd.f32 %v3612, %v3654
          %v3656 = vpop.f32.mrb[0].mxu0
          %v3657 = vadd.f32 %v3614, %v3656
          %v3658 = vpop.f32.mrb[0].mxu0
          %v3659 = vadd.f32 %v3616, %v3658
          %3660 = vdwg.mxu0
          %v3661 = vrcp.pop %v3571
          %v3662 = vrcp.pop %v3573
          %v3663 = vrcp.pop %v3657
          %v3664 = vrcp.pop %v3659
          %v3665 = vlaneseq
          %v3666 = vshrl.u32 %v3665, 7
          %v3667 = vsub.s32 0, %v3666
          %v3668 = vrot.slane %v3661, %v3667
          %v3669 = vlaneseq
          %v3670 = vshrl.u32 %v3669, 7
          %v3671 = vsub.s32 0, %v3670
          %v3672 = vrot.slane %v3662, %v3671
          %v3673 = vlaneseq
          %v3674 = vshrl.u32 %v3673, 7
          %v3675 = vsub.s32 0, %v3674
          %v3676 = vrot.slane %v3663, %v3675
          %v3677 = vlaneseq
          %v3678 = vshrl.u32 %v3677, 7
          %v3679 = vsub.s32 0, %v3678
          %v3680 = vrot.slane %v3664, %v3679
          %v3681 = vmul.f32 %v3567, %v3668
          %v3682 = vmul.f32 %v3569, %v3672
          %v3683 = vmul.f32 %v3653, %v3676
          %v3684 = vmul.f32 %v3655, %v3680
          %v3685 = vadd.f32 %v1371, %v3681
          %v3686 = vadd.f32 %v1372, %v3682
          %v3687 = vadd.f32 %v1373, %v3683
          %v3688 = vadd.f32 %v1374, %v3684
        $region85: #{tpu_custom_call.1} parent=79 // loop_footer
          %s1370 = sadd.s32 1, %s1366
        $region86: #{tpu_custom_call.1} parent=79 // loop_footer_branch
          %1365 = sbr.rel target = $region82
        $region87: #{tpu_custom_call.1} parent=79 // loop_exit
          _
        %v3689 = vld [vmem:[%s7] sm:$0xff]
        %3691 = vset.pattern.permute.xlu0 0
        %3692 = vperm.xlu0 %3691, %v3689
        %v3693 = vpop.permute.xlu0 %3692
        %v3695 = vmul.f32 %v1371, %v3693
        %v3696 = vmul.f32 %v1372, %v3693
        %v3697 = vmul.f32 %v1373, %v3693
        %v3698 = vmul.f32 %v1374, %v3693
        %v3699 = vld [vmem:[%s8] sm:$0xff]
        %3701 = vset.pattern.permute.xlu0 0
        %3702 = vperm.xlu0 %3701, %v3699
        %v3703 = vpop.permute.xlu0 %3702
        %v3705 = vadd.f32 %v3695, %v3703
        %v3706 = vadd.f32 %v3696, %v3703
        %v3707 = vadd.f32 %v3697, %v3703
        %v3708 = vadd.f32 %v3698, %v3703
        %v3709 = vxor.u32 %v3705, 2147483648
        %v3710 = vxor.u32 %v3706, 2147483648
        %v3711 = vxor.u32 %v3707, 2147483648
        %v3712 = vxor.u32 %v3708, 2147483648
        %v3713 = vmul.f32 %v3709, 1.442695
        %v3714 = vpow.pop %v3713
        %v3715 = vmul.f32 %v3710, 1.442695
        %v3716 = vpow.pop %v3715
        %v3717 = vmul.f32 %v3711, 1.442695
        %v3718 = vpow.pop %v3717
        %v3719 = vmul.f32 %v3712, 1.442695
        %v3720 = vpow.pop %v3719
        %v3721 = vadd.f32 %v3714, 1.0
        %v3722 = vadd.f32 %v3716, 1.0
        %v3723 = vadd.f32 %v3718, 1.0
        %v3724 = vadd.f32 %v3720, 1.0
        %v3725 = vrcp.pop %v3721
        %v3726 = vmul.f32 1.0, %v3725
        %v3727 = vrcp.pop %v3722
        %v3728 = vmul.f32 1.0, %v3727
        %v3729 = vrcp.pop %v3723
        %v3730 = vmul.f32 1.0, %v3729
        %v3731 = vrcp.pop %v3724
        %v3732 = vmul.f32 1.0, %v3731
        %v3733 = vmul.f32 %v3705, %v3726
        %v3734 = vmul.f32 %v3706, %v3728
        %v3735 = vmul.f32 %v3707, %v3730
        %v3736 = vmul.f32 %v3708, %v3732
        %v3737 = vld [vmem:[%s9] sm:$0xf]
        %v3738 = vpack.c.bf16 %v3733, %v3733
        %v3739 = vpack.c.bf16 %v3734, %v3734
        %v3740 = vpack.c.bf16 %v3735, %v3735
        %v3741 = vpack.c.bf16 %v3736, %v3736
        %v3743 = vsel %vm728, %v3737, 0
        %v3746 = vsel %vm735, %v3738, 0
        %v3749 = vsel %vm735, %v3739, 0
        %v3752 = vsel %vm735, %v3740, 0
        %v3755 = vsel %vm735, %v3741, 0
        %3757 = vmatprep.subr.bf16.mxu0 %v3749
        %3758 = vmatpush1.bf16.msra.mxu0 %v3746
        %3759 = vmatprep.subr.bf16.mxu0 0
        %3760 = vmatpush1.bf16.msra.mxu0 0
        %3761 = vmatprep.subr.bf16.mxu0 0
        %3762 = vmatpush1.bf16.msra.mxu0 0
        %3763 = vmatprep.subr.bf16.mxu0 0
        %3764 = vmatpush1.bf16.msra.mxu0 0
        %3765 = vmatprep.subr.bf16.mxu0 0
        %3766 = vmatpush1.bf16.msra.mxu0 0
        %3767 = vmatprep.subr.bf16.mxu0 0
        %3768 = vmatpush1.bf16.msra.mxu0 0
        %3769 = vmatprep.subr.bf16.mxu0 0
        %3770 = vmatpush1.bf16.msra.mxu0 0
        %3771 = vmatprep.subr.bf16.mxu0 0
        %3772 = vmatpush1.bf16.msra.mxu0 0
        %3773 = vmatprep.subr.bf16.mxu0 0
        %3774 = vmatpush1.bf16.msra.mxu0 0
        %3775 = vmatprep.subr.bf16.mxu0 0
        %3776 = vmatpush1.bf16.msra.mxu0 0
        %3777 = vmatprep.subr.bf16.mxu0 0
        %3778 = vmatpush1.bf16.msra.mxu0 0
        %3779 = vmatprep.subr.bf16.mxu0 0
        %3780 = vmatpush1.bf16.msra.mxu0 0
        %3781 = vmatprep.subr.bf16.mxu0 0
        %3782 = vmatpush1.bf16.msra.mxu0 0
        %3783 = vmatprep.subr.bf16.mxu0 0
        %3784 = vmatpush1.bf16.msra.mxu0 0
        %3785 = vmatprep.subr.bf16.mxu0 0
        %3786 = vmatpush1.bf16.msra.mxu0 0
        %3787 = vmatprep.subr.bf16.mxu0 0
        %3788 = vmatpush1.bf16.msra.mxu0 0
        %3789 = vmatprep.mubr.bf16.mxu0 0
        %3790 = vmatmul.mubr.bf16.gmra.mrb[0].mxu0 %v3743
        %v3791 = vpop.f32.mrb[0].mxu0
        %v3792 = vadd.f32 0.0, %v3791
        %v3793 = vpop.f32.mrb[0].mxu0
        %v3794 = vadd.f32 0.0, %v3793
        %v3795 = vpop.f32.mrb[0].mxu0
        %v3796 = vpop.f32.mrb[0].mxu0
        %3797 = vdwg.mxu0
        %3798 = vmatprep.subr.bf16.mxu0 %v3755
        %3799 = vmatpush1.bf16.msra.mxu0 %v3752
        %3800 = vmatprep.subr.bf16.mxu0 0
        %3801 = vmatpush1.bf16.msra.mxu0 0
        %3802 = vmatprep.subr.bf16.mxu0 0
        %3803 = vmatpush1.bf16.msra.mxu0 0
        %3804 = vmatprep.subr.bf16.mxu0 0
        %3805 = vmatpush1.bf16.msra.mxu0 0
        %3806 = vmatprep.subr.bf16.mxu0 0
        %3807 = vmatpush1.bf16.msra.mxu0 0
        %3808 = vmatprep.subr.bf16.mxu0 0
        %3809 = vmatpush1.bf16.msra.mxu0 0
        %3810 = vmatprep.subr.bf16.mxu0 0
        %3811 = vmatpush1.bf16.msra.mxu0 0
        %3812 = vmatprep.subr.bf16.mxu0 0
        %3813 = vmatpush1.bf16.msra.mxu0 0
        %3814 = vmatprep.subr.bf16.mxu0 0
        %3815 = vmatpush1.bf16.msra.mxu0 0
        %3816 = vmatprep.subr.bf16.mxu0 0
        %3817 = vmatpush1.bf16.msra.mxu0 0
        %3818 = vmatprep.subr.bf16.mxu0 0
        %3819 = vmatpush1.bf16.msra.mxu0 0
        %3820 = vmatprep.subr.bf16.mxu0 0
        %3821 = vmatpush1.bf16.msra.mxu0 0
        %3822 = vmatprep.subr.bf16.mxu0 0
        %3823 = vmatpush1.bf16.msra.mxu0 0
        %3824 = vmatprep.subr.bf16.mxu0 0
        %3825 = vmatpush1.bf16.msra.mxu0 0
        %3826 = vmatprep.subr.bf16.mxu0 0
        %3827 = vmatpush1.bf16.msra.mxu0 0
        %3828 = vmatprep.subr.bf16.mxu0 0
        %3829 = vmatpush1.bf16.msra.mxu0 0
        %3830 = vmatprep.mubr.bf16.mxu0 0
        %3831 = vmatmul.mubr.bf16.gmra.mrb[0].mxu0 %v3743
        %v3832 = vpop.f32.mrb[0].mxu0
        %v3833 = vadd.f32 0.0, %v3832
        %v3834 = vpop.f32.mrb[0].mxu0
        %v3835 = vadd.f32 0.0, %v3834
        %v3836 = vpop.f32.mrb[0].mxu0
        %v3837 = vpop.f32.mrb[0].mxu0
        %3838 = vdwg.mxu0
        %v3839 = vld [vmem:[%s10] sm:$0xff]
        %3841 = vset.pattern.permute.xlu0 0
        %3842 = vperm.xlu0 %3841, %v3839
        %v3843 = vpop.permute.xlu0 %3842
        %v3845 = vmul.f32 %v3792, %v3843
        %v3846 = vmul.f32 %v3794, %v3843
        %v3847 = vmul.f32 %v3833, %v3843
        %v3848 = vmul.f32 %v3835, %v3843
        %v3849 = vld [vmem:[%s11] sm:$0xff]
        %3851 = vset.pattern.permute.xlu0 0
        %3852 = vperm.xlu0 %3851, %v3849
        %v3853 = vpop.permute.xlu0 %3852
        %v3855 = vadd.f32 %v3845, %v3853
        %v3856 = vadd.f32 %v3846, %v3853
        %v3857 = vadd.f32 %v3847, %v3853
        %v3858 = vadd.f32 %v3848, %v3853
        %v3859 = vadd.f32 %v3855, %v691
        %v3860 = vadd.f32 %v3856, %v692
        %v3861 = vadd.f32 %v3857, %v693
        %v3862 = vadd.f32 %v3858, %v694
        %v3863 = vxor.u32 %v3859, 2147483648
        %v3864 = vxor.u32 %v3860, 2147483648
        %v3865 = vxor.u32 %v3861, 2147483648
        %v3866 = vxor.u32 %v3862, 2147483648
        %v3867 = vmul.f32 %v3863, 1.442695
        %v3868 = vpow.pop %v3867
        %v3869 = vmul.f32 %v3864, 1.442695
        %v3870 = vpow.pop %v3869
        %v3871 = vmul.f32 %v3865, 1.442695
        %v3872 = vpow.pop %v3871
        %v3873 = vmul.f32 %v3866, 1.442695
        %v3874 = vpow.pop %v3873
        %v3875 = vadd.f32 %v3868, 1.0
        %v3876 = vadd.f32 %v3870, 1.0
        %v3877 = vadd.f32 %v3872, 1.0
        %v3878 = vadd.f32 %v3874, 1.0
        %v3879 = vrcp.pop %v3875
        %v3880 = vmul.f32 1.0, %v3879
        %v3881 = vrcp.pop %v3876
        %v3882 = vmul.f32 1.0, %v3881
        %v3883 = vrcp.pop %v3877
        %v3884 = vmul.f32 1.0, %v3883
        %v3885 = vrcp.pop %v3878
        %v3886 = vmul.f32 1.0, %v3885
        %v3887 = vmul.f32 %v3859, %v3880
        %v3888 = vmul.f32 %v3860, %v3882
        %v3889 = vmul.f32 %v3861, %v3884
        %v3890 = vmul.f32 %v3862, %v3886
        %3891 = vst [vmem:[%s487] sm:$0xff] %v3887
        %3892 = vst [vmem:[%s487 + $0x8] sm:$0xff] %v3888
        %3893 = vst [vmem:[%s487 + $0x10] sm:$0xff] %v3889
        %3894 = vst [vmem:[%s487 + $0x18] sm:$0xff] %v3890
        %s3895 = sand.u32 %s357, 1
        %s3896 = scalar_lea.sflag [#allocation3], %s3895
        %s3897 = sand.u32 %s357, 1
        %s3898 = smul.addr %s3897, 32
        %s3899 = scalar_lea.vmem [#allocation2], %s3898
        // Predicated region
        $region88: #{tpu_custom_call.1} parent=79 // pred_check
          %p3900 = pneg %p367
        $region89: #{tpu_custom_call.1} parent=79 // pred_check_branch
          %3902 = sbr.rel (%p3900) target = $region91
        $region90: #{tpu_custom_call.1} parent=79 // pred_region
          %s3904 = ssub.s32 512, 512
          %3905 = vsyncadd %s3896, %s3904
          %s3906 = smul.addr %s29, 4
          %s3907 = smul.addr %s3906, 128
          %s3908 = scalar_lea.hbm %s15, %s3907
          %s3910 = sshll.u32 %s3899, 4
          %s3911 = int_to_ptr.vmem [resolvable:$true] %s3910
          %3913 = dma.vmem_to_hbm [thread:$0]  %s3911, 512, %s3908, %s3896
        $region91: #{tpu_custom_call.1} parent=79 // pred_fallthru
          _
      $region80: #{tpu_custom_call.1} parent=5 // pred_fallthru
        _
      %p3914 = scmp.le.s32.totalorder 2, %s24
      // Predicated region
      $region92: #{tpu_custom_call.1} parent=5 // pred_check
        %p3915 = pneg %p3914
      $region93: #{tpu_custom_call.1} parent=5 // pred_check_branch
        %3917 = sbr.rel (%p3915) target = $region95
      $region94: #{tpu_custom_call.1} parent=5 // pred_region
        %s3918 = ssub.s32 %s24, 2
        // Predicated region
        $region96: #{tpu_custom_call.1} parent=94 // pred_check
          %p3919 = pneg %p373
        $region97: #{tpu_custom_call.1} parent=94 // pred_check_branch
          %3921 = sbr.rel (%p3919) target = $region99
        $region98: #{tpu_custom_call.1} parent=94 // pred_region
          %s3922 = sand.u32 %s358, 1
          %s3923 = scalar_lea.sflag [#allocation3], %s3922
          %s3924 = sand.u32 %s358, 1
          %s3925 = smul.addr %s3924, 32
          %s3926 = scalar_lea.vmem [#allocation2], %s3925
          %3927 = dma.done %s3923, 512
        $region99: #{tpu_custom_call.1} parent=94 // pred_fallthru
          _
      $region95: #{tpu_custom_call.1} parent=5 // pred_fallthru
        _
    $region6: #{tpu_custom_call.1} parent=1 // loop_footer
      %s28 = sadd.s32 1, %s24
    $region7: #{tpu_custom_call.1} parent=1 // loop_footer_branch
      %23 = sbr.rel target = $region3
    $region8: #{tpu_custom_call.1} parent=1 // loop_exit
      _
    %3928 = vsyncpa [#allocation3], 1
    %s3929 = scalar_lea.sflag [#allocation3], 1
    %3930 = vsyncpa %s3929, 1

</llo_original>
